<compile_context>
chip_gen: v6e
topology: v6e:2x2x1
jax: 0.10.0
libtpu: 0.0.40
codegen_flags: <defaults>
</compile_context>

<pallas_src>
import functools

import jax
import jax.numpy as jnp
from jax import lax
from jax.experimental import pallas as pl
from jax.experimental.pallas import tpu as pltpu

BN_EPS = 1e-5  # torch BatchNorm1d default

# Flip to jnp.bfloat16 on v6e/v7x to run the conv matmuls at native MXU rate
# (accumulation stays f32 via preferred_element_type and BN renormalizes).
# Kept f32 here so the in-script reference check stays tight; on v5e keep all
# element-wise math f32 regardless (no bf16 VPU/EUP there).
MXU_DTYPE = jnp.float32


# ----------------------------- fused Pallas kernel ---------------------------


def _gcn1d_fused_kernel(*refs, block_shifts, n_blocks, cout, B, T):
    """refs = (cond, x, adw, adb, w_block_0..n-1, w_out, o).

    cond : SMEM (B, cond_dim) conditioning vectors (read as scalars).
    x    : VMEM (Cin0, B*T)   channels-first, time flattened onto lanes.
    adw  : VMEM (n_blocks, 4*Cout, cond_dim) FiLM adaptor weights.
    adb  : VMEM (n_blocks, 4*Cout, 1)        FiLM adaptor biases.
    w_i  : VMEM (3*Cout, n_taps_i*Cin_i) packed [tanh gate; sigmoid gate;
           1x1 residual] weights for block i.
    w_out: VMEM (out_ch, Cout) output 1x1 conv.
    o    : VMEM (B, out_ch, T) output, NCL layout.
    """
    cond_ref, x_ref, adw_ref, adb_ref = refs[:4]
    w_refs = refs[4:4 + n_blocks]
    wout_ref = refs[4 + n_blocks]
    o_ref = refs[5 + n_blocks]

    f32 = jnp.float32
    BT = B * T
    C2 = 2 * cout
    cond_dim = adw_ref.shape[-1]

    x = x_ref[...].astype(f32)                        # (Cin0, B*T)

    # Time index within each batch row (along lanes); used to zero positions
    # where a flat shift would otherwise leak data across the batch boundary.
    t_idx = lax.broadcasted_iota(jnp.int32, (1, BT), 1) % T

    for blk in range(n_blocks):
        shifts = block_shifts[blk]                    # static tuple of ints
        cin = x.shape[0]
        max_shift = max(shifts)

        # ---- im2col: (n_taps*Cin, B*T) of causally shifted copies of x ----
        if max_shift > 0:
            x_pad = jnp.concatenate(
                [jnp.zeros((cin, max_shift), f32), x], axis=1)
        else:
            x_pad = x
        taps = []
        for s in shifts:
            if s == 0:
                col = x
            else:
                col = x_pad[:, max_shift - s:max_shift - s + BT]
                col = jnp.where(t_idx >= s, col, 0.0)   # causal zero pad
            taps.append(col)
        x_col = taps[0] if len(taps) == 1 else jnp.concatenate(taps, axis=0)

        # ---- dilated causal conv + 1x1 residual conv: ONE MXU matmul ----
        w = w_refs[blk][...]
        y = jnp.dot(w.astype(MXU_DTYPE), x_col.astype(MXU_DTYPE),
                    preferred_element_type=f32)        # (3*Cout, B*T)
        conv = y[:C2]                                  # gate pre-activations
        res = y[C2:]                                   # residual path

        # ---- BatchNorm1d(affine=False), training-mode stats, single pass ----
        inv_n = 1.0 / BT
        s1 = jnp.sum(conv, axis=1, keepdims=True)
        s2 = jnp.sum(conv * conv, axis=1, keepdims=True)
        mean = s1 * inv_n
        var = s2 * inv_n - mean * mean
        norm = (conv - mean) * lax.rsqrt(var + BN_EPS)

        # ---- FiLM: adaptor Linear on cond, fused as scalar MACs from SMEM ----
        a_w = adw_ref[blk]                             # (4*Cout, cond_dim)
        a_b = adb_ref[blk]                             # (4*Cout, 1)
        g_parts, b_parts = [], []
        for bb in range(B):
            film = a_b
            for d in range(cond_dim):
                film = film + a_w[:, d:d + 1] * cond_ref[bb, d]
            g_parts.append(jnp.broadcast_to(film[:C2], (C2, T)))
            b_parts.append(jnp.broadcast_to(film[C2:], (C2, T)))
        g_bc = jnp.concatenate(g_parts, axis=1)        # (2*Cout, B*T)
        b_bc = jnp.concatenate(b_parts, axis=1)

        # ---- FiLM scale/shift + gated activation + residual ----
        z = norm * g_bc + b_bc
        x = jnp.tanh(z[:cout]) * jax.nn.sigmoid(z[cout:]) + res   # (Cout, B*T)

    # ---- output 1x1 conv + tanh, stored directly in NCL (B, out_ch, T) ----
    yo = jnp.tanh(jnp.dot(wout_ref[...].astype(f32), x,
                          preferred_element_type=f32))             # (out_ch, B*T)
    for bb in range(B):
        o_ref[bb] = yo[:, bb * T:(bb + 1) * T].astype(o_ref.dtype)

    # NOTE: everything (weights ~0.5 MiB + activations ~50 KiB) is VMEM
    # resident; for realistic audio lengths (large T) this would need a T-grid
    # with a max_shift halo, tiles sized for v7x's 64 MiB VMEM, and a
    # "parallel" grid axis so both v7x TensorCores are used.


# --------------------------- one-time param packing --------------------------


def prepare_params(params, dilations, T):
    """Hoisted out of the forward path: pack per-block weights once.

    Returns (static_cfg, arrays)."""
    w_packed, shifts_all = [], []
    cout = None
    for blk, dil in zip(params["blocks"], dilations):
        conv_w = blk["conv_w"]                          # (2*Cout, Cin, K)
        res_w = blk["res_w"][:, :, 0]                   # (Cout, Cin)
        C2, cin, K = conv_w.shape
        cout = C2 // 2
        # Valid causal taps: tap k reads x[t - (K-1-k)*dil]; shifts >= T only
        # ever see the zero padding and are dropped statically.
        taps = [k for k in range(K) if (K - 1 - k) * dil < T]
        shifts = tuple((K - 1 - k) * dil for k in taps)
        nt = len(taps)
        # Gate weights: (2*Cout, n_taps*Cin), tap-major / channel-minor.
        wc = jnp.transpose(conv_w[:, :, taps], (0, 2, 1)).reshape(C2, nt * cin)
        # Residual 1x1 conv folded in: non-zero only on the zero-shift tap.
        wr = jnp.zeros((cout, nt, cin), conv_w.dtype)
        wr = wr.at[:, shifts.index(0), :].set(res_w).reshape(cout, nt * cin)
        w_packed.append(jnp.concatenate([wc, wr], axis=0))   # (3*Cout, nt*Cin)
        shifts_all.append(shifts)

    adw = jnp.stack([b["ad_w"] for b in params["blocks"]])             # (nb,4C,cd)
    adb = jnp.stack([b["ad_b"] for b in params["blocks"]])[..., None]  # (nb,4C,1)
    w_out = params["out_w"][:, :, 0]                                   # (out_ch,C)

    cfg = dict(shifts=tuple(shifts_all), cout=cout, out_ch=w_out.shape[0],
               n_blocks=len(w_packed), T=T)
    arrs = dict(w=tuple(w_packed), adw=adw, adb=adb, w_out=w_out)
    return cfg, arrs


# --------------------------------- forward -----------------------------------


def gcn1d_forward(x_ncl, cond, arrs, *, cfg):
    """x_ncl: (B, in_ch, T), cond: (B, cond_dim). Returns (B, out_ch, T)."""
    B, in_ch, T = x_ncl.shape
    assert T == cfg["T"], "parameters were packed for a different T"
    n_blocks, cout, out_ch = cfg["n_blocks"], cfg["cout"], cfg["out_ch"]

    # NCL -> channels-first with time flattened onto lanes (one tiny relayout).
    x_flat = jnp.transpose(x_ncl, (1, 0, 2)).reshape(in_ch, B * T)

    kernel = functools.partial(
        _gcn1d_fused_kernel, block_shifts=cfg["shifts"], n_blocks=n_blocks,
        cout=cout, B=B, T=T)

    vmem = pl.BlockSpec(memory_space=pltpu.MemorySpace.VMEM)
    smem = pl.BlockSpec(memory_space=pltpu.MemorySpace.SMEM)
    return pl.pallas_call(
        kernel,
        out_shape=jax.ShapeDtypeStruct((B, out_ch, T), jnp.float32),
        in_specs=[smem] + [vmem] * (4 + n_blocks),
        out_specs=vmem,
    )(cond, x_flat, arrs["adw"], arrs["adb"], *arrs["w"], arrs["w_out"])


# -------------------------- params / pure-JAX reference ----------------------


def init_params(key, in_ch, out_ch, n_blocks, n_channels, ksize, cond_dim):
    blocks = []
    ch = in_ch
    for _ in range(n_blocks):
        key, k1, k2, k3, k4 = jax.random.split(key, 5)
        blocks.append(dict(
            conv_w=jax.random.normal(k1, (2 * n_channels, ch, ksize),
                                     jnp.float32) / jnp.sqrt(ch * ksize),
            res_w=jax.random.normal(k2, (n_channels, ch, 1),
                                    jnp.float32) / jnp.sqrt(ch),
            ad_w=jax.random.normal(k3, (4 * n_channels, cond_dim),
                                   jnp.float32) * 0.5,
            ad_b=jax.random.normal(k4, (4 * n_channels,), jnp.float32) * 0.5,
        ))
        ch = n_channels
    key, k5 = jax.random.split(key)
    out_w = jax.random.normal(k5, (out_ch, n_channels, 1),
                              jnp.float32) / jnp.sqrt(n_channels)
    return dict(blocks=blocks, out_w=out_w)


def ref_forward(x_ncl, cond, params, dilations):
    """Pure-JAX reference mirroring the torch forward (NCL layout)."""
    dn = ("NCH", "OIH", "NCH")
    x = x_ncl
    for blk, dil in zip(params["blocks"], dilations):
        K = blk["conv_w"].shape[-1]
        y = lax.conv_general_dilated(x, blk["conv_w"], (1,),
                                     [((K - 1) * dil, 0)], rhs_dilation=(dil,),
                                     dimension_numbers=dn)
        film = cond @ blk["ad_w"].T + blk["ad_b"]
        g, b = jnp.split(film, 2, axis=-1)
        m = jnp.mean(y, axis=(0, 2), keepdims=True)
        v = jnp.mean((y - m) ** 2, axis=(0, 2), keepdims=True)
        y = (y - m) / jnp.sqrt(v + BN_EPS)
        y = y * g[:, :, None] + b[:, :, None]
        yt, ys = jnp.split(y, 2, axis=1)
        gated = jnp.tanh(yt) * jax.nn.sigmoid(ys)
        res = lax.conv_general_dilated(x, blk["res_w"], (1,), [(0, 0)],
                                       dimension_numbers=dn)
        x = gated + res
    y = lax.conv_general_dilated(x, params["out_w"], (1,), [(0, 0)],
                                 dimension_numbers=dn)
    return jnp.tanh(y)


# ----------------------------------- main -------------------------------------

if __name__ == "__main__":
    B, T = 2, 64
    in_ch, out_ch = 1, 1
    n_blocks, n_channels, dil_growth, ksize, cond_dim = 4, 32, 16, 13, 3
    dilations = tuple(dil_growth ** i for i in range(n_blocks))

    key = jax.random.PRNGKey(0)
    kx, kc, kp = jax.random.split(key, 3)
    x = jax.random.normal(kx, (B, in_ch, T), jnp.float32)
    cond = jax.random.normal(kc, (B, cond_dim), jnp.float32)
    params = init_params(kp, in_ch, out_ch, n_blocks, n_channels, ksize,
                         cond_dim)

    # One-time weight packing (hoisted out of the per-call forward path).
    cfg, arrs = prepare_params(params, dilations, T)

    fwd = jax.jit(functools.partial(gcn1d_forward, cfg=cfg))
    y = jax.block_until_ready(fwd(x, cond, arrs))
    assert y.shape == (B, out_ch, T), y.shape

    y_ref = ref_forward(x, cond, params, dilations)
    max_err = float(jnp.max(jnp.abs(y - y_ref)))
    assert max_err < 2e-3, f"mismatch vs reference: {max_err}"

    # TODO(synk): BatchNorm running-stat buffer updates (a training side
    # effect) are not reproduced; normalization uses batch statistics as in
    # torch training mode.
    print("KERNEL_OK")
</pallas_src>

<mosaic_0001>
module attributes {stable_mosaic.version = 11 : i64} {
  func.func @_gcn1d_fused_kernel(%arg0: memref<2x3xf32, #tpu.memory_space<smem>>, %arg1: memref<1x128xf32, #tpu.memory_space<vmem>>, %arg2: memref<4x128x3xf32, #tpu.memory_space<vmem>>, %arg3: memref<4x128x1xf32, #tpu.memory_space<vmem>>, %arg4: memref<96x13xf32, #tpu.memory_space<vmem>>, %arg5: memref<96x128xf32, #tpu.memory_space<vmem>>, %arg6: memref<96x32xf32, #tpu.memory_space<vmem>>, %arg7: memref<96x32xf32, #tpu.memory_space<vmem>>, %arg8: memref<1x32xf32, #tpu.memory_space<vmem>>, %arg9: memref<2x1x64xf32, #tpu.memory_space<vmem>>) attributes {dimension_semantics = [], scalar_prefetch = 0 : i64, scratch_operands = 0 : i64, tpu.core_type = #tpu.core_type<tc>} {
    %c0 = arith.constant 0 : index
    %c0_0 = arith.constant 0 : index
    %0 = vector.load %arg1[%c0, %c0_0] : memref<1x128xf32, #tpu.memory_space<vmem>>, vector<1x128xf32>
    %1 = tpu.iota {dimensions = array<i32: 1>} : vector<1x128xi32>
    %c64_i32 = arith.constant 64 : i32
    %c0_i32 = arith.constant 0 : i32
    %2 = arith.cmpi eq, %c64_i32, %c0_i32 : i32
    %c1_i32 = arith.constant 1 : i32
    %3 = arith.select %2, %c1_i32, %c64_i32 : i32
    %4 = vector.broadcast %3 : i32 to vector<1x128xi32>
    %5 = arith.remsi %1, %4 : vector<1x128xi32>
    %c0_i32_1 = arith.constant 0 : i32
    %6 = vector.broadcast %c0_i32_1 : i32 to vector<1x128xi32>
    %7 = arith.cmpi ne, %5, %6 : vector<1x128xi32>
    %c0_i32_2 = arith.constant 0 : i32
    %8 = vector.broadcast %c0_i32_2 : i32 to vector<1x128xi32>
    %9 = arith.cmpi slt, %5, %8 : vector<1x128xi32>
    %c0_i32_3 = arith.constant 0 : i32
    %10 = arith.cmpi slt, %3, %c0_i32_3 : i32
    %11 = vector.broadcast %10 : i1 to vector<1x128xi1>
    %12 = vector.broadcast %11 : vector<1x128xi1> to vector<1x128xi1>
    %13 = arith.xori %9, %12 : vector<1x128xi1>
    %14 = arith.andi %13, %7 : vector<1x128xi1>
    %15 = vector.broadcast %3 : i32 to vector<1x128xi32>
    %16 = arith.addi %5, %15 : vector<1x128xi32>
    %17 = arith.select %14, %16, %5 : vector<1x128xi1>, vector<1x128xi32>
    %cst = arith.constant 0.000000e+00 : f32
    %18 = vector.broadcast %cst : f32 to vector<1x12xf32>
    %19 = tpu.concatenate %18, %0 in 1 : vector<1x12xf32>, vector<1x128xf32> -> vector<1x140xf32>
    %20 = vector.extract_strided_slice %19 {offsets = [0, 0], sizes = [1, 128], strides = [1, 1]} : vector<1x140xf32> to vector<1x128xf32>
    %c12_i32 = arith.constant 12 : i32
    %21 = vector.broadcast %c12_i32 : i32 to vector<1x128xi32>
    %22 = arith.cmpi sge, %17, %21 : vector<1x128xi32>
    %cst_4 = arith.constant 0.000000e+00 : f32
    %23 = vector.broadcast %cst_4 : f32 to vector<1x128xf32>
    %24 = arith.select %22, %20, %23 : vector<1x128xi1>, vector<1x128xf32>
    %25 = vector.extract_strided_slice %19 {offsets = [0, 1], sizes = [1, 128], strides = [1, 1]} : vector<1x140xf32> to vector<1x128xf32>
    %c11_i32 = arith.constant 11 : i32
    %26 = vector.broadcast %c11_i32 : i32 to vector<1x128xi32>
    %27 = arith.cmpi sge, %17, %26 : vector<1x128xi32>
    %cst_5 = arith.constant 0.000000e+00 : f32
    %28 = vector.broadcast %cst_5 : f32 to vector<1x128xf32>
    %29 = arith.select %27, %25, %28 : vector<1x128xi1>, vector<1x128xf32>
    %30 = vector.extract_strided_slice %19 {offsets = [0, 2], sizes = [1, 128], strides = [1, 1]} : vector<1x140xf32> to vector<1x128xf32>
    %c10_i32 = arith.constant 10 : i32
    %31 = vector.broadcast %c10_i32 : i32 to vector<1x128xi32>
    %32 = arith.cmpi sge, %17, %31 : vector<1x128xi32>
    %cst_6 = arith.constant 0.000000e+00 : f32
    %33 = vector.broadcast %cst_6 : f32 to vector<1x128xf32>
    %34 = arith.select %32, %30, %33 : vector<1x128xi1>, vector<1x128xf32>
    %35 = vector.extract_strided_slice %19 {offsets = [0, 3], sizes = [1, 128], strides = [1, 1]} : vector<1x140xf32> to vector<1x128xf32>
    %c9_i32 = arith.constant 9 : i32
    %36 = vector.broadcast %c9_i32 : i32 to vector<1x128xi32>
    %37 = arith.cmpi sge, %17, %36 : vector<1x128xi32>
    %cst_7 = arith.constant 0.000000e+00 : f32
    %38 = vector.broadcast %cst_7 : f32 to vector<1x128xf32>
    %39 = arith.select %37, %35, %38 : vector<1x128xi1>, vector<1x128xf32>
    %40 = vector.extract_strided_slice %19 {offsets = [0, 4], sizes = [1, 128], strides = [1, 1]} : vector<1x140xf32> to vector<1x128xf32>
    %c8_i32 = arith.constant 8 : i32
    %41 = vector.broadcast %c8_i32 : i32 to vector<1x128xi32>
    %42 = arith.cmpi sge, %17, %41 : vector<1x128xi32>
    %cst_8 = arith.constant 0.000000e+00 : f32
    %43 = vector.broadcast %cst_8 : f32 to vector<1x128xf32>
    %44 = arith.select %42, %40, %43 : vector<1x128xi1>, vector<1x128xf32>
    %45 = vector.extract_strided_slice %19 {offsets = [0, 5], sizes = [1, 128], strides = [1, 1]} : vector<1x140xf32> to vector<1x128xf32>
    %c7_i32 = arith.constant 7 : i32
    %46 = vector.broadcast %c7_i32 : i32 to vector<1x128xi32>
    %47 = arith.cmpi sge, %17, %46 : vector<1x128xi32>
    %cst_9 = arith.constant 0.000000e+00 : f32
    %48 = vector.broadcast %cst_9 : f32 to vector<1x128xf32>
    %49 = arith.select %47, %45, %48 : vector<1x128xi1>, vector<1x128xf32>
    %50 = vector.extract_strided_slice %19 {offsets = [0, 6], sizes = [1, 128], strides = [1, 1]} : vector<1x140xf32> to vector<1x128xf32>
    %c6_i32 = arith.constant 6 : i32
    %51 = vector.broadcast %c6_i32 : i32 to vector<1x128xi32>
    %52 = arith.cmpi sge, %17, %51 : vector<1x128xi32>
    %cst_10 = arith.constant 0.000000e+00 : f32
    %53 = vector.broadcast %cst_10 : f32 to vector<1x128xf32>
    %54 = arith.select %52, %50, %53 : vector<1x128xi1>, vector<1x128xf32>
    %55 = vector.extract_strided_slice %19 {offsets = [0, 7], sizes = [1, 128], strides = [1, 1]} : vector<1x140xf32> to vector<1x128xf32>
    %c5_i32 = arith.constant 5 : i32
    %56 = vector.broadcast %c5_i32 : i32 to vector<1x128xi32>
    %57 = arith.cmpi sge, %17, %56 : vector<1x128xi32>
    %cst_11 = arith.constant 0.000000e+00 : f32
    %58 = vector.broadcast %cst_11 : f32 to vector<1x128xf32>
    %59 = arith.select %57, %55, %58 : vector<1x128xi1>, vector<1x128xf32>
    %60 = vector.extract_strided_slice %19 {offsets = [0, 8], sizes = [1, 128], strides = [1, 1]} : vector<1x140xf32> to vector<1x128xf32>
    %c4_i32 = arith.constant 4 : i32
    %61 = vector.broadcast %c4_i32 : i32 to vector<1x128xi32>
    %62 = arith.cmpi sge, %17, %61 : vector<1x128xi32>
    %cst_12 = arith.constant 0.000000e+00 : f32
    %63 = vector.broadcast %cst_12 : f32 to vector<1x128xf32>
    %64 = arith.select %62, %60, %63 : vector<1x128xi1>, vector<1x128xf32>
    %65 = vector.extract_strided_slice %19 {offsets = [0, 9], sizes = [1, 128], strides = [1, 1]} : vector<1x140xf32> to vector<1x128xf32>
    %c3_i32 = arith.constant 3 : i32
    %66 = vector.broadcast %c3_i32 : i32 to vector<1x128xi32>
    %67 = arith.cmpi sge, %17, %66 : vector<1x128xi32>
    %cst_13 = arith.constant 0.000000e+00 : f32
    %68 = vector.broadcast %cst_13 : f32 to vector<1x128xf32>
    %69 = arith.select %67, %65, %68 : vector<1x128xi1>, vector<1x128xf32>
    %70 = vector.extract_strided_slice %19 {offsets = [0, 10], sizes = [1, 128], strides = [1, 1]} : vector<1x140xf32> to vector<1x128xf32>
    %c2_i32 = arith.constant 2 : i32
    %71 = vector.broadcast %c2_i32 : i32 to vector<1x128xi32>
    %72 = arith.cmpi sge, %17, %71 : vector<1x128xi32>
    %cst_14 = arith.constant 0.000000e+00 : f32
    %73 = vector.broadcast %cst_14 : f32 to vector<1x128xf32>
    %74 = arith.select %72, %70, %73 : vector<1x128xi1>, vector<1x128xf32>
    %75 = vector.extract_strided_slice %19 {offsets = [0, 11], sizes = [1, 128], strides = [1, 1]} : vector<1x140xf32> to vector<1x128xf32>
    %c1_i32_15 = arith.constant 1 : i32
    %76 = vector.broadcast %c1_i32_15 : i32 to vector<1x128xi32>
    %77 = arith.cmpi sge, %17, %76 : vector<1x128xi32>
    %cst_16 = arith.constant 0.000000e+00 : f32
    %78 = vector.broadcast %cst_16 : f32 to vector<1x128xf32>
    %79 = arith.select %77, %75, %78 : vector<1x128xi1>, vector<1x128xf32>
    %80 = tpu.concatenate %24, %29, %34, %39, %44, %49, %54, %59, %64, %69, %74, %79, %0 in 0 : vector<1x128xf32>, vector<1x128xf32>, vector<1x128xf32>, vector<1x128xf32>, vector<1x128xf32>, vector<1x128xf32>, vector<1x128xf32>, vector<1x128xf32>, vector<1x128xf32>, vector<1x128xf32>, vector<1x128xf32>, vector<1x128xf32>, vector<1x128xf32> -> vector<13x128xf32>
    %c0_17 = arith.constant 0 : index
    %c0_18 = arith.constant 0 : index
    %81 = vector.load %arg4[%c0_17, %c0_18] : memref<96x13xf32, #tpu.memory_space<vmem>>, vector<96x13xf32>
    %cst_19 = arith.constant dense<0.000000e+00> : vector<96x128xf32>
    %82 = tpu.matmul %81, %80, %cst_19 {dimension_numbers = #tpu.dot_dimension_numbers<[1], [0], [0], [1], [0, 0, 1, 1], [], []>} : vector<96x13xf32>, vector<13x128xf32>, vector<96x128xf32> -> vector<96x128xf32>
    %83 = vector.extract_strided_slice %82 {offsets = [0, 0], sizes = [64, 128], strides = [1, 1]} : vector<96x128xf32> to vector<64x128xf32>
    %84 = vector.extract_strided_slice %82 {offsets = [64, 0], sizes = [32, 128], strides = [1, 1]} : vector<96x128xf32> to vector<32x128xf32>
    %cst_20 = arith.constant dense<0.000000e+00> : vector<64xf32>
    %85 = vector.multi_reduction <add>, %83, %cst_20 [1] : vector<64x128xf32> to vector<64xf32>
    %86 = vector.shape_cast %85 : vector<64xf32> to vector<64x1xf32>
    %87 = arith.mulf %83, %83 : vector<64x128xf32>
    %cst_21 = arith.constant dense<0.000000e+00> : vector<64xf32>
    %88 = vector.multi_reduction <add>, %87, %cst_21 [1] : vector<64x128xf32> to vector<64xf32>
    %89 = vector.shape_cast %88 : vector<64xf32> to vector<64x1xf32>
    %cst_22 = arith.constant 7.812500e-03 : f32
    %90 = vector.broadcast %cst_22 : f32 to vector<64x1xf32>
    %91 = arith.mulf %86, %90 : vector<64x1xf32>
    %cst_23 = arith.constant 7.812500e-03 : f32
    %92 = vector.broadcast %cst_23 : f32 to vector<64x1xf32>
    %93 = arith.mulf %89, %92 : vector<64x1xf32>
    %94 = arith.mulf %91, %91 : vector<64x1xf32>
    %95 = arith.subf %93, %94 : vector<64x1xf32>
    %96 = vector.broadcast %91 : vector<64x1xf32> to vector<64x128xf32>
    %97 = arith.subf %83, %96 : vector<64x128xf32>
    %cst_24 = arith.constant 9.99999974E-6 : f32
    %98 = vector.broadcast %cst_24 : f32 to vector<64x1xf32>
    %99 = arith.addf %95, %98 : vector<64x1xf32>
    %100 = math.rsqrt %99 : vector<64x1xf32>
    %101 = vector.broadcast %100 : vector<64x1xf32> to vector<64x128xf32>
    %102 = arith.mulf %97, %101 : vector<64x128xf32>
    %c0_25 = arith.constant 0 : index
    %c0_26 = arith.constant 0 : index
    %c0_27 = arith.constant 0 : index
    %103 = vector.load %arg2[%c0_25, %c0_26, %c0_27] : memref<4x128x3xf32, #tpu.memory_space<vmem>>, vector<1x128x3xf32>
    %104 = vector.shape_cast %103 : vector<1x128x3xf32> to vector<128x3xf32>
    %c0_28 = arith.constant 0 : index
    %c0_29 = arith.constant 0 : index
    %c0_30 = arith.constant 0 : index
    %105 = vector.load %arg3[%c0_28, %c0_29, %c0_30] : memref<4x128x1xf32, #tpu.memory_space<vmem>>, vector<1x128x1xf32>
    %106 = vector.shape_cast %105 : vector<1x128x1xf32> to vector<128x1xf32>
    %107 = vector.extract_strided_slice %104 {offsets = [0, 0], sizes = [128, 1], strides = [1, 1]} : vector<128x3xf32> to vector<128x1xf32>
    %c0_31 = arith.constant 0 : index
    %c0_32 = arith.constant 0 : index
    %108 = memref.load %arg0[%c0_31, %c0_32] : memref<2x3xf32, #tpu.memory_space<smem>>
    %109 = vector.broadcast %108 : f32 to vector<128x1xf32>
    %110 = arith.mulf %107, %109 : vector<128x1xf32>
    %111 = arith.addf %106, %110 : vector<128x1xf32>
    %112 = vector.extract_strided_slice %104 {offsets = [0, 1], sizes = [128, 1], strides = [1, 1]} : vector<128x3xf32> to vector<128x1xf32>
    %c0_33 = arith.constant 0 : index
    %c1 = arith.constant 1 : index
    %113 = memref.load %arg0[%c0_33, %c1] : memref<2x3xf32, #tpu.memory_space<smem>>
    %114 = vector.broadcast %113 : f32 to vector<128x1xf32>
    %115 = arith.mulf %112, %114 : vector<128x1xf32>
    %116 = arith.addf %111, %115 : vector<128x1xf32>
    %117 = vector.extract_strided_slice %104 {offsets = [0, 2], sizes = [128, 1], strides = [1, 1]} : vector<128x3xf32> to vector<128x1xf32>
    %c0_34 = arith.constant 0 : index
    %c2 = arith.constant 2 : index
    %118 = memref.load %arg0[%c0_34, %c2] : memref<2x3xf32, #tpu.memory_space<smem>>
    %119 = vector.broadcast %118 : f32 to vector<128x1xf32>
    %120 = arith.mulf %117, %119 : vector<128x1xf32>
    %121 = arith.addf %116, %120 : vector<128x1xf32>
    %122 = vector.extract_strided_slice %121 {offsets = [0, 0], sizes = [64, 1], strides = [1, 1]} : vector<128x1xf32> to vector<64x1xf32>
    %123 = vector.shape_cast %122 : vector<64x1xf32> to vector<64x1xf32>
    %124 = vector.broadcast %123 : vector<64x1xf32> to vector<64x64xf32>
    %125 = vector.extract_strided_slice %121 {offsets = [64, 0], sizes = [64, 1], strides = [1, 1]} : vector<128x1xf32> to vector<64x1xf32>
    %126 = vector.shape_cast %125 : vector<64x1xf32> to vector<64x1xf32>
    %127 = vector.broadcast %126 : vector<64x1xf32> to vector<64x64xf32>
    %128 = vector.extract_strided_slice %104 {offsets = [0, 0], sizes = [128, 1], strides = [1, 1]} : vector<128x3xf32> to vector<128x1xf32>
    %c1_35 = arith.constant 1 : index
    %c0_36 = arith.constant 0 : index
    %129 = memref.load %arg0[%c1_35, %c0_36] : memref<2x3xf32, #tpu.memory_space<smem>>
    %130 = vector.broadcast %129 : f32 to vector<128x1xf32>
    %131 = arith.mulf %128, %130 : vector<128x1xf32>
    %132 = arith.addf %106, %131 : vector<128x1xf32>
    %133 = vector.extract_strided_slice %104 {offsets = [0, 1], sizes = [128, 1], strides = [1, 1]} : vector<128x3xf32> to vector<128x1xf32>
    %c1_37 = arith.constant 1 : index
    %c1_38 = arith.constant 1 : index
    %134 = memref.load %arg0[%c1_37, %c1_38] : memref<2x3xf32, #tpu.memory_space<smem>>
    %135 = vector.broadcast %134 : f32 to vector<128x1xf32>
    %136 = arith.mulf %133, %135 : vector<128x1xf32>
    %137 = arith.addf %132, %136 : vector<128x1xf32>
    %138 = vector.extract_strided_slice %104 {offsets = [0, 2], sizes = [128, 1], strides = [1, 1]} : vector<128x3xf32> to vector<128x1xf32>
    %c1_39 = arith.constant 1 : index
    %c2_40 = arith.constant 2 : index
    %139 = memref.load %arg0[%c1_39, %c2_40] : memref<2x3xf32, #tpu.memory_space<smem>>
    %140 = vector.broadcast %139 : f32 to vector<128x1xf32>
    %141 = arith.mulf %138, %140 : vector<128x1xf32>
    %142 = arith.addf %137, %141 : vector<128x1xf32>
    %143 = vector.extract_strided_slice %142 {offsets = [0, 0], sizes = [64, 1], strides = [1, 1]} : vector<128x1xf32> to vector<64x1xf32>
    %144 = vector.shape_cast %143 : vector<64x1xf32> to vector<64x1xf32>
    %145 = vector.broadcast %144 : vector<64x1xf32> to vector<64x64xf32>
    %146 = vector.extract_strided_slice %142 {offsets = [64, 0], sizes = [64, 1], strides = [1, 1]} : vector<128x1xf32> to vector<64x1xf32>
    %147 = vector.shape_cast %146 : vector<64x1xf32> to vector<64x1xf32>
    %148 = vector.broadcast %147 : vector<64x1xf32> to vector<64x64xf32>
    %149 = tpu.concatenate %124, %145 in 1 : vector<64x64xf32>, vector<64x64xf32> -> vector<64x128xf32>
    %150 = tpu.concatenate %127, %148 in 1 : vector<64x64xf32>, vector<64x64xf32> -> vector<64x128xf32>
    %151 = arith.mulf %102, %149 : vector<64x128xf32>
    %152 = arith.addf %151, %150 : vector<64x128xf32>
    %153 = vector.extract_strided_slice %152 {offsets = [0, 0], sizes = [32, 128], strides = [1, 1]} : vector<64x128xf32> to vector<32x128xf32>
    %154 = math.tanh %153 : vector<32x128xf32>
    %155 = vector.extract_strided_slice %152 {offsets = [32, 0], sizes = [32, 128], strides = [1, 1]} : vector<64x128xf32> to vector<32x128xf32>
    %156 = arith.negf %155 : vector<32x128xf32>
    %157 = math.exp %156 : vector<32x128xf32>
    %cst_41 = arith.constant 1.000000e+00 : f32
    %158 = vector.broadcast %cst_41 : f32 to vector<32x128xf32>
    %159 = arith.addf %158, %157 : vector<32x128xf32>
    %160 = arith.divf %158, %159 : vector<32x128xf32>
    %161 = arith.mulf %154, %160 : vector<32x128xf32>
    %162 = arith.addf %161, %84 : vector<32x128xf32>
    %cst_42 = arith.constant 0.000000e+00 : f32
    %163 = vector.broadcast %cst_42 : f32 to vector<32x48xf32>
    %164 = tpu.concatenate %163, %162 in 1 : vector<32x48xf32>, vector<32x128xf32> -> vector<32x176xf32>
    %165 = vector.extract_strided_slice %164 {offsets = [0, 0], sizes = [32, 128], strides = [1, 1]} : vector<32x176xf32> to vector<32x128xf32>
    %c48_i32 = arith.constant 48 : i32
    %166 = vector.broadcast %c48_i32 : i32 to vector<1x128xi32>
    %167 = arith.cmpi sge, %17, %166 : vector<1x128xi32>
    %cst_43 = arith.constant 0.000000e+00 : f32
    %168 = vector.shape_cast %167 : vector<1x128xi1> to vector<1x128xi1>
    %169 = vector.broadcast %168 : vector<1x128xi1> to vector<32x128xi1>
    %170 = vector.broadcast %cst_43 : f32 to vector<32x128xf32>
    %171 = arith.select %169, %165, %170 : vector<32x128xi1>, vector<32x128xf32>
    %172 = vector.extract_strided_slice %164 {offsets = [0, 16], sizes = [32, 128], strides = [1, 1]} : vector<32x176xf32> to vector<32x128xf32>
    %c32_i32 = arith.constant 32 : i32
    %173 = vector.broadcast %c32_i32 : i32 to vector<1x128xi32>
    %174 = arith.cmpi sge, %17, %173 : vector<1x128xi32>
    %cst_44 = arith.constant 0.000000e+00 : f32
    %175 = vector.shape_cast %174 : vector<1x128xi1> to vector<1x128xi1>
    %176 = vector.broadcast %175 : vector<1x128xi1> to vector<32x128xi1>
    %177 = vector.broadcast %cst_44 : f32 to vector<32x128xf32>
    %178 = arith.select %176, %172, %177 : vector<32x128xi1>, vector<32x128xf32>
    %179 = vector.extract_strided_slice %164 {offsets = [0, 32], sizes = [32, 128], strides = [1, 1]} : vector<32x176xf32> to vector<32x128xf32>
    %c16_i32 = arith.constant 16 : i32
    %180 = vector.broadcast %c16_i32 : i32 to vector<1x128xi32>
    %181 = arith.cmpi sge, %17, %180 : vector<1x128xi32>
    %cst_45 = arith.constant 0.000000e+00 : f32
    %182 = vector.shape_cast %181 : vector<1x128xi1> to vector<1x128xi1>
    %183 = vector.broadcast %182 : vector<1x128xi1> to vector<32x128xi1>
    %184 = vector.broadcast %cst_45 : f32 to vector<32x128xf32>
    %185 = arith.select %183, %179, %184 : vector<32x128xi1>, vector<32x128xf32>
    %186 = tpu.concatenate %171, %178, %185, %162 in 0 : vector<32x128xf32>, vector<32x128xf32>, vector<32x128xf32>, vector<32x128xf32> -> vector<128x128xf32>
    %c0_46 = arith.constant 0 : index
    %c0_47 = arith.constant 0 : index
    %187 = vector.load %arg5[%c0_46, %c0_47] : memref<96x128xf32, #tpu.memory_space<vmem>>, vector<96x128xf32>
    %cst_48 = arith.constant dense<0.000000e+00> : vector<96x128xf32>
    %188 = tpu.matmul %187, %186, %cst_48 {dimension_numbers = #tpu.dot_dimension_numbers<[1], [0], [0], [1], [0, 0, 1, 1], [], []>} : vector<96x128xf32>, vector<128x128xf32>, vector<96x128xf32> -> vector<96x128xf32>
    %189 = vector.extract_strided_slice %188 {offsets = [0, 0], sizes = [64, 128], strides = [1, 1]} : vector<96x128xf32> to vector<64x128xf32>
    %190 = vector.extract_strided_slice %188 {offsets = [64, 0], sizes = [32, 128], strides = [1, 1]} : vector<96x128xf32> to vector<32x128xf32>
    %cst_49 = arith.constant dense<0.000000e+00> : vector<64xf32>
    %191 = vector.multi_reduction <add>, %189, %cst_49 [1] : vector<64x128xf32> to vector<64xf32>
    %192 = vector.shape_cast %191 : vector<64xf32> to vector<64x1xf32>
    %193 = arith.mulf %189, %189 : vector<64x128xf32>
    %cst_50 = arith.constant dense<0.000000e+00> : vector<64xf32>
    %194 = vector.multi_reduction <add>, %193, %cst_50 [1] : vector<64x128xf32> to vector<64xf32>
    %195 = vector.shape_cast %194 : vector<64xf32> to vector<64x1xf32>
    %cst_51 = arith.constant 7.812500e-03 : f32
    %196 = vector.broadcast %cst_51 : f32 to vector<64x1xf32>
    %197 = arith.mulf %192, %196 : vector<64x1xf32>
    %cst_52 = arith.constant 7.812500e-03 : f32
    %198 = vector.broadcast %cst_52 : f32 to vector<64x1xf32>
    %199 = arith.mulf %195, %198 : vector<64x1xf32>
    %200 = arith.mulf %197, %197 : vector<64x1xf32>
    %201 = arith.subf %199, %200 : vector<64x1xf32>
    %202 = vector.broadcast %197 : vector<64x1xf32> to vector<64x128xf32>
    %203 = arith.subf %189, %202 : vector<64x128xf32>
    %cst_53 = arith.constant 9.99999974E-6 : f32
    %204 = vector.broadcast %cst_53 : f32 to vector<64x1xf32>
    %205 = arith.addf %201, %204 : vector<64x1xf32>
    %206 = math.rsqrt %205 : vector<64x1xf32>
    %207 = vector.broadcast %206 : vector<64x1xf32> to vector<64x128xf32>
    %208 = arith.mulf %203, %207 : vector<64x128xf32>
    %c1_54 = arith.constant 1 : index
    %c0_55 = arith.constant 0 : index
    %c0_56 = arith.constant 0 : index
    %209 = vector.load %arg2[%c1_54, %c0_55, %c0_56] : memref<4x128x3xf32, #tpu.memory_space<vmem>>, vector<1x128x3xf32>
    %210 = vector.shape_cast %209 : vector<1x128x3xf32> to vector<128x3xf32>
    %c1_57 = arith.constant 1 : index
    %c0_58 = arith.constant 0 : index
    %c0_59 = arith.constant 0 : index
    %211 = vector.load %arg3[%c1_57, %c0_58, %c0_59] : memref<4x128x1xf32, #tpu.memory_space<vmem>>, vector<1x128x1xf32>
    %212 = vector.shape_cast %211 : vector<1x128x1xf32> to vector<128x1xf32>
    %213 = vector.extract_strided_slice %210 {offsets = [0, 0], sizes = [128, 1], strides = [1, 1]} : vector<128x3xf32> to vector<128x1xf32>
    %c0_60 = arith.constant 0 : index
    %c0_61 = arith.constant 0 : index
    %214 = memref.load %arg0[%c0_60, %c0_61] : memref<2x3xf32, #tpu.memory_space<smem>>
    %215 = vector.broadcast %214 : f32 to vector<128x1xf32>
    %216 = arith.mulf %213, %215 : vector<128x1xf32>
    %217 = arith.addf %212, %216 : vector<128x1xf32>
    %218 = vector.extract_strided_slice %210 {offsets = [0, 1], sizes = [128, 1], strides = [1, 1]} : vector<128x3xf32> to vector<128x1xf32>
    %c0_62 = arith.constant 0 : index
    %c1_63 = arith.constant 1 : index
    %219 = memref.load %arg0[%c0_62, %c1_63] : memref<2x3xf32, #tpu.memory_space<smem>>
    %220 = vector.broadcast %219 : f32 to vector<128x1xf32>
    %221 = arith.mulf %218, %220 : vector<128x1xf32>
    %222 = arith.addf %217, %221 : vector<128x1xf32>
    %223 = vector.extract_strided_slice %210 {offsets = [0, 2], sizes = [128, 1], strides = [1, 1]} : vector<128x3xf32> to vector<128x1xf32>
    %c0_64 = arith.constant 0 : index
    %c2_65 = arith.constant 2 : index
    %224 = memref.load %arg0[%c0_64, %c2_65] : memref<2x3xf32, #tpu.memory_space<smem>>
    %225 = vector.broadcast %224 : f32 to vector<128x1xf32>
    %226 = arith.mulf %223, %225 : vector<128x1xf32>
    %227 = arith.addf %222, %226 : vector<128x1xf32>
    %228 = vector.extract_strided_slice %227 {offsets = [0, 0], sizes = [64, 1], strides = [1, 1]} : vector<128x1xf32> to vector<64x1xf32>
    %229 = vector.shape_cast %228 : vector<64x1xf32> to vector<64x1xf32>
    %230 = vector.broadcast %229 : vector<64x1xf32> to vector<64x64xf32>
    %231 = vector.extract_strided_slice %227 {offsets = [64, 0], sizes = [64, 1], strides = [1, 1]} : vector<128x1xf32> to vector<64x1xf32>
    %232 = vector.shape_cast %231 : vector<64x1xf32> to vector<64x1xf32>
    %233 = vector.broadcast %232 : vector<64x1xf32> to vector<64x64xf32>
    %234 = vector.extract_strided_slice %210 {offsets = [0, 0], sizes = [128, 1], strides = [1, 1]} : vector<128x3xf32> to vector<128x1xf32>
    %c1_66 = arith.constant 1 : index
    %c0_67 = arith.constant 0 : index
    %235 = memref.load %arg0[%c1_66, %c0_67] : memref<2x3xf32, #tpu.memory_space<smem>>
    %236 = vector.broadcast %235 : f32 to vector<128x1xf32>
    %237 = arith.mulf %234, %236 : vector<128x1xf32>
    %238 = arith.addf %212, %237 : vector<128x1xf32>
    %239 = vector.extract_strided_slice %210 {offsets = [0, 1], sizes = [128, 1], strides = [1, 1]} : vector<128x3xf32> to vector<128x1xf32>
    %c1_68 = arith.constant 1 : index
    %c1_69 = arith.constant 1 : index
    %240 = memref.load %arg0[%c1_68, %c1_69] : memref<2x3xf32, #tpu.memory_space<smem>>
    %241 = vector.broadcast %240 : f32 to vector<128x1xf32>
    %242 = arith.mulf %239, %241 : vector<128x1xf32>
    %243 = arith.addf %238, %242 : vector<128x1xf32>
    %244 = vector.extract_strided_slice %210 {offsets = [0, 2], sizes = [128, 1], strides = [1, 1]} : vector<128x3xf32> to vector<128x1xf32>
    %c1_70 = arith.constant 1 : index
    %c2_71 = arith.constant 2 : index
    %245 = memref.load %arg0[%c1_70, %c2_71] : memref<2x3xf32, #tpu.memory_space<smem>>
    %246 = vector.broadcast %245 : f32 to vector<128x1xf32>
    %247 = arith.mulf %244, %246 : vector<128x1xf32>
    %248 = arith.addf %243, %247 : vector<128x1xf32>
    %249 = vector.extract_strided_slice %248 {offsets = [0, 0], sizes = [64, 1], strides = [1, 1]} : vector<128x1xf32> to vector<64x1xf32>
    %250 = vector.shape_cast %249 : vector<64x1xf32> to vector<64x1xf32>
    %251 = vector.broadcast %250 : vector<64x1xf32> to vector<64x64xf32>
    %252 = vector.extract_strided_slice %248 {offsets = [64, 0], sizes = [64, 1], strides = [1, 1]} : vector<128x1xf32> to vector<64x1xf32>
    %253 = vector.shape_cast %252 : vector<64x1xf32> to vector<64x1xf32>
    %254 = vector.broadcast %253 : vector<64x1xf32> to vector<64x64xf32>
    %255 = tpu.concatenate %230, %251 in 1 : vector<64x64xf32>, vector<64x64xf32> -> vector<64x128xf32>
    %256 = tpu.concatenate %233, %254 in 1 : vector<64x64xf32>, vector<64x64xf32> -> vector<64x128xf32>
    %257 = arith.mulf %208, %255 : vector<64x128xf32>
    %258 = arith.addf %257, %256 : vector<64x128xf32>
    %259 = vector.extract_strided_slice %258 {offsets = [0, 0], sizes = [32, 128], strides = [1, 1]} : vector<64x128xf32> to vector<32x128xf32>
    %260 = math.tanh %259 : vector<32x128xf32>
    %261 = vector.extract_strided_slice %258 {offsets = [32, 0], sizes = [32, 128], strides = [1, 1]} : vector<64x128xf32> to vector<32x128xf32>
    %262 = arith.negf %261 : vector<32x128xf32>
    %263 = math.exp %262 : vector<32x128xf32>
    %cst_72 = arith.constant 1.000000e+00 : f32
    %264 = vector.broadcast %cst_72 : f32 to vector<32x128xf32>
    %265 = arith.addf %264, %263 : vector<32x128xf32>
    %266 = arith.divf %264, %265 : vector<32x128xf32>
    %267 = arith.mulf %260, %266 : vector<32x128xf32>
    %268 = arith.addf %267, %190 : vector<32x128xf32>
    %c0_73 = arith.constant 0 : index
    %c0_74 = arith.constant 0 : index
    %269 = vector.load %arg6[%c0_73, %c0_74] : memref<96x32xf32, #tpu.memory_space<vmem>>, vector<96x32xf32>
    %cst_75 = arith.constant dense<0.000000e+00> : vector<96x128xf32>
    %270 = tpu.matmul %269, %268, %cst_75 {dimension_numbers = #tpu.dot_dimension_numbers<[1], [0], [0], [1], [0, 0, 1, 1], [], []>} : vector<96x32xf32>, vector<32x128xf32>, vector<96x128xf32> -> vector<96x128xf32>
    %271 = vector.extract_strided_slice %270 {offsets = [0, 0], sizes = [64, 128], strides = [1, 1]} : vector<96x128xf32> to vector<64x128xf32>
    %272 = vector.extract_strided_slice %270 {offsets = [64, 0], sizes = [32, 128], strides = [1, 1]} : vector<96x128xf32> to vector<32x128xf32>
    %cst_76 = arith.constant dense<0.000000e+00> : vector<64xf32>
    %273 = vector.multi_reduction <add>, %271, %cst_76 [1] : vector<64x128xf32> to vector<64xf32>
    %274 = vector.shape_cast %273 : vector<64xf32> to vector<64x1xf32>
    %275 = arith.mulf %271, %271 : vector<64x128xf32>
    %cst_77 = arith.constant dense<0.000000e+00> : vector<64xf32>
    %276 = vector.multi_reduction <add>, %275, %cst_77 [1] : vector<64x128xf32> to vector<64xf32>
    %277 = vector.shape_cast %276 : vector<64xf32> to vector<64x1xf32>
    %cst_78 = arith.constant 7.812500e-03 : f32
    %278 = vector.broadcast %cst_78 : f32 to vector<64x1xf32>
    %279 = arith.mulf %274, %278 : vector<64x1xf32>
    %cst_79 = arith.constant 7.812500e-03 : f32
    %280 = vector.broadcast %cst_79 : f32 to vector<64x1xf32>
    %281 = arith.mulf %277, %280 : vector<64x1xf32>
    %282 = arith.mulf %279, %279 : vector<64x1xf32>
    %283 = arith.subf %281, %282 : vector<64x1xf32>
    %284 = vector.broadcast %279 : vector<64x1xf32> to vector<64x128xf32>
    %285 = arith.subf %271, %284 : vector<64x128xf32>
    %cst_80 = arith.constant 9.99999974E-6 : f32
    %286 = vector.broadcast %cst_80 : f32 to vector<64x1xf32>
    %287 = arith.addf %283, %286 : vector<64x1xf32>
    %288 = math.rsqrt %287 : vector<64x1xf32>
    %289 = vector.broadcast %288 : vector<64x1xf32> to vector<64x128xf32>
    %290 = arith.mulf %285, %289 : vector<64x128xf32>
    %c2_81 = arith.constant 2 : index
    %c0_82 = arith.constant 0 : index
    %c0_83 = arith.constant 0 : index
    %291 = vector.load %arg2[%c2_81, %c0_82, %c0_83] : memref<4x128x3xf32, #tpu.memory_space<vmem>>, vector<1x128x3xf32>
    %292 = vector.shape_cast %291 : vector<1x128x3xf32> to vector<128x3xf32>
    %c2_84 = arith.constant 2 : index
    %c0_85 = arith.constant 0 : index
    %c0_86 = arith.constant 0 : index
    %293 = vector.load %arg3[%c2_84, %c0_85, %c0_86] : memref<4x128x1xf32, #tpu.memory_space<vmem>>, vector<1x128x1xf32>
    %294 = vector.shape_cast %293 : vector<1x128x1xf32> to vector<128x1xf32>
    %295 = vector.extract_strided_slice %292 {offsets = [0, 0], sizes = [128, 1], strides = [1, 1]} : vector<128x3xf32> to vector<128x1xf32>
    %c0_87 = arith.constant 0 : index
    %c0_88 = arith.constant 0 : index
    %296 = memref.load %arg0[%c0_87, %c0_88] : memref<2x3xf32, #tpu.memory_space<smem>>
    %297 = vector.broadcast %296 : f32 to vector<128x1xf32>
    %298 = arith.mulf %295, %297 : vector<128x1xf32>
    %299 = arith.addf %294, %298 : vector<128x1xf32>
    %300 = vector.extract_strided_slice %292 {offsets = [0, 1], sizes = [128, 1], strides = [1, 1]} : vector<128x3xf32> to vector<128x1xf32>
    %c0_89 = arith.constant 0 : index
    %c1_90 = arith.constant 1 : index
    %301 = memref.load %arg0[%c0_89, %c1_90] : memref<2x3xf32, #tpu.memory_space<smem>>
    %302 = vector.broadcast %301 : f32 to vector<128x1xf32>
    %303 = arith.mulf %300, %302 : vector<128x1xf32>
    %304 = arith.addf %299, %303 : vector<128x1xf32>
    %305 = vector.extract_strided_slice %292 {offsets = [0, 2], sizes = [128, 1], strides = [1, 1]} : vector<128x3xf32> to vector<128x1xf32>
    %c0_91 = arith.constant 0 : index
    %c2_92 = arith.constant 2 : index
    %306 = memref.load %arg0[%c0_91, %c2_92] : memref<2x3xf32, #tpu.memory_space<smem>>
    %307 = vector.broadcast %306 : f32 to vector<128x1xf32>
    %308 = arith.mulf %305, %307 : vector<128x1xf32>
    %309 = arith.addf %304, %308 : vector<128x1xf32>
    %310 = vector.extract_strided_slice %309 {offsets = [0, 0], sizes = [64, 1], strides = [1, 1]} : vector<128x1xf32> to vector<64x1xf32>
    %311 = vector.shape_cast %310 : vector<64x1xf32> to vector<64x1xf32>
    %312 = vector.broadcast %311 : vector<64x1xf32> to vector<64x64xf32>
    %313 = vector.extract_strided_slice %309 {offsets = [64, 0], sizes = [64, 1], strides = [1, 1]} : vector<128x1xf32> to vector<64x1xf32>
    %314 = vector.shape_cast %313 : vector<64x1xf32> to vector<64x1xf32>
    %315 = vector.broadcast %314 : vector<64x1xf32> to vector<64x64xf32>
    %316 = vector.extract_strided_slice %292 {offsets = [0, 0], sizes = [128, 1], strides = [1, 1]} : vector<128x3xf32> to vector<128x1xf32>
    %c1_93 = arith.constant 1 : index
    %c0_94 = arith.constant 0 : index
    %317 = memref.load %arg0[%c1_93, %c0_94] : memref<2x3xf32, #tpu.memory_space<smem>>
    %318 = vector.broadcast %317 : f32 to vector<128x1xf32>
    %319 = arith.mulf %316, %318 : vector<128x1xf32>
    %320 = arith.addf %294, %319 : vector<128x1xf32>
    %321 = vector.extract_strided_slice %292 {offsets = [0, 1], sizes = [128, 1], strides = [1, 1]} : vector<128x3xf32> to vector<128x1xf32>
    %c1_95 = arith.constant 1 : index
    %c1_96 = arith.constant 1 : index
    %322 = memref.load %arg0[%c1_95, %c1_96] : memref<2x3xf32, #tpu.memory_space<smem>>
    %323 = vector.broadcast %322 : f32 to vector<128x1xf32>
    %324 = arith.mulf %321, %323 : vector<128x1xf32>
    %325 = arith.addf %320, %324 : vector<128x1xf32>
    %326 = vector.extract_strided_slice %292 {offsets = [0, 2], sizes = [128, 1], strides = [1, 1]} : vector<128x3xf32> to vector<128x1xf32>
    %c1_97 = arith.constant 1 : index
    %c2_98 = arith.constant 2 : index
    %327 = memref.load %arg0[%c1_97, %c2_98] : memref<2x3xf32, #tpu.memory_space<smem>>
    %328 = vector.broadcast %327 : f32 to vector<128x1xf32>
    %329 = arith.mulf %326, %328 : vector<128x1xf32>
    %330 = arith.addf %325, %329 : vector<128x1xf32>
    %331 = vector.extract_strided_slice %330 {offsets = [0, 0], sizes = [64, 1], strides = [1, 1]} : vector<128x1xf32> to vector<64x1xf32>
    %332 = vector.shape_cast %331 : vector<64x1xf32> to vector<64x1xf32>
    %333 = vector.broadcast %332 : vector<64x1xf32> to vector<64x64xf32>
    %334 = vector.extract_strided_slice %330 {offsets = [64, 0], sizes = [64, 1], strides = [1, 1]} : vector<128x1xf32> to vector<64x1xf32>
    %335 = vector.shape_cast %334 : vector<64x1xf32> to vector<64x1xf32>
    %336 = vector.broadcast %335 : vector<64x1xf32> to vector<64x64xf32>
    %337 = tpu.concatenate %312, %333 in 1 : vector<64x64xf32>, vector<64x64xf32> -> vector<64x128xf32>
    %338 = tpu.concatenate %315, %336 in 1 : vector<64x64xf32>, vector<64x64xf32> -> vector<64x128xf32>
    %339 = arith.mulf %290, %337 : vector<64x128xf32>
    %340 = arith.addf %339, %338 : vector<64x128xf32>
    %341 = vector.extract_strided_slice %340 {offsets = [0, 0], sizes = [32, 128], strides = [1, 1]} : vector<64x128xf32> to vector<32x128xf32>
    %342 = math.tanh %341 : vector<32x128xf32>
    %343 = vector.extract_strided_slice %340 {offsets = [32, 0], sizes = [32, 128], strides = [1, 1]} : vector<64x128xf32> to vector<32x128xf32>
    %344 = arith.negf %343 : vector<32x128xf32>
    %345 = math.exp %344 : vector<32x128xf32>
    %cst_99 = arith.constant 1.000000e+00 : f32
    %346 = vector.broadcast %cst_99 : f32 to vector<32x128xf32>
    %347 = arith.addf %346, %345 : vector<32x128xf32>
    %348 = arith.divf %346, %347 : vector<32x128xf32>
    %349 = arith.mulf %342, %348 : vector<32x128xf32>
    %350 = arith.addf %349, %272 : vector<32x128xf32>
    %c0_100 = arith.constant 0 : index
    %c0_101 = arith.constant 0 : index
    %351 = vector.load %arg7[%c0_100, %c0_101] : memref<96x32xf32, #tpu.memory_space<vmem>>, vector<96x32xf32>
    %cst_102 = arith.constant dense<0.000000e+00> : vector<96x128xf32>
    %352 = tpu.matmul %351, %350, %cst_102 {dimension_numbers = #tpu.dot_dimension_numbers<[1], [0], [0], [1], [0, 0, 1, 1], [], []>} : vector<96x32xf32>, vector<32x128xf32>, vector<96x128xf32> -> vector<96x128xf32>
    %353 = vector.extract_strided_slice %352 {offsets = [0, 0], sizes = [64, 128], strides = [1, 1]} : vector<96x128xf32> to vector<64x128xf32>
    %354 = vector.extract_strided_slice %352 {offsets = [64, 0], sizes = [32, 128], strides = [1, 1]} : vector<96x128xf32> to vector<32x128xf32>
    %cst_103 = arith.constant dense<0.000000e+00> : vector<64xf32>
    %355 = vector.multi_reduction <add>, %353, %cst_103 [1] : vector<64x128xf32> to vector<64xf32>
    %356 = vector.shape_cast %355 : vector<64xf32> to vector<64x1xf32>
    %357 = arith.mulf %353, %353 : vector<64x128xf32>
    %cst_104 = arith.constant dense<0.000000e+00> : vector<64xf32>
    %358 = vector.multi_reduction <add>, %357, %cst_104 [1] : vector<64x128xf32> to vector<64xf32>
    %359 = vector.shape_cast %358 : vector<64xf32> to vector<64x1xf32>
    %cst_105 = arith.constant 7.812500e-03 : f32
    %360 = vector.broadcast %cst_105 : f32 to vector<64x1xf32>
    %361 = arith.mulf %356, %360 : vector<64x1xf32>
    %cst_106 = arith.constant 7.812500e-03 : f32
    %362 = vector.broadcast %cst_106 : f32 to vector<64x1xf32>
    %363 = arith.mulf %359, %362 : vector<64x1xf32>
    %364 = arith.mulf %361, %361 : vector<64x1xf32>
    %365 = arith.subf %363, %364 : vector<64x1xf32>
    %366 = vector.broadcast %361 : vector<64x1xf32> to vector<64x128xf32>
    %367 = arith.subf %353, %366 : vector<64x128xf32>
    %cst_107 = arith.constant 9.99999974E-6 : f32
    %368 = vector.broadcast %cst_107 : f32 to vector<64x1xf32>
    %369 = arith.addf %365, %368 : vector<64x1xf32>
    %370 = math.rsqrt %369 : vector<64x1xf32>
    %371 = vector.broadcast %370 : vector<64x1xf32> to vector<64x128xf32>
    %372 = arith.mulf %367, %371 : vector<64x128xf32>
    %c3 = arith.constant 3 : index
    %c0_108 = arith.constant 0 : index
    %c0_109 = arith.constant 0 : index
    %373 = vector.load %arg2[%c3, %c0_108, %c0_109] : memref<4x128x3xf32, #tpu.memory_space<vmem>>, vector<1x128x3xf32>
    %374 = vector.shape_cast %373 : vector<1x128x3xf32> to vector<128x3xf32>
    %c3_110 = arith.constant 3 : index
    %c0_111 = arith.constant 0 : index
    %c0_112 = arith.constant 0 : index
    %375 = vector.load %arg3[%c3_110, %c0_111, %c0_112] : memref<4x128x1xf32, #tpu.memory_space<vmem>>, vector<1x128x1xf32>
    %376 = vector.shape_cast %375 : vector<1x128x1xf32> to vector<128x1xf32>
    %377 = vector.extract_strided_slice %374 {offsets = [0, 0], sizes = [128, 1], strides = [1, 1]} : vector<128x3xf32> to vector<128x1xf32>
    %c0_113 = arith.constant 0 : index
    %c0_114 = arith.constant 0 : index
    %378 = memref.load %arg0[%c0_113, %c0_114] : memref<2x3xf32, #tpu.memory_space<smem>>
    %379 = vector.broadcast %378 : f32 to vector<128x1xf32>
    %380 = arith.mulf %377, %379 : vector<128x1xf32>
    %381 = arith.addf %376, %380 : vector<128x1xf32>
    %382 = vector.extract_strided_slice %374 {offsets = [0, 1], sizes = [128, 1], strides = [1, 1]} : vector<128x3xf32> to vector<128x1xf32>
    %c0_115 = arith.constant 0 : index
    %c1_116 = arith.constant 1 : index
    %383 = memref.load %arg0[%c0_115, %c1_116] : memref<2x3xf32, #tpu.memory_space<smem>>
    %384 = vector.broadcast %383 : f32 to vector<128x1xf32>
    %385 = arith.mulf %382, %384 : vector<128x1xf32>
    %386 = arith.addf %381, %385 : vector<128x1xf32>
    %387 = vector.extract_strided_slice %374 {offsets = [0, 2], sizes = [128, 1], strides = [1, 1]} : vector<128x3xf32> to vector<128x1xf32>
    %c0_117 = arith.constant 0 : index
    %c2_118 = arith.constant 2 : index
    %388 = memref.load %arg0[%c0_117, %c2_118] : memref<2x3xf32, #tpu.memory_space<smem>>
    %389 = vector.broadcast %388 : f32 to vector<128x1xf32>
    %390 = arith.mulf %387, %389 : vector<128x1xf32>
    %391 = arith.addf %386, %390 : vector<128x1xf32>
    %392 = vector.extract_strided_slice %391 {offsets = [0, 0], sizes = [64, 1], strides = [1, 1]} : vector<128x1xf32> to vector<64x1xf32>
    %393 = vector.shape_cast %392 : vector<64x1xf32> to vector<64x1xf32>
    %394 = vector.broadcast %393 : vector<64x1xf32> to vector<64x64xf32>
    %395 = vector.extract_strided_slice %391 {offsets = [64, 0], sizes = [64, 1], strides = [1, 1]} : vector<128x1xf32> to vector<64x1xf32>
    %396 = vector.shape_cast %395 : vector<64x1xf32> to vector<64x1xf32>
    %397 = vector.broadcast %396 : vector<64x1xf32> to vector<64x64xf32>
    %398 = vector.extract_strided_slice %374 {offsets = [0, 0], sizes = [128, 1], strides = [1, 1]} : vector<128x3xf32> to vector<128x1xf32>
    %c1_119 = arith.constant 1 : index
    %c0_120 = arith.constant 0 : index
    %399 = memref.load %arg0[%c1_119, %c0_120] : memref<2x3xf32, #tpu.memory_space<smem>>
    %400 = vector.broadcast %399 : f32 to vector<128x1xf32>
    %401 = arith.mulf %398, %400 : vector<128x1xf32>
    %402 = arith.addf %376, %401 : vector<128x1xf32>
    %403 = vector.extract_strided_slice %374 {offsets = [0, 1], sizes = [128, 1], strides = [1, 1]} : vector<128x3xf32> to vector<128x1xf32>
    %c1_121 = arith.constant 1 : index
    %c1_122 = arith.constant 1 : index
    %404 = memref.load %arg0[%c1_121, %c1_122] : memref<2x3xf32, #tpu.memory_space<smem>>
    %405 = vector.broadcast %404 : f32 to vector<128x1xf32>
    %406 = arith.mulf %403, %405 : vector<128x1xf32>
    %407 = arith.addf %402, %406 : vector<128x1xf32>
    %408 = vector.extract_strided_slice %374 {offsets = [0, 2], sizes = [128, 1], strides = [1, 1]} : vector<128x3xf32> to vector<128x1xf32>
    %c1_123 = arith.constant 1 : index
    %c2_124 = arith.constant 2 : index
    %409 = memref.load %arg0[%c1_123, %c2_124] : memref<2x3xf32, #tpu.memory_space<smem>>
    %410 = vector.broadcast %409 : f32 to vector<128x1xf32>
    %411 = arith.mulf %408, %410 : vector<128x1xf32>
    %412 = arith.addf %407, %411 : vector<128x1xf32>
    %413 = vector.extract_strided_slice %412 {offsets = [0, 0], sizes = [64, 1], strides = [1, 1]} : vector<128x1xf32> to vector<64x1xf32>
    %414 = vector.shape_cast %413 : vector<64x1xf32> to vector<64x1xf32>
    %415 = vector.broadcast %414 : vector<64x1xf32> to vector<64x64xf32>
    %416 = vector.extract_strided_slice %412 {offsets = [64, 0], sizes = [64, 1], strides = [1, 1]} : vector<128x1xf32> to vector<64x1xf32>
    %417 = vector.shape_cast %416 : vector<64x1xf32> to vector<64x1xf32>
    %418 = vector.broadcast %417 : vector<64x1xf32> to vector<64x64xf32>
    %419 = tpu.concatenate %394, %415 in 1 : vector<64x64xf32>, vector<64x64xf32> -> vector<64x128xf32>
    %420 = tpu.concatenate %397, %418 in 1 : vector<64x64xf32>, vector<64x64xf32> -> vector<64x128xf32>
    %421 = arith.mulf %372, %419 : vector<64x128xf32>
    %422 = arith.addf %421, %420 : vector<64x128xf32>
    %423 = vector.extract_strided_slice %422 {offsets = [0, 0], sizes = [32, 128], strides = [1, 1]} : vector<64x128xf32> to vector<32x128xf32>
    %424 = math.tanh %423 : vector<32x128xf32>
    %425 = vector.extract_strided_slice %422 {offsets = [32, 0], sizes = [32, 128], strides = [1, 1]} : vector<64x128xf32> to vector<32x128xf32>
    %426 = arith.negf %425 : vector<32x128xf32>
    %427 = math.exp %426 : vector<32x128xf32>
    %cst_125 = arith.constant 1.000000e+00 : f32
    %428 = vector.broadcast %cst_125 : f32 to vector<32x128xf32>
    %429 = arith.addf %428, %427 : vector<32x128xf32>
    %430 = arith.divf %428, %429 : vector<32x128xf32>
    %431 = arith.mulf %424, %430 : vector<32x128xf32>
    %432 = arith.addf %431, %354 : vector<32x128xf32>
    %c0_126 = arith.constant 0 : index
    %c0_127 = arith.constant 0 : index
    %433 = vector.load %arg8[%c0_126, %c0_127] : memref<1x32xf32, #tpu.memory_space<vmem>>, vector<1x32xf32>
    %cst_128 = arith.constant dense<0.000000e+00> : vector<1x128xf32>
    %434 = tpu.matmul %433, %432, %cst_128 {dimension_numbers = #tpu.dot_dimension_numbers<[1], [0], [0], [1], [0, 0, 1, 1], [], []>} : vector<1x32xf32>, vector<32x128xf32>, vector<1x128xf32> -> vector<1x128xf32>
    %435 = math.tanh %434 : vector<1x128xf32>
    %436 = vector.extract_strided_slice %435 {offsets = [0, 0], sizes = [1, 64], strides = [1, 1]} : vector<1x128xf32> to vector<1x64xf32>
    %c0_129 = arith.constant 0 : index
    %c0_130 = arith.constant 0 : index
    %c0_131 = arith.constant 0 : index
    %437 = vector.load %arg9[%c0_129, %c0_130, %c0_131] : memref<2x1x64xf32, #tpu.memory_space<vmem>>, vector<1x1x64xf32>
    %438 = vector.shape_cast %437 : vector<1x1x64xf32> to vector<1x64xf32>
    %439 = vector.shape_cast %436 : vector<1x64xf32> to vector<1x1x64xf32>
    tpu.vector_store %arg9[%c0_129, %c0_130, %c0_131], %439 {strides = array<i32>} : memref<2x1x64xf32, #tpu.memory_space<vmem>>, vector<1x1x64xf32>,
    %440 = vector.extract_strided_slice %435 {offsets = [0, 64], sizes = [1, 64], strides = [1, 1]} : vector<1x128xf32> to vector<1x64xf32>
    %c1_132 = arith.constant 1 : index
    %c0_133 = arith.constant 0 : index
    %c0_134 = arith.constant 0 : index
    %441 = vector.load %arg9[%c1_132, %c0_133, %c0_134] : memref<2x1x64xf32, #tpu.memory_space<vmem>>, vector<1x1x64xf32>
    %442 = vector.shape_cast %441 : vector<1x1x64xf32> to vector<1x64xf32>
    %443 = vector.shape_cast %440 : vector<1x64xf32> to vector<1x1x64xf32>
    tpu.vector_store %arg9[%c1_132, %c0_133, %c0_134], %443 {strides = array<i32>} : memref<2x1x64xf32, #tpu.memory_space<vmem>>, vector<1x1x64xf32>,
    return
  }
}

</mosaic_0001>

<llo_original>
// kernel: gcn1d_forward.1
$region0: #{gcn1d_forward.1}
  #allocation0 [shape = 'u32[]', space=smem, size = 0x4, offset = 0x4, fixed_abs, tag = 'smem constant byte address 0x4 - core index']
  #allocation1 [shape = 'u32[144,128]{1,0:T(1,128)}', space=vmem, size = 0x12000, scoped, tag = 'internal scratch']
  %s0 = inlined_call_operand.vmem [shape: f32[2,3], index: 0, kind: input, shape index: {}]
  %s1 = inlined_call_operand.vmem [shape: f32[1,128], index: 1, kind: input, shape index: {}]
  %s2 = inlined_call_operand.vmem [shape: f32[4,128,3], index: 2, kind: input, shape index: {}]
  %s3 = inlined_call_operand.vmem [shape: f32[4,128,1], index: 3, kind: input, shape index: {}]
  %s4 = inlined_call_operand.vmem [shape: f32[96,13], index: 4, kind: input, shape index: {}]
  %s5 = inlined_call_operand.vmem [shape: f32[96,128], index: 5, kind: input, shape index: {}]
  %s6 = inlined_call_operand.vmem [shape: f32[96,32], index: 6, kind: input, shape index: {}]
  %s7 = inlined_call_operand.vmem [shape: f32[96,32], index: 7, kind: input, shape index: {}]
  %s8 = inlined_call_operand.vmem [shape: f32[1,32], index: 8, kind: input, shape index: {}]
  %s9 = inlined_call_operand.hbm [shape: f32[2,1,64], index: 9, kind: output, shape index: {}]
  %s10 = sld [smem:[#allocation0]]
  $region50: #{gcn1d_forward.1} parent=0
    _
  %s12 = ssub.s32 1, %s10
  %s13 = scalar_select 0, %s12, %s10
  $region1: #{gcn1d_forward.1} parent=0
    #allocation2 [shape = 'u8[1024]{0}', space=smem, size = 0x400, scoped, tag = 'input window, operand 0, single buffered']
    #allocation3 [shape = 's32[1]{0}', space=sflag, size = 0x4, scoped, tag = 'scoped memory for gcn1d_forward.1']
    #allocation4 [shape = 's32[1]{0}', space=sflag, size = 0x4, scoped, tag = 'scoped memory for gcn1d_forward.1']
    #allocation5 [shape = 'u8[1024]{0}', space=vmem, size = 0x400, scoped, tag = 'output window, operand 0, single buffered']
    %14 = vsyncpa [#allocation4], 0
    %15 = vsyncpa [#allocation3], 0
    // Predicated region
    $region2: #{gcn1d_forward.1} parent=1 // pred_check
      _
    $region3: #{gcn1d_forward.1} parent=1 // pred_check_branch
      %17 = sbr.rel (0) target = $region5
    $region4: #{gcn1d_forward.1} parent=1 // pred_region
      %s19 = ssub.s32 32, 32
      %20 = vsyncadd [#allocation4], %s19
      %s22 = sshll.u32 %s0, 4
      %s23 = int_to_ptr.vmem [resolvable:$true] %s22
      %25 = dma.vmem_to_smem %s23, 32, [#allocation2], [#allocation4]
    $region5: #{gcn1d_forward.1} parent=1 // pred_fallthru
      _
    // Predicated region
    $region6: #{gcn1d_forward.1} parent=1 // pred_check
      _
    $region7: #{gcn1d_forward.1} parent=1 // pred_check_branch
      %27 = sbr.rel (0) target = $region9
    $region8: #{gcn1d_forward.1} parent=1 // pred_region
      _
    $region9: #{gcn1d_forward.1} parent=1 // pred_fallthru
      _
    // Predicated region
    $region10: #{gcn1d_forward.1} parent=1 // pred_check
      _
    $region11: #{gcn1d_forward.1} parent=1 // pred_check_branch
      %29 = sbr.rel (0) target = $region13
    $region12: #{gcn1d_forward.1} parent=1 // pred_region
      _
    $region13: #{gcn1d_forward.1} parent=1 // pred_fallthru
      _
    // Predicated region
    $region14: #{gcn1d_forward.1} parent=1 // pred_check
      _
    $region15: #{gcn1d_forward.1} parent=1 // pred_check_branch
      %31 = sbr.rel (0) target = $region17
    $region16: #{gcn1d_forward.1} parent=1 // pred_region
      _
    $region17: #{gcn1d_forward.1} parent=1 // pred_fallthru
      _
    // Predicated region
    $region18: #{gcn1d_forward.1} parent=1 // pred_check
      _
    $region19: #{gcn1d_forward.1} parent=1 // pred_check_branch
      %33 = sbr.rel (0) target = $region21
    $region20: #{gcn1d_forward.1} parent=1 // pred_region
      _
    $region21: #{gcn1d_forward.1} parent=1 // pred_fallthru
      _
    // Predicated region
    $region22: #{gcn1d_forward.1} parent=1 // pred_check
      _
    $region23: #{gcn1d_forward.1} parent=1 // pred_check_branch
      %35 = sbr.rel (0) target = $region25
    $region24: #{gcn1d_forward.1} parent=1 // pred_region
      _
    $region25: #{gcn1d_forward.1} parent=1 // pred_fallthru
      _
    // Predicated region
    $region26: #{gcn1d_forward.1} parent=1 // pred_check
      _
    $region27: #{gcn1d_forward.1} parent=1 // pred_check_branch
      %37 = sbr.rel (0) target = $region29
    $region28: #{gcn1d_forward.1} parent=1 // pred_region
      _
    $region29: #{gcn1d_forward.1} parent=1 // pred_fallthru
      _
    // Predicated region
    $region30: #{gcn1d_forward.1} parent=1 // pred_check
      _
    $region31: #{gcn1d_forward.1} parent=1 // pred_check_branch
      %39 = sbr.rel (0) target = $region33
    $region32: #{gcn1d_forward.1} parent=1 // pred_region
      _
    $region33: #{gcn1d_forward.1} parent=1 // pred_fallthru
      _
    // Predicated region
    $region34: #{gcn1d_forward.1} parent=1 // pred_check
      _
    $region35: #{gcn1d_forward.1} parent=1 // pred_check_branch
      %41 = sbr.rel (0) target = $region37
    $region36: #{gcn1d_forward.1} parent=1 // pred_region
      _
    $region37: #{gcn1d_forward.1} parent=1 // pred_fallthru
      _
    // Predicated region
    $region38: #{gcn1d_forward.1} parent=1 // pred_check
      _
    $region39: #{gcn1d_forward.1} parent=1 // pred_check_branch
      %43 = sbr.rel (0) target = $region41
    $region40: #{gcn1d_forward.1} parent=1 // pred_region
      %44 = dma.done [#allocation4], 32
    $region41: #{gcn1d_forward.1} parent=1 // pred_fallthru
      _
    %45 = sfence
    %v46 = vld [vmem:[%s1] sm:$0x1]
    %v47 = vlaneseq
    %v48 = vand.u32 %v47, 127
    %vm49 = vcmp.lt.s32.totalorder %v48, 0
    %v50 = vsub.s32 0, %v48
    %v51 = vsel %vm49, %v50, %v48
    %v52 = vshrl.u32 %v51, 6
    %v53 = vand.u32 %v51, 63
    %v54 = vsub.s32 0, %v53
    %v55 = vsel %vm49, %v54, %v53
    %vm56 = vcmp.ne.s32.totalorder %v55, 0
    %vm57 = vcmp.lt.s32.totalorder %v55, 0
    %vm58 = vmand %vm57, %vm56
    %v59 = vadd.s32 %v55, 64
    %v60 = vsel %vm58, %v59, %v55
    %v62 = vlaneseq
    %v63 = vshrl.u32 %v62, 7
    %v64 = vsub.s32 0, %v63
    %v65 = vrot.slane %v46, %v64
    %66 = vrot.lane.b32.xlu0 %v65, 12
    %v67 = vpop.permute.xlu0 %66
    %vm69 = vcmask 97280
    %v70 = vsel %vm69, 0.0, %v67
    %vm71 = vcmp.ge.s32.totalorder %v60, 12
    %v72 = vsel %vm71, %v70, 0.0
    %vm73 = vcmp.ge.s32.totalorder %v60, 11
    %75 = vrot.lane.b32.xlu0 %v70, 127
    %v76 = vpop.permute.xlu0 %75
    %77 = vrot.lane.b32.xlu0 %v67, 127
    %v78 = vpop.permute.xlu0 %77
    %vm79 = vcmask 1039360
    %v80 = vsel %vm79, %v76, %v78
    %v82 = vsel %vm73, %v80, 0.0
    %vm83 = vcmp.ge.s32.totalorder %v60, 10
    %84 = vrot.lane.b32.xlu0 %v70, 126
    %v85 = vpop.permute.xlu0 %84
    %86 = vrot.lane.b32.xlu0 %v67, 126
    %v87 = vpop.permute.xlu0 %86
    %vm88 = vcmask 1031168
    %v89 = vsel %vm88, %v85, %v87
    %v91 = vsel %vm83, %v89, 0.0
    %vm92 = vcmp.ge.s32.totalorder %v60, 9
    %93 = vrot.lane.b32.xlu0 %v70, 125
    %v94 = vpop.permute.xlu0 %93
    %95 = vrot.lane.b32.xlu0 %v67, 125
    %v96 = vpop.permute.xlu0 %95
    %vm97 = vcmask 1022976
    %v98 = vsel %vm97, %v94, %v96
    %v100 = vsel %vm92, %v98, 0.0
    %vm101 = vcmp.ge.s32.totalorder %v60, 8
    %102 = vrot.lane.b32.xlu0 %v70, 124
    %v103 = vpop.permute.xlu0 %102
    %104 = vrot.lane.b32.xlu0 %v67, 124
    %v105 = vpop.permute.xlu0 %104
    %vm106 = vcmask 1014784
    %v107 = vsel %vm106, %v103, %v105
    %v109 = vsel %vm101, %v107, 0.0
    %vm110 = vcmp.ge.s32.totalorder %v60, 7
    %111 = vrot.lane.b32.xlu0 %v70, 123
    %v112 = vpop.permute.xlu0 %111
    %113 = vrot.lane.b32.xlu0 %v67, 123
    %v114 = vpop.permute.xlu0 %113
    %vm115 = vcmask 1006592
    %v116 = vsel %vm115, %v112, %v114
    %v118 = vsel %vm110, %v116, 0.0
    %vm119 = vcmp.ge.s32.totalorder %v60, 6
    %120 = vrot.lane.b32.xlu0 %v70, 122
    %v121 = vpop.permute.xlu0 %120
    %122 = vrot.lane.b32.xlu0 %v67, 122
    %v123 = vpop.permute.xlu0 %122
    %vm124 = vcmask 998400
    %v125 = vsel %vm124, %v121, %v123
    %v127 = vsel %vm119, %v125, 0.0
    %vm128 = vcmp.ge.s32.totalorder %v60, 5
    %129 = vrot.lane.b32.xlu0 %v70, 121
    %v130 = vpop.permute.xlu0 %129
    %131 = vrot.lane.b32.xlu0 %v67, 121
    %v132 = vpop.permute.xlu0 %131
    %vm133 = vcmask 990208
    %v134 = vsel %vm133, %v130, %v132
    %v136 = vsel %vm128, %v134, 0.0
    %vm137 = vcmp.ge.s32.totalorder %v60, 4
    %138 = vrot.lane.b32.xlu0 %v70, 120
    %v139 = vpop.permute.xlu0 %138
    %140 = vrot.lane.b32.xlu0 %v67, 120
    %v141 = vpop.permute.xlu0 %140
    %vm142 = vcmask 982016
    %v143 = vsel %vm142, %v139, %v141
    %v145 = vsel %vm137, %v143, 0.0
    %vm146 = vcmp.ge.s32.totalorder %v60, 3
    %147 = vrot.lane.b32.xlu0 %v70, 119
    %v148 = vpop.permute.xlu0 %147
    %149 = vrot.lane.b32.xlu0 %v67, 119
    %v150 = vpop.permute.xlu0 %149
    %vm151 = vcmask 973824
    %v152 = vsel %vm151, %v148, %v150
    %v154 = vsel %vm146, %v152, 0.0
    %vm155 = vcmp.ge.s32.totalorder %v60, 2
    %156 = vrot.lane.b32.xlu0 %v70, 118
    %v157 = vpop.permute.xlu0 %156
    %158 = vrot.lane.b32.xlu0 %v67, 118
    %v159 = vpop.permute.xlu0 %158
    %vm160 = vcmask 965632
    %v161 = vsel %vm160, %v157, %v159
    %v163 = vsel %vm155, %v161, 0.0
    %vm164 = vcmp.ge.s32.totalorder %v60, 1
    %165 = vrot.lane.b32.xlu0 %v70, 117
    %v166 = vpop.permute.xlu0 %165
    %167 = vrot.lane.b32.xlu0 %v67, 117
    %v168 = vpop.permute.xlu0 %167
    %vm169 = vcmask 957440
    %v170 = vsel %vm169, %v166, %v168
    %v172 = vsel %vm164, %v170, 0.0
    %v174 = vrot.slane %v82, 7
    %v177 = vrot.slane %v91, 6
    %v180 = vrot.slane %v100, 5
    %v183 = vrot.slane %v109, 4
    %v186 = vrot.slane %v118, 3
    %v189 = vrot.slane %v127, 2
    %v192 = vrot.slane %v136, 1
    %v195 = vrot.slane %v154, 7
    %v198 = vrot.slane %v163, 6
    %v201 = vrot.slane %v172, 5
    %vm204 = vcmask 1040384
    %v205 = vsel %vm204, %v72, %v174
    %vm206 = vcmask 1041408
    %v207 = vsel %vm206, %v205, %v177
    %vm208 = vcmask 1042432
    %v209 = vsel %vm208, %v207, %v180
    %vm210 = vcmask 1043456
    %v211 = vsel %vm210, %v209, %v183
    %vm212 = vcmask 1044480
    %v213 = vsel %vm212, %v211, %v186
    %vm214 = vcmask 1045504
    %v215 = vsel %vm214, %v213, %v189
    %vm216 = vcmask 1046528
    %v217 = vsel %vm216, %v215, %v192
    %v218 = vsel %vm204, %v145, %v195
    %v219 = vsel %vm206, %v218, %v198
    %v220 = vsel %vm208, %v219, %v201
    %v221 = vsel %vm210, %v220, %v65
    %v222 = vld [vmem:[%s4] sm:$0xff]
    %v223 = vld [vmem:[%s4 + $0x8] sm:$0xff]
    %v224 = vld [vmem:[%s4 + $0x10] sm:$0xff]
    %v225 = vld [vmem:[%s4 + $0x18] sm:$0xff]
    %v226 = vld [vmem:[%s4 + $0x20] sm:$0xff]
    %v227 = vld [vmem:[%s4 + $0x28] sm:$0xff]
    %v228 = vld [vmem:[%s4 + $0x30] sm:$0xff]
    %v229 = vld [vmem:[%s4 + $0x38] sm:$0xff]
    %v230 = vld [vmem:[%s4 + $0x40] sm:$0xff]
    %v231 = vld [vmem:[%s4 + $0x48] sm:$0xff]
    %v232 = vld [vmem:[%s4 + $0x50] sm:$0xff]
    %v233 = vld [vmem:[%s4 + $0x58] sm:$0xff]
    %vm234 = vcmask 105472
    %v236 = vsel %vm234, %v222, 0
    %v239 = vsel %vm234, %v223, 0
    %v242 = vsel %vm234, %v224, 0
    %v245 = vsel %vm234, %v225, 0
    %v248 = vsel %vm234, %v226, 0
    %v251 = vsel %vm234, %v227, 0
    %v254 = vsel %vm234, %v228, 0
    %v257 = vsel %vm234, %v229, 0
    %v260 = vsel %vm234, %v230, 0
    %v263 = vsel %vm234, %v231, 0
    %v266 = vsel %vm234, %v232, 0
    %v269 = vsel %vm234, %v233, 0
    %v272 = vsel %vm212, %v221, 0
    %274 = vmatprep.subr.mxu0 0.0
    %275 = vmatpush1.msra.mxu0 0.0
    %276 = vmatprep.subr.mxu0 0.0
    %277 = vmatpush1.msra.mxu0 0.0
    %278 = vmatprep.subr.mxu0 0.0
    %279 = vmatpush1.msra.mxu0 0.0
    %280 = vmatprep.subr.mxu0 0.0
    %281 = vmatpush1.msra.mxu0 0.0
    %282 = vmatprep.subr.mxu0 0.0
    %283 = vmatpush1.msra.mxu0 0.0
    %284 = vmatprep.subr.mxu0 0.0
    %285 = vmatpush1.msra.mxu0 0.0
    %286 = vmatprep.subr.mxu0 0.0
    %287 = vmatpush1.msra.mxu0 0.0
    %288 = vmatprep.subr.mxu0 0.0
    %289 = vmatpush1.msra.mxu0 0.0
    %290 = vmatprep.subr.mxu0 0.0
    %291 = vmatpush1.msra.mxu0 0.0
    %292 = vmatprep.subr.mxu0 0.0
    %293 = vmatpush1.msra.mxu0 0.0
    %294 = vmatprep.subr.mxu0 0.0
    %295 = vmatpush1.msra.mxu0 0.0
    %296 = vmatprep.subr.mxu0 0.0
    %297 = vmatpush1.msra.mxu0 0.0
    %298 = vmatprep.subr.mxu0 0.0
    %299 = vmatpush1.msra.mxu0 0.0
    %300 = vmatprep.subr.mxu0 0.0
    %301 = vmatpush1.msra.mxu0 0.0
    %302 = vmatprep.subr.mxu0 0.0
    %303 = vmatpush1.msra.mxu0 %v272
    %304 = vmatprep.subr.mxu0 0.0
    %305 = vmatpush1.msra.mxu0 %v217
    %306 = vmatprep.subr.mxu0 0.0
    %307 = vmatpush2.msra.mxu0 0.0
    %308 = vmatprep.subr.mxu0 0.0
    %309 = vmatpush2.msra.mxu0 0.0
    %310 = vmatprep.subr.mxu0 0.0
    %311 = vmatpush2.msra.mxu0 0.0
    %312 = vmatprep.subr.mxu0 0.0
    %313 = vmatpush2.msra.mxu0 0.0
    %314 = vmatprep.subr.mxu0 0.0
    %315 = vmatpush2.msra.mxu0 0.0
    %316 = vmatprep.subr.mxu0 0.0
    %317 = vmatpush2.msra.mxu0 0.0
    %318 = vmatprep.subr.mxu0 0.0
    %319 = vmatpush2.msra.mxu0 0.0
    %320 = vmatprep.subr.mxu0 0.0
    %321 = vmatpush2.msra.mxu0 0.0
    %322 = vmatprep.subr.mxu0 0.0
    %323 = vmatpush2.msra.mxu0 0.0
    %324 = vmatprep.subr.mxu0 0.0
    %325 = vmatpush2.msra.mxu0 0.0
    %326 = vmatprep.subr.mxu0 0.0
    %327 = vmatpush2.msra.mxu0 0.0
    %328 = vmatprep.subr.mxu0 0.0
    %329 = vmatpush2.msra.mxu0 0.0
    %330 = vmatprep.subr.mxu0 0.0
    %331 = vmatpush2.msra.mxu0 0.0
    %332 = vmatprep.subr.mxu0 0.0
    %333 = vmatpush2.msra.mxu0 0.0
    %334 = vmatprep.subr.mxu0 0.0
    %335 = vmatpush2.msra.mxu0 0.0
    %336 = vmatprep.subr.mxu0 0.0
    %337 = vmatpush2.msra.mxu0 0.0
    %338 = vmatprep.mubr.f32.mxu0 0.0
    %339 = vmatmul.mubr.f32.gmra.mxu0 %v236
    %v340 = vpop.f32.mrf.mxu0
    %v341 = vadd.f32 0.0, %v340
    %v342 = vpop.f32.mrf.mxu0
    %343 = vmatprep.mubr.f32.mxu0 0.0
    %344 = vmatmul.mubr.f32.gmra.mxu0 %v239
    %v345 = vpop.f32.mrf.mxu0
    %v346 = vadd.f32 0.0, %v345
    %v347 = vpop.f32.mrf.mxu0
    %348 = vmatprep.mubr.f32.mxu0 0.0
    %349 = vmatmul.mubr.f32.gmra.mxu0 %v242
    %v350 = vpop.f32.mrf.mxu0
    %v351 = vadd.f32 0.0, %v350
    %v352 = vpop.f32.mrf.mxu0
    %353 = vmatprep.mubr.f32.mxu0 0.0
    %354 = vmatmul.mubr.f32.gmra.mxu0 %v245
    %v355 = vpop.f32.mrf.mxu0
    %v356 = vadd.f32 0.0, %v355
    %v357 = vpop.f32.mrf.mxu0
    %358 = vmatprep.mubr.f32.mxu0 0.0
    %359 = vmatmul.mubr.f32.gmra.mxu0 %v248
    %v360 = vpop.f32.mrf.mxu0
    %v361 = vadd.f32 0.0, %v360
    %v362 = vpop.f32.mrf.mxu0
    %363 = vmatprep.mubr.f32.mxu0 0.0
    %364 = vmatmul.mubr.f32.gmra.mxu0 %v251
    %v365 = vpop.f32.mrf.mxu0
    %v366 = vadd.f32 0.0, %v365
    %v367 = vpop.f32.mrf.mxu0
    %368 = vmatprep.mubr.f32.mxu0 0.0
    %369 = vmatmul.mubr.f32.gmra.mxu0 %v254
    %v370 = vpop.f32.mrf.mxu0
    %v371 = vadd.f32 0.0, %v370
    %v372 = vpop.f32.mrf.mxu0
    %373 = vmatprep.mubr.f32.mxu0 0.0
    %374 = vmatmul.mubr.f32.gmra.mxu0 %v257
    %v375 = vpop.f32.mrf.mxu0
    %v376 = vadd.f32 0.0, %v375
    %v377 = vpop.f32.mrf.mxu0
    %378 = vmatprep.mubr.f32.mxu0 0.0
    %379 = vmatmul.mubr.f32.gmra.mxu0 %v260
    %v380 = vpop.f32.mrf.mxu0
    %v381 = vadd.f32 0.0, %v380
    %v382 = vpop.f32.mrf.mxu0
    %383 = vmatprep.mubr.f32.mxu0 0.0
    %384 = vmatmul.mubr.f32.gmra.mxu0 %v263
    %v385 = vpop.f32.mrf.mxu0
    %v386 = vadd.f32 0.0, %v385
    %v387 = vpop.f32.mrf.mxu0
    %388 = vmatprep.mubr.f32.mxu0 0.0
    %389 = vmatmul.mubr.f32.gmra.mxu0 %v266
    %v390 = vpop.f32.mrf.mxu0
    %v391 = vadd.f32 0.0, %v390
    %v392 = vpop.f32.mrf.mxu0
    %393 = vmatprep.mubr.f32.mxu0 0.0
    %394 = vmatmul.mubr.f32.gmra.mxu0 %v269
    %v395 = vpop.f32.mrf.mxu0
    %v396 = vadd.f32 0.0, %v395
    %v397 = vpop.f32.mrf.mxu0
    %398 = vdwg.mxu0
    %399 = vadd.xlane.f32.xlu0 %v341
    %v400 = vpop.xlane.xlu0 %399
    %401 = vadd.xlane.f32.xlu0 %v346
    %v402 = vpop.xlane.xlu0 %401
    %403 = vadd.xlane.f32.xlu0 %v351
    %v404 = vpop.xlane.xlu0 %403
    %405 = vadd.xlane.f32.xlu0 %v356
    %v406 = vpop.xlane.xlu0 %405
    %407 = vadd.xlane.f32.xlu0 %v361
    %v408 = vpop.xlane.xlu0 %407
    %409 = vadd.xlane.f32.xlu0 %v366
    %v410 = vpop.xlane.xlu0 %409
    %411 = vadd.xlane.f32.xlu0 %v371
    %v412 = vpop.xlane.xlu0 %411
    %413 = vadd.xlane.f32.xlu0 %v376
    %v414 = vpop.xlane.xlu0 %413
    %v415 = vmul.f32 %v341, %v341
    %v416 = vmul.f32 %v346, %v346
    %v417 = vmul.f32 %v351, %v351
    %v418 = vmul.f32 %v356, %v356
    %v419 = vmul.f32 %v361, %v361
    %v420 = vmul.f32 %v366, %v366
    %v421 = vmul.f32 %v371, %v371
    %v422 = vmul.f32 %v376, %v376
    %423 = vadd.xlane.f32.xlu0 %v415
    %v424 = vpop.xlane.xlu0 %423
    %425 = vadd.xlane.f32.xlu0 %v416
    %v426 = vpop.xlane.xlu0 %425
    %427 = vadd.xlane.f32.xlu0 %v417
    %v428 = vpop.xlane.xlu0 %427
    %429 = vadd.xlane.f32.xlu0 %v418
    %v430 = vpop.xlane.xlu0 %429
    %431 = vadd.xlane.f32.xlu0 %v419
    %v432 = vpop.xlane.xlu0 %431
    %433 = vadd.xlane.f32.xlu0 %v420
    %v434 = vpop.xlane.xlu0 %433
    %435 = vadd.xlane.f32.xlu0 %v421
    %v436 = vpop.xlane.xlu0 %435
    %437 = vadd.xlane.f32.xlu0 %v422
    %v438 = vpop.xlane.xlu0 %437
    %v439 = vmul.f32 %v400, 0.0078125
    %v440 = vmul.f32 %v402, 0.0078125
    %v441 = vmul.f32 %v404, 0.0078125
    %v442 = vmul.f32 %v406, 0.0078125
    %v443 = vmul.f32 %v408, 0.0078125
    %v444 = vmul.f32 %v410, 0.0078125
    %v445 = vmul.f32 %v412, 0.0078125
    %v446 = vmul.f32 %v414, 0.0078125
    %v447 = vmul.f32 %v424, 0.0078125
    %v448 = vmul.f32 %v426, 0.0078125
    %v449 = vmul.f32 %v428, 0.0078125
    %v450 = vmul.f32 %v430, 0.0078125
    %v451 = vmul.f32 %v432, 0.0078125
    %v452 = vmul.f32 %v434, 0.0078125
    %v453 = vmul.f32 %v436, 0.0078125
    %v454 = vmul.f32 %v438, 0.0078125
    %v455 = vmul.f32 %v439, %v439
    %v456 = vmul.f32 %v440, %v440
    %v457 = vmul.f32 %v441, %v441
    %v458 = vmul.f32 %v442, %v442
    %v459 = vmul.f32 %v443, %v443
    %v460 = vmul.f32 %v444, %v444
    %v461 = vmul.f32 %v445, %v445
    %v462 = vmul.f32 %v446, %v446
    %v463 = vsub.f32 %v447, %v455
    %v464 = vsub.f32 %v448, %v456
    %v465 = vsub.f32 %v449, %v457
    %v466 = vsub.f32 %v450, %v458
    %v467 = vsub.f32 %v451, %v459
    %v468 = vsub.f32 %v452, %v460
    %v469 = vsub.f32 %v453, %v461
    %v470 = vsub.f32 %v454, %v462
    %v471 = vsub.f32 %v341, %v439
    %v472 = vsub.f32 %v346, %v440
    %v473 = vsub.f32 %v351, %v441
    %v474 = vsub.f32 %v356, %v442
    %v475 = vsub.f32 %v361, %v443
    %v476 = vsub.f32 %v366, %v444
    %v477 = vsub.f32 %v371, %v445
    %v478 = vsub.f32 %v376, %v446
    %v479 = vadd.f32 %v463, 1e-05
    %v480 = vadd.f32 %v464, 1e-05
    %v481 = vadd.f32 %v465, 1e-05
    %v482 = vadd.f32 %v466, 1e-05
    %v483 = vadd.f32 %v467, 1e-05
    %v484 = vadd.f32 %v468, 1e-05
    %v485 = vadd.f32 %v469, 1e-05
    %v486 = vadd.f32 %v470, 1e-05
    %v487 = vrsqrt.pop %v479
    %v488 = vrsqrt.pop %v480
    %v489 = vrsqrt.pop %v481
    %v490 = vrsqrt.pop %v482
    %v491 = vrsqrt.pop %v483
    %v492 = vrsqrt.pop %v484
    %v493 = vrsqrt.pop %v485
    %v494 = vrsqrt.pop %v486
    %v495 = vmul.f32 %v471, %v487
    %v496 = vmul.f32 %v472, %v488
    %v497 = vmul.f32 %v473, %v489
    %v498 = vmul.f32 %v474, %v490
    %v499 = vmul.f32 %v475, %v491
    %v500 = vmul.f32 %v476, %v492
    %v501 = vmul.f32 %v477, %v493
    %v502 = vmul.f32 %v478, %v494
    %v503 = vld [vmem:[%s2] sm:$0xff]
    %v504 = vld [vmem:[%s2 + $0x8] sm:$0xff]
    %v505 = vld [vmem:[%s2 + $0x10] sm:$0xff]
    %v506 = vld [vmem:[%s2 + $0x18] sm:$0xff]
    %v507 = vld [vmem:[%s2 + $0x20] sm:$0xff]
    %v508 = vld [vmem:[%s2 + $0x28] sm:$0xff]
    %v509 = vld [vmem:[%s2 + $0x30] sm:$0xff]
    %v510 = vld [vmem:[%s2 + $0x38] sm:$0xff]
    %v511 = vld [vmem:[%s2 + $0x40] sm:$0xff]
    %v512 = vld [vmem:[%s2 + $0x48] sm:$0xff]
    %v513 = vld [vmem:[%s2 + $0x50] sm:$0xff]
    %v514 = vld [vmem:[%s2 + $0x58] sm:$0xff]
    %v515 = vld [vmem:[%s2 + $0x60] sm:$0xff]
    %v516 = vld [vmem:[%s2 + $0x68] sm:$0xff]
    %v517 = vld [vmem:[%s2 + $0x70] sm:$0xff]
    %v518 = vld [vmem:[%s2 + $0x78] sm:$0xff]
    %v519 = vld [vmem:[%s3] sm:$0xff]
    %v520 = vld [vmem:[%s3 + $0x8] sm:$0xff]
    %v521 = vld [vmem:[%s3 + $0x10] sm:$0xff]
    %v522 = vld [vmem:[%s3 + $0x18] sm:$0xff]
    %v523 = vld [vmem:[%s3 + $0x20] sm:$0xff]
    %v524 = vld [vmem:[%s3 + $0x28] sm:$0xff]
    %v525 = vld [vmem:[%s3 + $0x30] sm:$0xff]
    %v526 = vld [vmem:[%s3 + $0x38] sm:$0xff]
    %v527 = vld [vmem:[%s3 + $0x40] sm:$0xff]
    %v528 = vld [vmem:[%s3 + $0x48] sm:$0xff]
    %v529 = vld [vmem:[%s3 + $0x50] sm:$0xff]
    %v530 = vld [vmem:[%s3 + $0x58] sm:$0xff]
    %v531 = vld [vmem:[%s3 + $0x60] sm:$0xff]
    %v532 = vld [vmem:[%s3 + $0x68] sm:$0xff]
    %v533 = vld [vmem:[%s3 + $0x70] sm:$0xff]
    %v534 = vld [vmem:[%s3 + $0x78] sm:$0xff]
    %s535 = sld [smem:[#allocation2]]
    %v536 = vstv %s535
    %v537 = vmul.f32 %v503, %v536
    %v538 = vmul.f32 %v504, %v536
    %v539 = vmul.f32 %v505, %v536
    %v540 = vmul.f32 %v506, %v536
    %v541 = vmul.f32 %v507, %v536
    %v542 = vmul.f32 %v508, %v536
    %v543 = vmul.f32 %v509, %v536
    %v544 = vmul.f32 %v510, %v536
    %v545 = vmul.f32 %v511, %v536
    %v546 = vmul.f32 %v512, %v536
    %v547 = vmul.f32 %v513, %v536
    %v548 = vmul.f32 %v514, %v536
    %v549 = vmul.f32 %v515, %v536
    %v550 = vmul.f32 %v516, %v536
    %v551 = vmul.f32 %v517, %v536
    %v552 = vmul.f32 %v518, %v536
    %v553 = vadd.f32 %v519, %v537
    %v554 = vadd.f32 %v520, %v538
    %v555 = vadd.f32 %v521, %v539
    %v556 = vadd.f32 %v522, %v540
    %v557 = vadd.f32 %v523, %v541
    %v558 = vadd.f32 %v524, %v542
    %v559 = vadd.f32 %v525, %v543
    %v560 = vadd.f32 %v526, %v544
    %v561 = vadd.f32 %v527, %v545
    %v562 = vadd.f32 %v528, %v546
    %v563 = vadd.f32 %v529, %v547
    %v564 = vadd.f32 %v530, %v548
    %v565 = vadd.f32 %v531, %v549
    %v566 = vadd.f32 %v532, %v550
    %v567 = vadd.f32 %v533, %v551
    %v568 = vadd.f32 %v534, %v552
    %s569 = sld [smem:[#allocation2 + $0x1]]
    %v570 = vstv %s569
    %v571 = vmul.f32 %v503, %v570
    %v572 = vmul.f32 %v504, %v570
    %v573 = vmul.f32 %v505, %v570
    %v574 = vmul.f32 %v506, %v570
    %v575 = vmul.f32 %v507, %v570
    %v576 = vmul.f32 %v508, %v570
    %v577 = vmul.f32 %v509, %v570
    %v578 = vmul.f32 %v510, %v570
    %v579 = vmul.f32 %v511, %v570
    %v580 = vmul.f32 %v512, %v570
    %v581 = vmul.f32 %v513, %v570
    %v582 = vmul.f32 %v514, %v570
    %v583 = vmul.f32 %v515, %v570
    %v584 = vmul.f32 %v516, %v570
    %v585 = vmul.f32 %v517, %v570
    %v586 = vmul.f32 %v518, %v570
    %603 = vrot.lane.b32.xlu0 %v571, 127
    %v604 = vpop.permute.xlu0 %603
    %605 = vrot.lane.b32.xlu0 %v572, 127
    %v606 = vpop.permute.xlu0 %605
    %607 = vrot.lane.b32.xlu0 %v573, 127
    %v608 = vpop.permute.xlu0 %607
    %609 = vrot.lane.b32.xlu0 %v574, 127
    %v610 = vpop.permute.xlu0 %609
    %611 = vrot.lane.b32.xlu0 %v575, 127
    %v612 = vpop.permute.xlu0 %611
    %613 = vrot.lane.b32.xlu0 %v576, 127
    %v614 = vpop.permute.xlu0 %613
    %615 = vrot.lane.b32.xlu0 %v577, 127
    %v616 = vpop.permute.xlu0 %615
    %617 = vrot.lane.b32.xlu0 %v578, 127
    %v618 = vpop.permute.xlu0 %617
    %619 = vrot.lane.b32.xlu0 %v579, 127
    %v620 = vpop.permute.xlu0 %619
    %621 = vrot.lane.b32.xlu0 %v580, 127
    %v622 = vpop.permute.xlu0 %621
    %623 = vrot.lane.b32.xlu0 %v581, 127
    %v624 = vpop.permute.xlu0 %623
    %625 = vrot.lane.b32.xlu0 %v582, 127
    %v626 = vpop.permute.xlu0 %625
    %627 = vrot.lane.b32.xlu0 %v583, 127
    %v628 = vpop.permute.xlu0 %627
    %629 = vrot.lane.b32.xlu0 %v584, 127
    %v630 = vpop.permute.xlu0 %629
    %631 = vrot.lane.b32.xlu0 %v585, 127
    %v632 = vpop.permute.xlu0 %631
    %633 = vrot.lane.b32.xlu0 %v586, 127
    %v634 = vpop.permute.xlu0 %633
    %v651 = vadd.f32 %v553, %v604
    %v652 = vadd.f32 %v554, %v606
    %v653 = vadd.f32 %v555, %v608
    %v654 = vadd.f32 %v556, %v610
    %v655 = vadd.f32 %v557, %v612
    %v656 = vadd.f32 %v558, %v614
    %v657 = vadd.f32 %v559, %v616
    %v658 = vadd.f32 %v560, %v618
    %v659 = vadd.f32 %v561, %v620
    %v660 = vadd.f32 %v562, %v622
    %v661 = vadd.f32 %v563, %v624
    %v662 = vadd.f32 %v564, %v626
    %v663 = vadd.f32 %v565, %v628
    %v664 = vadd.f32 %v566, %v630
    %v665 = vadd.f32 %v567, %v632
    %v666 = vadd.f32 %v568, %v634
    %s667 = sld [smem:[#allocation2 + $0x2]]
    %v668 = vstv %s667
    %v669 = vmul.f32 %v503, %v668
    %v670 = vmul.f32 %v504, %v668
    %v671 = vmul.f32 %v505, %v668
    %v672 = vmul.f32 %v506, %v668
    %v673 = vmul.f32 %v507, %v668
    %v674 = vmul.f32 %v508, %v668
    %v675 = vmul.f32 %v509, %v668
    %v676 = vmul.f32 %v510, %v668
    %v677 = vmul.f32 %v511, %v668
    %v678 = vmul.f32 %v512, %v668
    %v679 = vmul.f32 %v513, %v668
    %v680 = vmul.f32 %v514, %v668
    %v681 = vmul.f32 %v515, %v668
    %v682 = vmul.f32 %v516, %v668
    %v683 = vmul.f32 %v517, %v668
    %v684 = vmul.f32 %v518, %v668
    %701 = vrot.lane.b32.xlu0 %v669, 126
    %v702 = vpop.permute.xlu0 %701
    %703 = vrot.lane.b32.xlu0 %v670, 126
    %v704 = vpop.permute.xlu0 %703
    %705 = vrot.lane.b32.xlu0 %v671, 126
    %v706 = vpop.permute.xlu0 %705
    %707 = vrot.lane.b32.xlu0 %v672, 126
    %v708 = vpop.permute.xlu0 %707
    %709 = vrot.lane.b32.xlu0 %v673, 126
    %v710 = vpop.permute.xlu0 %709
    %711 = vrot.lane.b32.xlu0 %v674, 126
    %v712 = vpop.permute.xlu0 %711
    %713 = vrot.lane.b32.xlu0 %v675, 126
    %v714 = vpop.permute.xlu0 %713
    %715 = vrot.lane.b32.xlu0 %v676, 126
    %v716 = vpop.permute.xlu0 %715
    %717 = vrot.lane.b32.xlu0 %v677, 126
    %v718 = vpop.permute.xlu0 %717
    %719 = vrot.lane.b32.xlu0 %v678, 126
    %v720 = vpop.permute.xlu0 %719
    %721 = vrot.lane.b32.xlu0 %v679, 126
    %v722 = vpop.permute.xlu0 %721
    %723 = vrot.lane.b32.xlu0 %v680, 126
    %v724 = vpop.permute.xlu0 %723
    %725 = vrot.lane.b32.xlu0 %v681, 126
    %v726 = vpop.permute.xlu0 %725
    %727 = vrot.lane.b32.xlu0 %v682, 126
    %v728 = vpop.permute.xlu0 %727
    %729 = vrot.lane.b32.xlu0 %v683, 126
    %v730 = vpop.permute.xlu0 %729
    %731 = vrot.lane.b32.xlu0 %v684, 126
    %v732 = vpop.permute.xlu0 %731
    %v749 = vadd.f32 %v651, %v702
    %v750 = vadd.f32 %v652, %v704
    %v751 = vadd.f32 %v653, %v706
    %v752 = vadd.f32 %v654, %v708
    %v753 = vadd.f32 %v655, %v710
    %v754 = vadd.f32 %v656, %v712
    %v755 = vadd.f32 %v657, %v714
    %v756 = vadd.f32 %v658, %v716
    %v757 = vadd.f32 %v659, %v718
    %v758 = vadd.f32 %v660, %v720
    %v759 = vadd.f32 %v661, %v722
    %v760 = vadd.f32 %v662, %v724
    %v761 = vadd.f32 %v663, %v726
    %v762 = vadd.f32 %v664, %v728
    %v763 = vadd.f32 %v665, %v730
    %v764 = vadd.f32 %v666, %v732
    %766 = vset.pattern.permute.xlu0 0
    %767 = vperm.xlu0 %766, %v749
    %v768 = vpop.permute.xlu0 %767
    %771 = vset.pattern.permute.xlu0 0
    %772 = vperm.xlu0 %771, %v750
    %v773 = vpop.permute.xlu0 %772
    %776 = vset.pattern.permute.xlu0 0
    %777 = vperm.xlu0 %776, %v751
    %v778 = vpop.permute.xlu0 %777
    %781 = vset.pattern.permute.xlu0 0
    %782 = vperm.xlu0 %781, %v752
    %v783 = vpop.permute.xlu0 %782
    %786 = vset.pattern.permute.xlu0 0
    %787 = vperm.xlu0 %786, %v753
    %v788 = vpop.permute.xlu0 %787
    %791 = vset.pattern.permute.xlu0 0
    %792 = vperm.xlu0 %791, %v754
    %v793 = vpop.permute.xlu0 %792
    %796 = vset.pattern.permute.xlu0 0
    %797 = vperm.xlu0 %796, %v755
    %v798 = vpop.permute.xlu0 %797
    %801 = vset.pattern.permute.xlu0 0
    %802 = vperm.xlu0 %801, %v756
    %v803 = vpop.permute.xlu0 %802
    %806 = vset.pattern.permute.xlu0 0
    %807 = vperm.xlu0 %806, %v757
    %v808 = vpop.permute.xlu0 %807
    %811 = vset.pattern.permute.xlu0 0
    %812 = vperm.xlu0 %811, %v758
    %v813 = vpop.permute.xlu0 %812
    %816 = vset.pattern.permute.xlu0 0
    %817 = vperm.xlu0 %816, %v759
    %v818 = vpop.permute.xlu0 %817
    %821 = vset.pattern.permute.xlu0 0
    %822 = vperm.xlu0 %821, %v760
    %v823 = vpop.permute.xlu0 %822
    %826 = vset.pattern.permute.xlu0 0
    %827 = vperm.xlu0 %826, %v761
    %v828 = vpop.permute.xlu0 %827
    %831 = vset.pattern.permute.xlu0 0
    %832 = vperm.xlu0 %831, %v762
    %v833 = vpop.permute.xlu0 %832
    %836 = vset.pattern.permute.xlu0 0
    %837 = vperm.xlu0 %836, %v763
    %v838 = vpop.permute.xlu0 %837
    %841 = vset.pattern.permute.xlu0 0
    %842 = vperm.xlu0 %841, %v764
    %v843 = vpop.permute.xlu0 %842
    %s845 = sld [smem:[#allocation2 + $0x80]]
    %v846 = vstv %s845
    %v847 = vmul.f32 %v503, %v846
    %v848 = vmul.f32 %v504, %v846
    %v849 = vmul.f32 %v505, %v846
    %v850 = vmul.f32 %v506, %v846
    %v851 = vmul.f32 %v507, %v846
    %v852 = vmul.f32 %v508, %v846
    %v853 = vmul.f32 %v509, %v846
    %v854 = vmul.f32 %v510, %v846
    %v855 = vmul.f32 %v511, %v846
    %v856 = vmul.f32 %v512, %v846
    %v857 = vmul.f32 %v513, %v846
    %v858 = vmul.f32 %v514, %v846
    %v859 = vmul.f32 %v515, %v846
    %v860 = vmul.f32 %v516, %v846
    %v861 = vmul.f32 %v517, %v846
    %v862 = vmul.f32 %v518, %v846
    %v863 = vadd.f32 %v519, %v847
    %v864 = vadd.f32 %v520, %v848
    %v865 = vadd.f32 %v521, %v849
    %v866 = vadd.f32 %v522, %v850
    %v867 = vadd.f32 %v523, %v851
    %v868 = vadd.f32 %v524, %v852
    %v869 = vadd.f32 %v525, %v853
    %v870 = vadd.f32 %v526, %v854
    %v871 = vadd.f32 %v527, %v855
    %v872 = vadd.f32 %v528, %v856
    %v873 = vadd.f32 %v529, %v857
    %v874 = vadd.f32 %v530, %v858
    %v875 = vadd.f32 %v531, %v859
    %v876 = vadd.f32 %v532, %v860
    %v877 = vadd.f32 %v533, %v861
    %v878 = vadd.f32 %v534, %v862
    %s879 = sld [smem:[#allocation2 + $0x81]]
    %v880 = vstv %s879
    %v881 = vmul.f32 %v503, %v880
    %v882 = vmul.f32 %v504, %v880
    %v883 = vmul.f32 %v505, %v880
    %v884 = vmul.f32 %v506, %v880
    %v885 = vmul.f32 %v507, %v880
    %v886 = vmul.f32 %v508, %v880
    %v887 = vmul.f32 %v509, %v880
    %v888 = vmul.f32 %v510, %v880
    %v889 = vmul.f32 %v511, %v880
    %v890 = vmul.f32 %v512, %v880
    %v891 = vmul.f32 %v513, %v880
    %v892 = vmul.f32 %v514, %v880
    %v893 = vmul.f32 %v515, %v880
    %v894 = vmul.f32 %v516, %v880
    %v895 = vmul.f32 %v517, %v880
    %v896 = vmul.f32 %v518, %v880
    %913 = vrot.lane.b32.xlu0 %v881, 127
    %v914 = vpop.permute.xlu0 %913
    %915 = vrot.lane.b32.xlu0 %v882, 127
    %v916 = vpop.permute.xlu0 %915
    %917 = vrot.lane.b32.xlu0 %v883, 127
    %v918 = vpop.permute.xlu0 %917
    %919 = vrot.lane.b32.xlu0 %v884, 127
    %v920 = vpop.permute.xlu0 %919
    %921 = vrot.lane.b32.xlu0 %v885, 127
    %v922 = vpop.permute.xlu0 %921
    %923 = vrot.lane.b32.xlu0 %v886, 127
    %v924 = vpop.permute.xlu0 %923
    %925 = vrot.lane.b32.xlu0 %v887, 127
    %v926 = vpop.permute.xlu0 %925
    %927 = vrot.lane.b32.xlu0 %v888, 127
    %v928 = vpop.permute.xlu0 %927
    %929 = vrot.lane.b32.xlu0 %v889, 127
    %v930 = vpop.permute.xlu0 %929
    %931 = vrot.lane.b32.xlu0 %v890, 127
    %v932 = vpop.permute.xlu0 %931
    %933 = vrot.lane.b32.xlu0 %v891, 127
    %v934 = vpop.permute.xlu0 %933
    %935 = vrot.lane.b32.xlu0 %v892, 127
    %v936 = vpop.permute.xlu0 %935
    %937 = vrot.lane.b32.xlu0 %v893, 127
    %v938 = vpop.permute.xlu0 %937
    %939 = vrot.lane.b32.xlu0 %v894, 127
    %v940 = vpop.permute.xlu0 %939
    %941 = vrot.lane.b32.xlu0 %v895, 127
    %v942 = vpop.permute.xlu0 %941
    %943 = vrot.lane.b32.xlu0 %v896, 127
    %v944 = vpop.permute.xlu0 %943
    %v961 = vadd.f32 %v863, %v914
    %v962 = vadd.f32 %v864, %v916
    %v963 = vadd.f32 %v865, %v918
    %v964 = vadd.f32 %v866, %v920
    %v965 = vadd.f32 %v867, %v922
    %v966 = vadd.f32 %v868, %v924
    %v967 = vadd.f32 %v869, %v926
    %v968 = vadd.f32 %v870, %v928
    %v969 = vadd.f32 %v871, %v930
    %v970 = vadd.f32 %v872, %v932
    %v971 = vadd.f32 %v873, %v934
    %v972 = vadd.f32 %v874, %v936
    %v973 = vadd.f32 %v875, %v938
    %v974 = vadd.f32 %v876, %v940
    %v975 = vadd.f32 %v877, %v942
    %v976 = vadd.f32 %v878, %v944
    %s977 = sld [smem:[#allocation2 + $0x82]]
    %v978 = vstv %s977
    %v979 = vmul.f32 %v503, %v978
    %v980 = vmul.f32 %v504, %v978
    %v981 = vmul.f32 %v505, %v978
    %v982 = vmul.f32 %v506, %v978
    %v983 = vmul.f32 %v507, %v978
    %v984 = vmul.f32 %v508, %v978
    %v985 = vmul.f32 %v509, %v978
    %v986 = vmul.f32 %v510, %v978
    %v987 = vmul.f32 %v511, %v978
    %v988 = vmul.f32 %v512, %v978
    %v989 = vmul.f32 %v513, %v978
    %v990 = vmul.f32 %v514, %v978
    %v991 = vmul.f32 %v515, %v978
    %v992 = vmul.f32 %v516, %v978
    %v993 = vmul.f32 %v517, %v978
    %v994 = vmul.f32 %v518, %v978
    %1011 = vrot.lane.b32.xlu0 %v979, 126
    %v1012 = vpop.permute.xlu0 %1011
    %1013 = vrot.lane.b32.xlu0 %v980, 126
    %v1014 = vpop.permute.xlu0 %1013
    %1015 = vrot.lane.b32.xlu0 %v981, 126
    %v1016 = vpop.permute.xlu0 %1015
    %1017 = vrot.lane.b32.xlu0 %v982, 126
    %v1018 = vpop.permute.xlu0 %1017
    %1019 = vrot.lane.b32.xlu0 %v983, 126
    %v1020 = vpop.permute.xlu0 %1019
    %1021 = vrot.lane.b32.xlu0 %v984, 126
    %v1022 = vpop.permute.xlu0 %1021
    %1023 = vrot.lane.b32.xlu0 %v985, 126
    %v1024 = vpop.permute.xlu0 %1023
    %1025 = vrot.lane.b32.xlu0 %v986, 126
    %v1026 = vpop.permute.xlu0 %1025
    %1027 = vrot.lane.b32.xlu0 %v987, 126
    %v1028 = vpop.permute.xlu0 %1027
    %1029 = vrot.lane.b32.xlu0 %v988, 126
    %v1030 = vpop.permute.xlu0 %1029
    %1031 = vrot.lane.b32.xlu0 %v989, 126
    %v1032 = vpop.permute.xlu0 %1031
    %1033 = vrot.lane.b32.xlu0 %v990, 126
    %v1034 = vpop.permute.xlu0 %1033
    %1035 = vrot.lane.b32.xlu0 %v991, 126
    %v1036 = vpop.permute.xlu0 %1035
    %1037 = vrot.lane.b32.xlu0 %v992, 126
    %v1038 = vpop.permute.xlu0 %1037
    %1039 = vrot.lane.b32.xlu0 %v993, 126
    %v1040 = vpop.permute.xlu0 %1039
    %1041 = vrot.lane.b32.xlu0 %v994, 126
    %v1042 = vpop.permute.xlu0 %1041
    %v1059 = vadd.f32 %v961, %v1012
    %v1060 = vadd.f32 %v962, %v1014
    %v1061 = vadd.f32 %v963, %v1016
    %v1062 = vadd.f32 %v964, %v1018
    %v1063 = vadd.f32 %v965, %v1020
    %v1064 = vadd.f32 %v966, %v1022
    %v1065 = vadd.f32 %v967, %v1024
    %v1066 = vadd.f32 %v968, %v1026
    %v1067 = vadd.f32 %v969, %v1028
    %v1068 = vadd.f32 %v970, %v1030
    %v1069 = vadd.f32 %v971, %v1032
    %v1070 = vadd.f32 %v972, %v1034
    %v1071 = vadd.f32 %v973, %v1036
    %v1072 = vadd.f32 %v974, %v1038
    %v1073 = vadd.f32 %v975, %v1040
    %v1074 = vadd.f32 %v976, %v1042
    %1076 = vset.pattern.permute.xlu0 0
    %1077 = vperm.xlu0 %1076, %v1059
    %v1078 = vpop.permute.xlu0 %1077
    %1081 = vset.pattern.permute.xlu0 0
    %1082 = vperm.xlu0 %1081, %v1060
    %v1083 = vpop.permute.xlu0 %1082
    %1086 = vset.pattern.permute.xlu0 0
    %1087 = vperm.xlu0 %1086, %v1061
    %v1088 = vpop.permute.xlu0 %1087
    %1091 = vset.pattern.permute.xlu0 0
    %1092 = vperm.xlu0 %1091, %v1062
    %v1093 = vpop.permute.xlu0 %1092
    %1096 = vset.pattern.permute.xlu0 0
    %1097 = vperm.xlu0 %1096, %v1063
    %v1098 = vpop.permute.xlu0 %1097
    %1101 = vset.pattern.permute.xlu0 0
    %1102 = vperm.xlu0 %1101, %v1064
    %v1103 = vpop.permute.xlu0 %1102
    %1106 = vset.pattern.permute.xlu0 0
    %1107 = vperm.xlu0 %1106, %v1065
    %v1108 = vpop.permute.xlu0 %1107
    %1111 = vset.pattern.permute.xlu0 0
    %1112 = vperm.xlu0 %1111, %v1066
    %v1113 = vpop.permute.xlu0 %1112
    %1116 = vset.pattern.permute.xlu0 0
    %1117 = vperm.xlu0 %1116, %v1067
    %v1118 = vpop.permute.xlu0 %1117
    %1121 = vset.pattern.permute.xlu0 0
    %1122 = vperm.xlu0 %1121, %v1068
    %v1123 = vpop.permute.xlu0 %1122
    %1126 = vset.pattern.permute.xlu0 0
    %1127 = vperm.xlu0 %1126, %v1069
    %v1128 = vpop.permute.xlu0 %1127
    %1131 = vset.pattern.permute.xlu0 0
    %1132 = vperm.xlu0 %1131, %v1070
    %v1133 = vpop.permute.xlu0 %1132
    %1136 = vset.pattern.permute.xlu0 0
    %1137 = vperm.xlu0 %1136, %v1071
    %v1138 = vpop.permute.xlu0 %1137
    %1141 = vset.pattern.permute.xlu0 0
    %1142 = vperm.xlu0 %1141, %v1072
    %v1143 = vpop.permute.xlu0 %1142
    %1146 = vset.pattern.permute.xlu0 0
    %1147 = vperm.xlu0 %1146, %v1073
    %v1148 = vpop.permute.xlu0 %1147
    %1151 = vset.pattern.permute.xlu0 0
    %1152 = vperm.xlu0 %1151, %v1074
    %v1153 = vpop.permute.xlu0 %1152
    %vm1155 = vcmask 523264
    %v1156 = vsel %vm1155, %v768, %v1078
    %v1157 = vsel %vm1155, %v773, %v1083
    %v1158 = vsel %vm1155, %v778, %v1088
    %v1159 = vsel %vm1155, %v783, %v1093
    %v1160 = vsel %vm1155, %v788, %v1098
    %v1161 = vsel %vm1155, %v793, %v1103
    %v1162 = vsel %vm1155, %v798, %v1108
    %v1163 = vsel %vm1155, %v803, %v1113
    %v1164 = vsel %vm1155, %v808, %v1118
    %v1165 = vsel %vm1155, %v813, %v1123
    %v1166 = vsel %vm1155, %v818, %v1128
    %v1167 = vsel %vm1155, %v823, %v1133
    %v1168 = vsel %vm1155, %v828, %v1138
    %v1169 = vsel %vm1155, %v833, %v1143
    %v1170 = vsel %vm1155, %v838, %v1148
    %v1171 = vsel %vm1155, %v843, %v1153
    %v1172 = vmul.f32 %v495, %v1156
    %v1173 = vmul.f32 %v496, %v1157
    %v1174 = vmul.f32 %v497, %v1158
    %v1175 = vmul.f32 %v498, %v1159
    %v1176 = vmul.f32 %v499, %v1160
    %v1177 = vmul.f32 %v500, %v1161
    %v1178 = vmul.f32 %v501, %v1162
    %v1179 = vmul.f32 %v502, %v1163
    %v1180 = vadd.f32 %v1172, %v1164
    %v1181 = vadd.f32 %v1173, %v1165
    %v1182 = vadd.f32 %v1174, %v1166
    %v1183 = vadd.f32 %v1175, %v1167
    %v1184 = vadd.f32 %v1176, %v1168
    %v1185 = vadd.f32 %v1177, %v1169
    %v1186 = vadd.f32 %v1178, %v1170
    %v1187 = vadd.f32 %v1179, %v1171
    %v1188 = vtanh.pop %v1180
    %v1189 = vtanh.pop %v1181
    %v1190 = vtanh.pop %v1182
    %v1191 = vtanh.pop %v1183
    %v1192 = vxor.u32 %v1184, 2147483648
    %v1193 = vxor.u32 %v1185, 2147483648
    %v1194 = vxor.u32 %v1186, 2147483648
    %v1195 = vxor.u32 %v1187, 2147483648
    %v1196 = vmul.f32 %v1192, 1.442695
    %v1197 = vpow.pop %v1196
    %v1198 = vmul.f32 %v1193, 1.442695
    %v1199 = vpow.pop %v1198
    %v1200 = vmul.f32 %v1194, 1.442695
    %v1201 = vpow.pop %v1200
    %v1202 = vmul.f32 %v1195, 1.442695
    %v1203 = vpow.pop %v1202
    %v1204 = vadd.f32 %v1197, 1.0
    %v1205 = vadd.f32 %v1199, 1.0
    %v1206 = vadd.f32 %v1201, 1.0
    %v1207 = vadd.f32 %v1203, 1.0
    %v1208 = vrcp.pop %v1204
    %v1209 = vmul.f32 1.0, %v1208
    %v1210 = vrcp.pop %v1205
    %v1211 = vmul.f32 1.0, %v1210
    %v1212 = vrcp.pop %v1206
    %v1213 = vmul.f32 1.0, %v1212
    %v1214 = vrcp.pop %v1207
    %v1215 = vmul.f32 1.0, %v1214
    %v1216 = vmul.f32 %v1188, %v1209
    %v1217 = vmul.f32 %v1189, %v1211
    %v1218 = vmul.f32 %v1190, %v1213
    %v1219 = vmul.f32 %v1191, %v1215
    %v1220 = vadd.f32 %v1216, %v381
    %v1221 = vadd.f32 %v1217, %v386
    %v1222 = vadd.f32 %v1218, %v391
    %v1223 = vadd.f32 %v1219, %v396
    %1228 = vrot.lane.b32.xlu0 %v1220, 48
    %v1229 = vpop.permute.xlu0 %1228
    %1230 = vrot.lane.b32.xlu0 %v1221, 48
    %v1231 = vpop.permute.xlu0 %1230
    %1232 = vrot.lane.b32.xlu0 %v1222, 48
    %v1233 = vpop.permute.xlu0 %1232
    %1234 = vrot.lane.b32.xlu0 %v1223, 48
    %v1235 = vpop.permute.xlu0 %1234
    %vm1240 = vcmask 392192
    %v1241 = vsel %vm1240, 0.0, %v1229
    %v1242 = vsel %vm1240, 0.0, %v1231
    %v1243 = vsel %vm1240, 0.0, %v1233
    %v1244 = vsel %vm1240, 0.0, %v1235
    %vm1245 = vcmp.ge.s32.totalorder %v60, 48
    %v1246 = vsel %vm1245, 1, 0
    %vm1247 = vcmp.eq.s32.totalorder %v1246, 1
    %v1248 = vsel %vm1247, %v1241, 0.0
    %v1249 = vsel %vm1247, %v1242, 0.0
    %v1250 = vsel %vm1247, %v1243, 0.0
    %v1251 = vsel %vm1247, %v1244, 0.0
    %vm1252 = vcmp.ge.s32.totalorder %v60, 32
    %v1253 = vsel %vm1252, 1, 0
    %vm1254 = vcmp.eq.s32.totalorder %v1253, 1
    %1259 = vrot.lane.b32.xlu0 %v1241, 112
    %v1260 = vpop.permute.xlu0 %1259
    %1261 = vrot.lane.b32.xlu0 %v1229, 112
    %v1262 = vpop.permute.xlu0 %1261
    %1263 = vrot.lane.b32.xlu0 %v1242, 112
    %v1264 = vpop.permute.xlu0 %1263
    %1265 = vrot.lane.b32.xlu0 %v1231, 112
    %v1266 = vpop.permute.xlu0 %1265
    %1267 = vrot.lane.b32.xlu0 %v1243, 112
    %v1268 = vpop.permute.xlu0 %1267
    %1269 = vrot.lane.b32.xlu0 %v1233, 112
    %v1270 = vpop.permute.xlu0 %1269
    %1271 = vrot.lane.b32.xlu0 %v1244, 112
    %v1272 = vpop.permute.xlu0 %1271
    %1273 = vrot.lane.b32.xlu0 %v1235, 112
    %v1274 = vpop.permute.xlu0 %1273
    %vm1275 = vcmask 916480
    %v1276 = vsel %vm1275, %v1260, %v1262
    %v1277 = vsel %vm1275, %v1264, %v1266
    %v1278 = vsel %vm1275, %v1268, %v1270
    %v1279 = vsel %vm1275, %v1272, %v1274
    %v1284 = vsel %vm1254, %v1276, 0.0
    %v1285 = vsel %vm1254, %v1277, 0.0
    %v1286 = vsel %vm1254, %v1278, 0.0
    %v1287 = vsel %vm1254, %v1279, 0.0
    %vm1288 = vcmp.ge.s32.totalorder %v60, 16
    %v1289 = vsel %vm1288, 1, 0
    %vm1290 = vcmp.eq.s32.totalorder %v1289, 1
    %1291 = vrot.lane.b32.xlu0 %v1241, 96
    %v1292 = vpop.permute.xlu0 %1291
    %1293 = vrot.lane.b32.xlu0 %v1229, 96
    %v1294 = vpop.permute.xlu0 %1293
    %1295 = vrot.lane.b32.xlu0 %v1242, 96
    %v1296 = vpop.permute.xlu0 %1295
    %1297 = vrot.lane.b32.xlu0 %v1231, 96
    %v1298 = vpop.permute.xlu0 %1297
    %1299 = vrot.lane.b32.xlu0 %v1243, 96
    %v1300 = vpop.permute.xlu0 %1299
    %1301 = vrot.lane.b32.xlu0 %v1233, 96
    %v1302 = vpop.permute.xlu0 %1301
    %1303 = vrot.lane.b32.xlu0 %v1244, 96
    %v1304 = vpop.permute.xlu0 %1303
    %1305 = vrot.lane.b32.xlu0 %v1235, 96
    %v1306 = vpop.permute.xlu0 %1305
    %vm1307 = vcmask 785408
    %v1308 = vsel %vm1307, %v1292, %v1294
    %v1309 = vsel %vm1307, %v1296, %v1298
    %v1310 = vsel %vm1307, %v1300, %v1302
    %v1311 = vsel %vm1307, %v1304, %v1306
    %v1316 = vsel %vm1290, %v1308, 0.0
    %v1317 = vsel %vm1290, %v1309, 0.0
    %v1318 = vsel %vm1290, %v1310, 0.0
    %v1319 = vsel %vm1290, %v1311, 0.0
    %v1320 = vld [vmem:[%s5] sm:$0xff]
    %v1321 = vld [vmem:[%s5 + $0x8] sm:$0xff]
    %v1322 = vld [vmem:[%s5 + $0x10] sm:$0xff]
    %v1323 = vld [vmem:[%s5 + $0x18] sm:$0xff]
    %v1324 = vld [vmem:[%s5 + $0x20] sm:$0xff]
    %v1325 = vld [vmem:[%s5 + $0x28] sm:$0xff]
    %v1326 = vld [vmem:[%s5 + $0x30] sm:$0xff]
    %v1327 = vld [vmem:[%s5 + $0x38] sm:$0xff]
    %v1328 = vld [vmem:[%s5 + $0x40] sm:$0xff]
    %v1329 = vld [vmem:[%s5 + $0x48] sm:$0xff]
    %v1330 = vld [vmem:[%s5 + $0x50] sm:$0xff]
    %v1331 = vld [vmem:[%s5 + $0x58] sm:$0xff]
    %1332 = vmatprep.subr.mxu0 0.0
    %1333 = vmatpush1.msra.mxu0 %v1223
    %1334 = vmatprep.subr.mxu0 0.0
    %1335 = vmatpush1.msra.mxu0 %v1222
    %1336 = vmatprep.subr.mxu0 0.0
    %1337 = vmatpush1.msra.mxu0 %v1221
    %1338 = vmatprep.subr.mxu0 0.0
    %1339 = vmatpush1.msra.mxu0 %v1220
    %1340 = vmatprep.subr.mxu0 0.0
    %1341 = vmatpush1.msra.mxu0 %v1319
    %1342 = vmatprep.subr.mxu0 0.0
    %1343 = vmatpush1.msra.mxu0 %v1318
    %1344 = vmatprep.subr.mxu0 0.0
    %1345 = vmatpush1.msra.mxu0 %v1317
    %1346 = vmatprep.subr.mxu0 0.0
    %1347 = vmatpush1.msra.mxu0 %v1316
    %1348 = vmatprep.subr.mxu0 0.0
    %1349 = vmatpush1.msra.mxu0 %v1287
    %1350 = vmatprep.subr.mxu0 0.0
    %1351 = vmatpush1.msra.mxu0 %v1286
    %1352 = vmatprep.subr.mxu0 0.0
    %1353 = vmatpush1.msra.mxu0 %v1285
    %1354 = vmatprep.subr.mxu0 0.0
    %1355 = vmatpush1.msra.mxu0 %v1284
    %1356 = vmatprep.subr.mxu0 0.0
    %1357 = vmatpush1.msra.mxu0 %v1251
    %1358 = vmatprep.subr.mxu0 0.0
    %1359 = vmatpush1.msra.mxu0 %v1250
    %1360 = vmatprep.subr.mxu0 0.0
    %1361 = vmatpush1.msra.mxu0 %v1249
    %1362 = vmatprep.subr.mxu0 0.0
    %1363 = vmatpush1.msra.mxu0 %v1248
    %1364 = vmatprep.subr.mxu0 0.0
    %1365 = vmatpush2.msra.mxu0 0.0
    %1366 = vmatprep.subr.mxu0 0.0
    %1367 = vmatpush2.msra.mxu0 0.0
    %1368 = vmatprep.subr.mxu0 0.0
    %1369 = vmatpush2.msra.mxu0 0.0
    %1370 = vmatprep.subr.mxu0 0.0
    %1371 = vmatpush2.msra.mxu0 0.0
    %1372 = vmatprep.subr.mxu0 0.0
    %1373 = vmatpush2.msra.mxu0 0.0
    %1374 = vmatprep.subr.mxu0 0.0
    %1375 = vmatpush2.msra.mxu0 0.0
    %1376 = vmatprep.subr.mxu0 0.0
    %1377 = vmatpush2.msra.mxu0 0.0
    %1378 = vmatprep.subr.mxu0 0.0
    %1379 = vmatpush2.msra.mxu0 0.0
    %1380 = vmatprep.subr.mxu0 0.0
    %1381 = vmatpush2.msra.mxu0 0.0
    %1382 = vmatprep.subr.mxu0 0.0
    %1383 = vmatpush2.msra.mxu0 0.0
    %1384 = vmatprep.subr.mxu0 0.0
    %1385 = vmatpush2.msra.mxu0 0.0
    %1386 = vmatprep.subr.mxu0 0.0
    %1387 = vmatpush2.msra.mxu0 0.0
    %1388 = vmatprep.subr.mxu0 0.0
    %1389 = vmatpush2.msra.mxu0 0.0
    %1390 = vmatprep.subr.mxu0 0.0
    %1391 = vmatpush2.msra.mxu0 0.0
    %1392 = vmatprep.subr.mxu0 0.0
    %1393 = vmatpush2.msra.mxu0 0.0
    %1394 = vmatprep.subr.mxu0 0.0
    %1395 = vmatpush2.msra.mxu0 0.0
    %1396 = vmatprep.mubr.f32.mxu0 0.0
    %1397 = vmatmul.mubr.f32.gmra.mxu0 %v1320
    %v1398 = vpop.f32.mrf.mxu0
    %v1399 = vadd.f32 0.0, %v1398
    %v1400 = vpop.f32.mrf.mxu0
    %1401 = vmatprep.mubr.f32.mxu0 0.0
    %1402 = vmatmul.mubr.f32.gmra.mxu0 %v1321
    %v1403 = vpop.f32.mrf.mxu0
    %v1404 = vadd.f32 0.0, %v1403
    %v1405 = vpop.f32.mrf.mxu0
    %1406 = vmatprep.mubr.f32.mxu0 0.0
    %1407 = vmatmul.mubr.f32.gmra.mxu0 %v1322
    %v1408 = vpop.f32.mrf.mxu0
    %v1409 = vadd.f32 0.0, %v1408
    %v1410 = vpop.f32.mrf.mxu0
    %1411 = vmatprep.mubr.f32.mxu0 0.0
    %1412 = vmatmul.mubr.f32.gmra.mxu0 %v1323
    %v1413 = vpop.f32.mrf.mxu0
    %v1414 = vadd.f32 0.0, %v1413
    %v1415 = vpop.f32.mrf.mxu0
    %1416 = vmatprep.mubr.f32.mxu0 0.0
    %1417 = vmatmul.mubr.f32.gmra.mxu0 %v1324
    %v1418 = vpop.f32.mrf.mxu0
    %v1419 = vadd.f32 0.0, %v1418
    %v1420 = vpop.f32.mrf.mxu0
    %1421 = vmatprep.mubr.f32.mxu0 0.0
    %1422 = vmatmul.mubr.f32.gmra.mxu0 %v1325
    %v1423 = vpop.f32.mrf.mxu0
    %v1424 = vadd.f32 0.0, %v1423
    %v1425 = vpop.f32.mrf.mxu0
    %1426 = vmatprep.mubr.f32.mxu0 0.0
    %1427 = vmatmul.mubr.f32.gmra.mxu0 %v1326
    %v1428 = vpop.f32.mrf.mxu0
    %v1429 = vadd.f32 0.0, %v1428
    %v1430 = vpop.f32.mrf.mxu0
    %1431 = vmatprep.mubr.f32.mxu0 0.0
    %1432 = vmatmul.mubr.f32.gmra.mxu0 %v1327
    %v1433 = vpop.f32.mrf.mxu0
    %v1434 = vadd.f32 0.0, %v1433
    %v1435 = vpop.f32.mrf.mxu0
    %1436 = vmatprep.mubr.f32.mxu0 0.0
    %1437 = vmatmul.mubr.f32.gmra.mxu0 %v1328
    %v1438 = vpop.f32.mrf.mxu0
    %v1439 = vadd.f32 0.0, %v1438
    %v1440 = vpop.f32.mrf.mxu0
    %1441 = vmatprep.mubr.f32.mxu0 0.0
    %1442 = vmatmul.mubr.f32.gmra.mxu0 %v1329
    %v1443 = vpop.f32.mrf.mxu0
    %v1444 = vadd.f32 0.0, %v1443
    %v1445 = vpop.f32.mrf.mxu0
    %1446 = vmatprep.mubr.f32.mxu0 0.0
    %1447 = vmatmul.mubr.f32.gmra.mxu0 %v1330
    %v1448 = vpop.f32.mrf.mxu0
    %v1449 = vadd.f32 0.0, %v1448
    %v1450 = vpop.f32.mrf.mxu0
    %1451 = vmatprep.mubr.f32.mxu0 0.0
    %1452 = vmatmul.mubr.f32.gmra.mxu0 %v1331
    %v1453 = vpop.f32.mrf.mxu0
    %v1454 = vadd.f32 0.0, %v1453
    %v1455 = vpop.f32.mrf.mxu0
    %1456 = vdwg.mxu0
    %1457 = vadd.xlane.f32.xlu0 %v1399
    %v1458 = vpop.xlane.xlu0 %1457
    %1459 = vadd.xlane.f32.xlu0 %v1404
    %v1460 = vpop.xlane.xlu0 %1459
    %1461 = vadd.xlane.f32.xlu0 %v1409
    %v1462 = vpop.xlane.xlu0 %1461
    %1463 = vadd.xlane.f32.xlu0 %v1414
    %v1464 = vpop.xlane.xlu0 %1463
    %1465 = vadd.xlane.f32.xlu0 %v1419
    %v1466 = vpop.xlane.xlu0 %1465
    %1467 = vadd.xlane.f32.xlu0 %v1424
    %v1468 = vpop.xlane.xlu0 %1467
    %1469 = vadd.xlane.f32.xlu0 %v1429
    %v1470 = vpop.xlane.xlu0 %1469
    %1471 = vadd.xlane.f32.xlu0 %v1434
    %v1472 = vpop.xlane.xlu0 %1471
    %v1473 = vmul.f32 %v1399, %v1399
    %v1474 = vmul.f32 %v1404, %v1404
    %v1475 = vmul.f32 %v1409, %v1409
    %v1476 = vmul.f32 %v1414, %v1414
    %v1477 = vmul.f32 %v1419, %v1419
    %v1478 = vmul.f32 %v1424, %v1424
    %v1479 = vmul.f32 %v1429, %v1429
    %v1480 = vmul.f32 %v1434, %v1434
    %1481 = vadd.xlane.f32.xlu0 %v1473
    %v1482 = vpop.xlane.xlu0 %1481
    %1483 = vadd.xlane.f32.xlu0 %v1474
    %v1484 = vpop.xlane.xlu0 %1483
    %1485 = vadd.xlane.f32.xlu0 %v1475
    %v1486 = vpop.xlane.xlu0 %1485
    %1487 = vadd.xlane.f32.xlu0 %v1476
    %v1488 = vpop.xlane.xlu0 %1487
    %1489 = vadd.xlane.f32.xlu0 %v1477
    %v1490 = vpop.xlane.xlu0 %1489
    %1491 = vadd.xlane.f32.xlu0 %v1478
    %v1492 = vpop.xlane.xlu0 %1491
    %1493 = vadd.xlane.f32.xlu0 %v1479
    %v1494 = vpop.xlane.xlu0 %1493
    %1495 = vadd.xlane.f32.xlu0 %v1480
    %v1496 = vpop.xlane.xlu0 %1495
    %v1497 = vmul.f32 %v1458, 0.0078125
    %v1498 = vmul.f32 %v1460, 0.0078125
    %v1499 = vmul.f32 %v1462, 0.0078125
    %v1500 = vmul.f32 %v1464, 0.0078125
    %v1501 = vmul.f32 %v1466, 0.0078125
    %v1502 = vmul.f32 %v1468, 0.0078125
    %v1503 = vmul.f32 %v1470, 0.0078125
    %v1504 = vmul.f32 %v1472, 0.0078125
    %v1505 = vmul.f32 %v1482, 0.0078125
    %v1506 = vmul.f32 %v1484, 0.0078125
    %v1507 = vmul.f32 %v1486, 0.0078125
    %v1508 = vmul.f32 %v1488, 0.0078125
    %v1509 = vmul.f32 %v1490, 0.0078125
    %v1510 = vmul.f32 %v1492, 0.0078125
    %v1511 = vmul.f32 %v1494, 0.0078125
    %v1512 = vmul.f32 %v1496, 0.0078125
    %v1513 = vmul.f32 %v1497, %v1497
    %v1514 = vmul.f32 %v1498, %v1498
    %v1515 = vmul.f32 %v1499, %v1499
    %v1516 = vmul.f32 %v1500, %v1500
    %v1517 = vmul.f32 %v1501, %v1501
    %v1518 = vmul.f32 %v1502, %v1502
    %v1519 = vmul.f32 %v1503, %v1503
    %v1520 = vmul.f32 %v1504, %v1504
    %v1521 = vsub.f32 %v1505, %v1513
    %v1522 = vsub.f32 %v1506, %v1514
    %v1523 = vsub.f32 %v1507, %v1515
    %v1524 = vsub.f32 %v1508, %v1516
    %v1525 = vsub.f32 %v1509, %v1517
    %v1526 = vsub.f32 %v1510, %v1518
    %v1527 = vsub.f32 %v1511, %v1519
    %v1528 = vsub.f32 %v1512, %v1520
    %v1529 = vsub.f32 %v1399, %v1497
    %v1530 = vsub.f32 %v1404, %v1498
    %v1531 = vsub.f32 %v1409, %v1499
    %v1532 = vsub.f32 %v1414, %v1500
    %v1533 = vsub.f32 %v1419, %v1501
    %v1534 = vsub.f32 %v1424, %v1502
    %v1535 = vsub.f32 %v1429, %v1503
    %v1536 = vsub.f32 %v1434, %v1504
    %v1537 = vadd.f32 %v1521, 1e-05
    %v1538 = vadd.f32 %v1522, 1e-05
    %v1539 = vadd.f32 %v1523, 1e-05
    %v1540 = vadd.f32 %v1524, 1e-05
    %v1541 = vadd.f32 %v1525, 1e-05
    %v1542 = vadd.f32 %v1526, 1e-05
    %v1543 = vadd.f32 %v1527, 1e-05
    %v1544 = vadd.f32 %v1528, 1e-05
    %v1545 = vrsqrt.pop %v1537
    %v1546 = vrsqrt.pop %v1538
    %v1547 = vrsqrt.pop %v1539
    %v1548 = vrsqrt.pop %v1540
    %v1549 = vrsqrt.pop %v1541
    %v1550 = vrsqrt.pop %v1542
    %v1551 = vrsqrt.pop %v1543
    %v1552 = vrsqrt.pop %v1544
    %v1553 = vmul.f32 %v1529, %v1545
    %v1554 = vmul.f32 %v1530, %v1546
    %v1555 = vmul.f32 %v1531, %v1547
    %v1556 = vmul.f32 %v1532, %v1548
    %v1557 = vmul.f32 %v1533, %v1549
    %v1558 = vmul.f32 %v1534, %v1550
    %v1559 = vmul.f32 %v1535, %v1551
    %v1560 = vmul.f32 %v1536, %v1552
    %s1561 = scalar_lea.vmem %s2, 128
    %v1562 = vld [vmem:[%s1561] sm:$0xff]
    %v1563 = vld [vmem:[%s1561 + $0x8] sm:$0xff]
    %v1564 = vld [vmem:[%s1561 + $0x10] sm:$0xff]
    %v1565 = vld [vmem:[%s1561 + $0x18] sm:$0xff]
    %v1566 = vld [vmem:[%s1561 + $0x20] sm:$0xff]
    %v1567 = vld [vmem:[%s1561 + $0x28] sm:$0xff]
    %v1568 = vld [vmem:[%s1561 + $0x30] sm:$0xff]
    %v1569 = vld [vmem:[%s1561 + $0x38] sm:$0xff]
    %v1570 = vld [vmem:[%s1561 + $0x40] sm:$0xff]
    %v1571 = vld [vmem:[%s1561 + $0x48] sm:$0xff]
    %v1572 = vld [vmem:[%s1561 + $0x50] sm:$0xff]
    %v1573 = vld [vmem:[%s1561 + $0x58] sm:$0xff]
    %v1574 = vld [vmem:[%s1561 + $0x60] sm:$0xff]
    %v1575 = vld [vmem:[%s1561 + $0x68] sm:$0xff]
    %v1576 = vld [vmem:[%s1561 + $0x70] sm:$0xff]
    %v1577 = vld [vmem:[%s1561 + $0x78] sm:$0xff]
    %s1578 = scalar_lea.vmem %s3, 128
    %v1579 = vld [vmem:[%s1578] sm:$0xff]
    %v1580 = vld [vmem:[%s1578 + $0x8] sm:$0xff]
    %v1581 = vld [vmem:[%s1578 + $0x10] sm:$0xff]
    %v1582 = vld [vmem:[%s1578 + $0x18] sm:$0xff]
    %v1583 = vld [vmem:[%s1578 + $0x20] sm:$0xff]
    %v1584 = vld [vmem:[%s1578 + $0x28] sm:$0xff]
    %v1585 = vld [vmem:[%s1578 + $0x30] sm:$0xff]
    %v1586 = vld [vmem:[%s1578 + $0x38] sm:$0xff]
    %v1587 = vld [vmem:[%s1578 + $0x40] sm:$0xff]
    %v1588 = vld [vmem:[%s1578 + $0x48] sm:$0xff]
    %v1589 = vld [vmem:[%s1578 + $0x50] sm:$0xff]
    %v1590 = vld [vmem:[%s1578 + $0x58] sm:$0xff]
    %v1591 = vld [vmem:[%s1578 + $0x60] sm:$0xff]
    %v1592 = vld [vmem:[%s1578 + $0x68] sm:$0xff]
    %v1593 = vld [vmem:[%s1578 + $0x70] sm:$0xff]
    %v1594 = vld [vmem:[%s1578 + $0x78] sm:$0xff]
    %v1595 = vmul.f32 %v1562, %v536
    %v1596 = vmul.f32 %v1563, %v536
    %v1597 = vmul.f32 %v1564, %v536
    %v1598 = vmul.f32 %v1565, %v536
    %v1599 = vmul.f32 %v1566, %v536
    %v1600 = vmul.f32 %v1567, %v536
    %v1601 = vmul.f32 %v1568, %v536
    %v1602 = vmul.f32 %v1569, %v536
    %v1603 = vmul.f32 %v1570, %v536
    %v1604 = vmul.f32 %v1571, %v536
    %v1605 = vmul.f32 %v1572, %v536
    %v1606 = vmul.f32 %v1573, %v536
    %v1607 = vmul.f32 %v1574, %v536
    %v1608 = vmul.f32 %v1575, %v536
    %v1609 = vmul.f32 %v1576, %v536
    %v1610 = vmul.f32 %v1577, %v536
    %v1611 = vadd.f32 %v1579, %v1595
    %v1612 = vadd.f32 %v1580, %v1596
    %v1613 = vadd.f32 %v1581, %v1597
    %v1614 = vadd.f32 %v1582, %v1598
    %v1615 = vadd.f32 %v1583, %v1599
    %v1616 = vadd.f32 %v1584, %v1600
    %v1617 = vadd.f32 %v1585, %v1601
    %v1618 = vadd.f32 %v1586, %v1602
    %v1619 = vadd.f32 %v1587, %v1603
    %v1620 = vadd.f32 %v1588, %v1604
    %v1621 = vadd.f32 %v1589, %v1605
    %v1622 = vadd.f32 %v1590, %v1606
    %v1623 = vadd.f32 %v1591, %v1607
    %v1624 = vadd.f32 %v1592, %v1608
    %v1625 = vadd.f32 %v1593, %v1609
    %v1626 = vadd.f32 %v1594, %v1610
    %v1627 = vmul.f32 %v1562, %v570
    %v1628 = vmul.f32 %v1563, %v570
    %v1629 = vmul.f32 %v1564, %v570
    %v1630 = vmul.f32 %v1565, %v570
    %v1631 = vmul.f32 %v1566, %v570
    %v1632 = vmul.f32 %v1567, %v570
    %v1633 = vmul.f32 %v1568, %v570
    %v1634 = vmul.f32 %v1569, %v570
    %v1635 = vmul.f32 %v1570, %v570
    %v1636 = vmul.f32 %v1571, %v570
    %v1637 = vmul.f32 %v1572, %v570
    %v1638 = vmul.f32 %v1573, %v570
    %v1639 = vmul.f32 %v1574, %v570
    %v1640 = vmul.f32 %v1575, %v570
    %v1641 = vmul.f32 %v1576, %v570
    %v1642 = vmul.f32 %v1577, %v570
    %1659 = vrot.lane.b32.xlu0 %v1627, 127
    %v1660 = vpop.permute.xlu0 %1659
    %1661 = vrot.lane.b32.xlu0 %v1628, 127
    %v1662 = vpop.permute.xlu0 %1661
    %1663 = vrot.lane.b32.xlu0 %v1629, 127
    %v1664 = vpop.permute.xlu0 %1663
    %1665 = vrot.lane.b32.xlu0 %v1630, 127
    %v1666 = vpop.permute.xlu0 %1665
    %1667 = vrot.lane.b32.xlu0 %v1631, 127
    %v1668 = vpop.permute.xlu0 %1667
    %1669 = vrot.lane.b32.xlu0 %v1632, 127
    %v1670 = vpop.permute.xlu0 %1669
    %1671 = vrot.lane.b32.xlu0 %v1633, 127
    %v1672 = vpop.permute.xlu0 %1671
    %1673 = vrot.lane.b32.xlu0 %v1634, 127
    %v1674 = vpop.permute.xlu0 %1673
    %1675 = vrot.lane.b32.xlu0 %v1635, 127
    %v1676 = vpop.permute.xlu0 %1675
    %1677 = vrot.lane.b32.xlu0 %v1636, 127
    %v1678 = vpop.permute.xlu0 %1677
    %1679 = vrot.lane.b32.xlu0 %v1637, 127
    %v1680 = vpop.permute.xlu0 %1679
    %1681 = vrot.lane.b32.xlu0 %v1638, 127
    %v1682 = vpop.permute.xlu0 %1681
    %1683 = vrot.lane.b32.xlu0 %v1639, 127
    %v1684 = vpop.permute.xlu0 %1683
    %1685 = vrot.lane.b32.xlu0 %v1640, 127
    %v1686 = vpop.permute.xlu0 %1685
    %1687 = vrot.lane.b32.xlu0 %v1641, 127
    %v1688 = vpop.permute.xlu0 %1687
    %1689 = vrot.lane.b32.xlu0 %v1642, 127
    %v1690 = vpop.permute.xlu0 %1689
    %v1707 = vadd.f32 %v1611, %v1660
    %v1708 = vadd.f32 %v1612, %v1662
    %v1709 = vadd.f32 %v1613, %v1664
    %v1710 = vadd.f32 %v1614, %v1666
    %v1711 = vadd.f32 %v1615, %v1668
    %v1712 = vadd.f32 %v1616, %v1670
    %v1713 = vadd.f32 %v1617, %v1672
    %v1714 = vadd.f32 %v1618, %v1674
    %v1715 = vadd.f32 %v1619, %v1676
    %v1716 = vadd.f32 %v1620, %v1678
    %v1717 = vadd.f32 %v1621, %v1680
    %v1718 = vadd.f32 %v1622, %v1682
    %v1719 = vadd.f32 %v1623, %v1684
    %v1720 = vadd.f32 %v1624, %v1686
    %v1721 = vadd.f32 %v1625, %v1688
    %v1722 = vadd.f32 %v1626, %v1690
    %v1723 = vmul.f32 %v1562, %v668
    %v1724 = vmul.f32 %v1563, %v668
    %v1725 = vmul.f32 %v1564, %v668
    %v1726 = vmul.f32 %v1565, %v668
    %v1727 = vmul.f32 %v1566, %v668
    %v1728 = vmul.f32 %v1567, %v668
    %v1729 = vmul.f32 %v1568, %v668
    %v1730 = vmul.f32 %v1569, %v668
    %v1731 = vmul.f32 %v1570, %v668
    %v1732 = vmul.f32 %v1571, %v668
    %v1733 = vmul.f32 %v1572, %v668
    %v1734 = vmul.f32 %v1573, %v668
    %v1735 = vmul.f32 %v1574, %v668
    %v1736 = vmul.f32 %v1575, %v668
    %v1737 = vmul.f32 %v1576, %v668
    %v1738 = vmul.f32 %v1577, %v668
    %1755 = vrot.lane.b32.xlu0 %v1723, 126
    %v1756 = vpop.permute.xlu0 %1755
    %1757 = vrot.lane.b32.xlu0 %v1724, 126
    %v1758 = vpop.permute.xlu0 %1757
    %1759 = vrot.lane.b32.xlu0 %v1725, 126
    %v1760 = vpop.permute.xlu0 %1759
    %1761 = vrot.lane.b32.xlu0 %v1726, 126
    %v1762 = vpop.permute.xlu0 %1761
    %1763 = vrot.lane.b32.xlu0 %v1727, 126
    %v1764 = vpop.permute.xlu0 %1763
    %1765 = vrot.lane.b32.xlu0 %v1728, 126
    %v1766 = vpop.permute.xlu0 %1765
    %1767 = vrot.lane.b32.xlu0 %v1729, 126
    %v1768 = vpop.permute.xlu0 %1767
    %1769 = vrot.lane.b32.xlu0 %v1730, 126
    %v1770 = vpop.permute.xlu0 %1769
    %1771 = vrot.lane.b32.xlu0 %v1731, 126
    %v1772 = vpop.permute.xlu0 %1771
    %1773 = vrot.lane.b32.xlu0 %v1732, 126
    %v1774 = vpop.permute.xlu0 %1773
    %1775 = vrot.lane.b32.xlu0 %v1733, 126
    %v1776 = vpop.permute.xlu0 %1775
    %1777 = vrot.lane.b32.xlu0 %v1734, 126
    %v1778 = vpop.permute.xlu0 %1777
    %1779 = vrot.lane.b32.xlu0 %v1735, 126
    %v1780 = vpop.permute.xlu0 %1779
    %1781 = vrot.lane.b32.xlu0 %v1736, 126
    %v1782 = vpop.permute.xlu0 %1781
    %1783 = vrot.lane.b32.xlu0 %v1737, 126
    %v1784 = vpop.permute.xlu0 %1783
    %1785 = vrot.lane.b32.xlu0 %v1738, 126
    %v1786 = vpop.permute.xlu0 %1785
    %v1803 = vadd.f32 %v1707, %v1756
    %v1804 = vadd.f32 %v1708, %v1758
    %v1805 = vadd.f32 %v1709, %v1760
    %v1806 = vadd.f32 %v1710, %v1762
    %v1807 = vadd.f32 %v1711, %v1764
    %v1808 = vadd.f32 %v1712, %v1766
    %v1809 = vadd.f32 %v1713, %v1768
    %v1810 = vadd.f32 %v1714, %v1770
    %v1811 = vadd.f32 %v1715, %v1772
    %v1812 = vadd.f32 %v1716, %v1774
    %v1813 = vadd.f32 %v1717, %v1776
    %v1814 = vadd.f32 %v1718, %v1778
    %v1815 = vadd.f32 %v1719, %v1780
    %v1816 = vadd.f32 %v1720, %v1782
    %v1817 = vadd.f32 %v1721, %v1784
    %v1818 = vadd.f32 %v1722, %v1786
    %1820 = vset.pattern.permute.xlu0 0
    %1821 = vperm.xlu0 %1820, %v1803
    %v1822 = vpop.permute.xlu0 %1821
    %1825 = vset.pattern.permute.xlu0 0
    %1826 = vperm.xlu0 %1825, %v1804
    %v1827 = vpop.permute.xlu0 %1826
    %1830 = vset.pattern.permute.xlu0 0
    %1831 = vperm.xlu0 %1830, %v1805
    %v1832 = vpop.permute.xlu0 %1831
    %1835 = vset.pattern.permute.xlu0 0
    %1836 = vperm.xlu0 %1835, %v1806
    %v1837 = vpop.permute.xlu0 %1836
    %1840 = vset.pattern.permute.xlu0 0
    %1841 = vperm.xlu0 %1840, %v1807
    %v1842 = vpop.permute.xlu0 %1841
    %1845 = vset.pattern.permute.xlu0 0
    %1846 = vperm.xlu0 %1845, %v1808
    %v1847 = vpop.permute.xlu0 %1846
    %1850 = vset.pattern.permute.xlu0 0
    %1851 = vperm.xlu0 %1850, %v1809
    %v1852 = vpop.permute.xlu0 %1851
    %1855 = vset.pattern.permute.xlu0 0
    %1856 = vperm.xlu0 %1855, %v1810
    %v1857 = vpop.permute.xlu0 %1856
    %1860 = vset.pattern.permute.xlu0 0
    %1861 = vperm.xlu0 %1860, %v1811
    %v1862 = vpop.permute.xlu0 %1861
    %1865 = vset.pattern.permute.xlu0 0
    %1866 = vperm.xlu0 %1865, %v1812
    %v1867 = vpop.permute.xlu0 %1866
    %1870 = vset.pattern.permute.xlu0 0
    %1871 = vperm.xlu0 %1870, %v1813
    %v1872 = vpop.permute.xlu0 %1871
    %1875 = vset.pattern.permute.xlu0 0
    %1876 = vperm.xlu0 %1875, %v1814
    %v1877 = vpop.permute.xlu0 %1876
    %1880 = vset.pattern.permute.xlu0 0
    %1881 = vperm.xlu0 %1880, %v1815
    %v1882 = vpop.permute.xlu0 %1881
    %1885 = vset.pattern.permute.xlu0 0
    %1886 = vperm.xlu0 %1885, %v1816
    %v1887 = vpop.permute.xlu0 %1886
    %1890 = vset.pattern.permute.xlu0 0
    %1891 = vperm.xlu0 %1890, %v1817
    %v1892 = vpop.permute.xlu0 %1891
    %1895 = vset.pattern.permute.xlu0 0
    %1896 = vperm.xlu0 %1895, %v1818
    %v1897 = vpop.permute.xlu0 %1896
    %v1899 = vmul.f32 %v1562, %v846
    %v1900 = vmul.f32 %v1563, %v846
    %v1901 = vmul.f32 %v1564, %v846
    %v1902 = vmul.f32 %v1565, %v846
    %v1903 = vmul.f32 %v1566, %v846
    %v1904 = vmul.f32 %v1567, %v846
    %v1905 = vmul.f32 %v1568, %v846
    %v1906 = vmul.f32 %v1569, %v846
    %v1907 = vmul.f32 %v1570, %v846
    %v1908 = vmul.f32 %v1571, %v846
    %v1909 = vmul.f32 %v1572, %v846
    %v1910 = vmul.f32 %v1573, %v846
    %v1911 = vmul.f32 %v1574, %v846
    %v1912 = vmul.f32 %v1575, %v846
    %v1913 = vmul.f32 %v1576, %v846
    %v1914 = vmul.f32 %v1577, %v846
    %v1915 = vadd.f32 %v1579, %v1899
    %v1916 = vadd.f32 %v1580, %v1900
    %v1917 = vadd.f32 %v1581, %v1901
    %v1918 = vadd.f32 %v1582, %v1902
    %v1919 = vadd.f32 %v1583, %v1903
    %v1920 = vadd.f32 %v1584, %v1904
    %v1921 = vadd.f32 %v1585, %v1905
    %v1922 = vadd.f32 %v1586, %v1906
    %v1923 = vadd.f32 %v1587, %v1907
    %v1924 = vadd.f32 %v1588, %v1908
    %v1925 = vadd.f32 %v1589, %v1909
    %v1926 = vadd.f32 %v1590, %v1910
    %v1927 = vadd.f32 %v1591, %v1911
    %v1928 = vadd.f32 %v1592, %v1912
    %v1929 = vadd.f32 %v1593, %v1913
    %v1930 = vadd.f32 %v1594, %v1914
    %v1931 = vmul.f32 %v1562, %v880
    %v1932 = vmul.f32 %v1563, %v880
    %v1933 = vmul.f32 %v1564, %v880
    %v1934 = vmul.f32 %v1565, %v880
    %v1935 = vmul.f32 %v1566, %v880
    %v1936 = vmul.f32 %v1567, %v880
    %v1937 = vmul.f32 %v1568, %v880
    %v1938 = vmul.f32 %v1569, %v880
    %v1939 = vmul.f32 %v1570, %v880
    %v1940 = vmul.f32 %v1571, %v880
    %v1941 = vmul.f32 %v1572, %v880
    %v1942 = vmul.f32 %v1573, %v880
    %v1943 = vmul.f32 %v1574, %v880
    %v1944 = vmul.f32 %v1575, %v880
    %v1945 = vmul.f32 %v1576, %v880
    %v1946 = vmul.f32 %v1577, %v880
    %1963 = vrot.lane.b32.xlu0 %v1931, 127
    %v1964 = vpop.permute.xlu0 %1963
    %1965 = vrot.lane.b32.xlu0 %v1932, 127
    %v1966 = vpop.permute.xlu0 %1965
    %1967 = vrot.lane.b32.xlu0 %v1933, 127
    %v1968 = vpop.permute.xlu0 %1967
    %1969 = vrot.lane.b32.xlu0 %v1934, 127
    %v1970 = vpop.permute.xlu0 %1969
    %1971 = vrot.lane.b32.xlu0 %v1935, 127
    %v1972 = vpop.permute.xlu0 %1971
    %1973 = vrot.lane.b32.xlu0 %v1936, 127
    %v1974 = vpop.permute.xlu0 %1973
    %1975 = vrot.lane.b32.xlu0 %v1937, 127
    %v1976 = vpop.permute.xlu0 %1975
    %1977 = vrot.lane.b32.xlu0 %v1938, 127
    %v1978 = vpop.permute.xlu0 %1977
    %1979 = vrot.lane.b32.xlu0 %v1939, 127
    %v1980 = vpop.permute.xlu0 %1979
    %1981 = vrot.lane.b32.xlu0 %v1940, 127
    %v1982 = vpop.permute.xlu0 %1981
    %1983 = vrot.lane.b32.xlu0 %v1941, 127
    %v1984 = vpop.permute.xlu0 %1983
    %1985 = vrot.lane.b32.xlu0 %v1942, 127
    %v1986 = vpop.permute.xlu0 %1985
    %1987 = vrot.lane.b32.xlu0 %v1943, 127
    %v1988 = vpop.permute.xlu0 %1987
    %1989 = vrot.lane.b32.xlu0 %v1944, 127
    %v1990 = vpop.permute.xlu0 %1989
    %1991 = vrot.lane.b32.xlu0 %v1945, 127
    %v1992 = vpop.permute.xlu0 %1991
    %1993 = vrot.lane.b32.xlu0 %v1946, 127
    %v1994 = vpop.permute.xlu0 %1993
    %v2011 = vadd.f32 %v1915, %v1964
    %v2012 = vadd.f32 %v1916, %v1966
    %v2013 = vadd.f32 %v1917, %v1968
    %v2014 = vadd.f32 %v1918, %v1970
    %v2015 = vadd.f32 %v1919, %v1972
    %v2016 = vadd.f32 %v1920, %v1974
    %v2017 = vadd.f32 %v1921, %v1976
    %v2018 = vadd.f32 %v1922, %v1978
    %v2019 = vadd.f32 %v1923, %v1980
    %v2020 = vadd.f32 %v1924, %v1982
    %v2021 = vadd.f32 %v1925, %v1984
    %v2022 = vadd.f32 %v1926, %v1986
    %v2023 = vadd.f32 %v1927, %v1988
    %v2024 = vadd.f32 %v1928, %v1990
    %v2025 = vadd.f32 %v1929, %v1992
    %v2026 = vadd.f32 %v1930, %v1994
    %v2027 = vmul.f32 %v1562, %v978
    %v2028 = vmul.f32 %v1563, %v978
    %v2029 = vmul.f32 %v1564, %v978
    %v2030 = vmul.f32 %v1565, %v978
    %v2031 = vmul.f32 %v1566, %v978
    %v2032 = vmul.f32 %v1567, %v978
    %v2033 = vmul.f32 %v1568, %v978
    %v2034 = vmul.f32 %v1569, %v978
    %v2035 = vmul.f32 %v1570, %v978
    %v2036 = vmul.f32 %v1571, %v978
    %v2037 = vmul.f32 %v1572, %v978
    %v2038 = vmul.f32 %v1573, %v978
    %v2039 = vmul.f32 %v1574, %v978
    %v2040 = vmul.f32 %v1575, %v978
    %v2041 = vmul.f32 %v1576, %v978
    %v2042 = vmul.f32 %v1577, %v978
    %2059 = vrot.lane.b32.xlu0 %v2027, 126
    %v2060 = vpop.permute.xlu0 %2059
    %2061 = vrot.lane.b32.xlu0 %v2028, 126
    %v2062 = vpop.permute.xlu0 %2061
    %2063 = vrot.lane.b32.xlu0 %v2029, 126
    %v2064 = vpop.permute.xlu0 %2063
    %2065 = vrot.lane.b32.xlu0 %v2030, 126
    %v2066 = vpop.permute.xlu0 %2065
    %2067 = vrot.lane.b32.xlu0 %v2031, 126
    %v2068 = vpop.permute.xlu0 %2067
    %2069 = vrot.lane.b32.xlu0 %v2032, 126
    %v2070 = vpop.permute.xlu0 %2069
    %2071 = vrot.lane.b32.xlu0 %v2033, 126
    %v2072 = vpop.permute.xlu0 %2071
    %2073 = vrot.lane.b32.xlu0 %v2034, 126
    %v2074 = vpop.permute.xlu0 %2073
    %2075 = vrot.lane.b32.xlu0 %v2035, 126
    %v2076 = vpop.permute.xlu0 %2075
    %2077 = vrot.lane.b32.xlu0 %v2036, 126
    %v2078 = vpop.permute.xlu0 %2077
    %2079 = vrot.lane.b32.xlu0 %v2037, 126
    %v2080 = vpop.permute.xlu0 %2079
    %2081 = vrot.lane.b32.xlu0 %v2038, 126
    %v2082 = vpop.permute.xlu0 %2081
    %2083 = vrot.lane.b32.xlu0 %v2039, 126
    %v2084 = vpop.permute.xlu0 %2083
    %2085 = vrot.lane.b32.xlu0 %v2040, 126
    %v2086 = vpop.permute.xlu0 %2085
    %2087 = vrot.lane.b32.xlu0 %v2041, 126
    %v2088 = vpop.permute.xlu0 %2087
    %2089 = vrot.lane.b32.xlu0 %v2042, 126
    %v2090 = vpop.permute.xlu0 %2089
    %v2107 = vadd.f32 %v2011, %v2060
    %v2108 = vadd.f32 %v2012, %v2062
    %v2109 = vadd.f32 %v2013, %v2064
    %v2110 = vadd.f32 %v2014, %v2066
    %v2111 = vadd.f32 %v2015, %v2068
    %v2112 = vadd.f32 %v2016, %v2070
    %v2113 = vadd.f32 %v2017, %v2072
    %v2114 = vadd.f32 %v2018, %v2074
    %v2115 = vadd.f32 %v2019, %v2076
    %v2116 = vadd.f32 %v2020, %v2078
    %v2117 = vadd.f32 %v2021, %v2080
    %v2118 = vadd.f32 %v2022, %v2082
    %v2119 = vadd.f32 %v2023, %v2084
    %v2120 = vadd.f32 %v2024, %v2086
    %v2121 = vadd.f32 %v2025, %v2088
    %v2122 = vadd.f32 %v2026, %v2090
    %2124 = vset.pattern.permute.xlu0 0
    %2125 = vperm.xlu0 %2124, %v2107
    %v2126 = vpop.permute.xlu0 %2125
    %2129 = vset.pattern.permute.xlu0 0
    %2130 = vperm.xlu0 %2129, %v2108
    %v2131 = vpop.permute.xlu0 %2130
    %2134 = vset.pattern.permute.xlu0 0
    %2135 = vperm.xlu0 %2134, %v2109
    %v2136 = vpop.permute.xlu0 %2135
    %2139 = vset.pattern.permute.xlu0 0
    %2140 = vperm.xlu0 %2139, %v2110
    %v2141 = vpop.permute.xlu0 %2140
    %2144 = vset.pattern.permute.xlu0 0
    %2145 = vperm.xlu0 %2144, %v2111
    %v2146 = vpop.permute.xlu0 %2145
    %2149 = vset.pattern.permute.xlu0 0
    %2150 = vperm.xlu0 %2149, %v2112
    %v2151 = vpop.permute.xlu0 %2150
    %2154 = vset.pattern.permute.xlu0 0
    %2155 = vperm.xlu0 %2154, %v2113
    %v2156 = vpop.permute.xlu0 %2155
    %2159 = vset.pattern.permute.xlu0 0
    %2160 = vperm.xlu0 %2159, %v2114
    %v2161 = vpop.permute.xlu0 %2160
    %2164 = vset.pattern.permute.xlu0 0
    %2165 = vperm.xlu0 %2164, %v2115
    %v2166 = vpop.permute.xlu0 %2165
    %2169 = vset.pattern.permute.xlu0 0
    %2170 = vperm.xlu0 %2169, %v2116
    %v2171 = vpop.permute.xlu0 %2170
    %2174 = vset.pattern.permute.xlu0 0
    %2175 = vperm.xlu0 %2174, %v2117
    %v2176 = vpop.permute.xlu0 %2175
    %2179 = vset.pattern.permute.xlu0 0
    %2180 = vperm.xlu0 %2179, %v2118
    %v2181 = vpop.permute.xlu0 %2180
    %2184 = vset.pattern.permute.xlu0 0
    %2185 = vperm.xlu0 %2184, %v2119
    %v2186 = vpop.permute.xlu0 %2185
    %2189 = vset.pattern.permute.xlu0 0
    %2190 = vperm.xlu0 %2189, %v2120
    %v2191 = vpop.permute.xlu0 %2190
    %2194 = vset.pattern.permute.xlu0 0
    %2195 = vperm.xlu0 %2194, %v2121
    %v2196 = vpop.permute.xlu0 %2195
    %2199 = vset.pattern.permute.xlu0 0
    %2200 = vperm.xlu0 %2199, %v2122
    %v2201 = vpop.permute.xlu0 %2200
    %v2203 = vsel %vm1155, %v1822, %v2126
    %v2204 = vsel %vm1155, %v1827, %v2131
    %v2205 = vsel %vm1155, %v1832, %v2136
    %v2206 = vsel %vm1155, %v1837, %v2141
    %v2207 = vsel %vm1155, %v1842, %v2146
    %v2208 = vsel %vm1155, %v1847, %v2151
    %v2209 = vsel %vm1155, %v1852, %v2156
    %v2210 = vsel %vm1155, %v1857, %v2161
    %v2211 = vsel %vm1155, %v1862, %v2166
    %v2212 = vsel %vm1155, %v1867, %v2171
    %v2213 = vsel %vm1155, %v1872, %v2176
    %v2214 = vsel %vm1155, %v1877, %v2181
    %v2215 = vsel %vm1155, %v1882, %v2186
    %v2216 = vsel %vm1155, %v1887, %v2191
    %v2217 = vsel %vm1155, %v1892, %v2196
    %v2218 = vsel %vm1155, %v1897, %v2201
    %v2219 = vmul.f32 %v1553, %v2203
    %v2220 = vmul.f32 %v1554, %v2204
    %v2221 = vmul.f32 %v1555, %v2205
    %v2222 = vmul.f32 %v1556, %v2206
    %v2223 = vmul.f32 %v1557, %v2207
    %v2224 = vmul.f32 %v1558, %v2208
    %v2225 = vmul.f32 %v1559, %v2209
    %v2226 = vmul.f32 %v1560, %v2210
    %v2227 = vadd.f32 %v2219, %v2211
    %v2228 = vadd.f32 %v2220, %v2212
    %v2229 = vadd.f32 %v2221, %v2213
    %v2230 = vadd.f32 %v2222, %v2214
    %v2231 = vadd.f32 %v2223, %v2215
    %v2232 = vadd.f32 %v2224, %v2216
    %v2233 = vadd.f32 %v2225, %v2217
    %v2234 = vadd.f32 %v2226, %v2218
    %v2235 = vtanh.pop %v2227
    %v2236 = vtanh.pop %v2228
    %v2237 = vtanh.pop %v2229
    %v2238 = vtanh.pop %v2230
    %v2239 = vxor.u32 %v2231, 2147483648
    %v2240 = vxor.u32 %v2232, 2147483648
    %v2241 = vxor.u32 %v2233, 2147483648
    %v2242 = vxor.u32 %v2234, 2147483648
    %v2243 = vmul.f32 %v2239, 1.442695
    %v2244 = vpow.pop %v2243
    %v2245 = vmul.f32 %v2240, 1.442695
    %v2246 = vpow.pop %v2245
    %v2247 = vmul.f32 %v2241, 1.442695
    %v2248 = vpow.pop %v2247
    %v2249 = vmul.f32 %v2242, 1.442695
    %v2250 = vpow.pop %v2249
    %v2251 = vadd.f32 %v2244, 1.0
    %v2252 = vadd.f32 %v2246, 1.0
    %v2253 = vadd.f32 %v2248, 1.0
    %v2254 = vadd.f32 %v2250, 1.0
    %v2255 = vrcp.pop %v2251
    %v2256 = vmul.f32 1.0, %v2255
    %v2257 = vrcp.pop %v2252
    %v2258 = vmul.f32 1.0, %v2257
    %v2259 = vrcp.pop %v2253
    %v2260 = vmul.f32 1.0, %v2259
    %v2261 = vrcp.pop %v2254
    %v2262 = vmul.f32 1.0, %v2261
    %v2263 = vmul.f32 %v2235, %v2256
    %v2264 = vmul.f32 %v2236, %v2258
    %v2265 = vmul.f32 %v2237, %v2260
    %v2266 = vmul.f32 %v2238, %v2262
    %v2267 = vadd.f32 %v2263, %v1439
    %v2268 = vadd.f32 %v2264, %v1444
    %v2269 = vadd.f32 %v2265, %v1449
    %v2270 = vadd.f32 %v2266, %v1454
    %v2271 = vld [vmem:[%s6] sm:$0xff]
    %v2272 = vld [vmem:[%s6 + $0x8] sm:$0xff]
    %v2273 = vld [vmem:[%s6 + $0x10] sm:$0xff]
    %v2274 = vld [vmem:[%s6 + $0x18] sm:$0xff]
    %v2275 = vld [vmem:[%s6 + $0x20] sm:$0xff]
    %v2276 = vld [vmem:[%s6 + $0x28] sm:$0xff]
    %v2277 = vld [vmem:[%s6 + $0x30] sm:$0xff]
    %v2278 = vld [vmem:[%s6 + $0x38] sm:$0xff]
    %v2279 = vld [vmem:[%s6 + $0x40] sm:$0xff]
    %v2280 = vld [vmem:[%s6 + $0x48] sm:$0xff]
    %v2281 = vld [vmem:[%s6 + $0x50] sm:$0xff]
    %v2282 = vld [vmem:[%s6 + $0x58] sm:$0xff]
    %vm2283 = vcmask 261120
    %v2285 = vsel %vm2283, %v2271, 0
    %v2288 = vsel %vm2283, %v2272, 0
    %v2291 = vsel %vm2283, %v2273, 0
    %v2294 = vsel %vm2283, %v2274, 0
    %v2297 = vsel %vm2283, %v2275, 0
    %v2300 = vsel %vm2283, %v2276, 0
    %v2303 = vsel %vm2283, %v2277, 0
    %v2306 = vsel %vm2283, %v2278, 0
    %v2309 = vsel %vm2283, %v2279, 0
    %v2312 = vsel %vm2283, %v2280, 0
    %v2315 = vsel %vm2283, %v2281, 0
    %v2318 = vsel %vm2283, %v2282, 0
    %2320 = vmatprep.subr.mxu0 0.0
    %2321 = vmatpush1.msra.mxu0 0.0
    %2322 = vmatprep.subr.mxu0 0.0
    %2323 = vmatpush1.msra.mxu0 0.0
    %2324 = vmatprep.subr.mxu0 0.0
    %2325 = vmatpush1.msra.mxu0 0.0
    %2326 = vmatprep.subr.mxu0 0.0
    %2327 = vmatpush1.msra.mxu0 0.0
    %2328 = vmatprep.subr.mxu0 0.0
    %2329 = vmatpush1.msra.mxu0 0.0
    %2330 = vmatprep.subr.mxu0 0.0
    %2331 = vmatpush1.msra.mxu0 0.0
    %2332 = vmatprep.subr.mxu0 0.0
    %2333 = vmatpush1.msra.mxu0 0.0
    %2334 = vmatprep.subr.mxu0 0.0
    %2335 = vmatpush1.msra.mxu0 0.0
    %2336 = vmatprep.subr.mxu0 0.0
    %2337 = vmatpush1.msra.mxu0 0.0
    %2338 = vmatprep.subr.mxu0 0.0
    %2339 = vmatpush1.msra.mxu0 0.0
    %2340 = vmatprep.subr.mxu0 0.0
    %2341 = vmatpush1.msra.mxu0 0.0
    %2342 = vmatprep.subr.mxu0 0.0
    %2343 = vmatpush1.msra.mxu0 0.0
    %2344 = vmatprep.subr.mxu0 0.0
    %2345 = vmatpush1.msra.mxu0 %v2270
    %2346 = vmatprep.subr.mxu0 0.0
    %2347 = vmatpush1.msra.mxu0 %v2269
    %2348 = vmatprep.subr.mxu0 0.0
    %2349 = vmatpush1.msra.mxu0 %v2268
    %2350 = vmatprep.subr.mxu0 0.0
    %2351 = vmatpush1.msra.mxu0 %v2267
    %2352 = vmatprep.subr.mxu0 0.0
    %2353 = vmatpush2.msra.mxu0 0.0
    %2354 = vmatprep.subr.mxu0 0.0
    %2355 = vmatpush2.msra.mxu0 0.0
    %2356 = vmatprep.subr.mxu0 0.0
    %2357 = vmatpush2.msra.mxu0 0.0
    %2358 = vmatprep.subr.mxu0 0.0
    %2359 = vmatpush2.msra.mxu0 0.0
    %2360 = vmatprep.subr.mxu0 0.0
    %2361 = vmatpush2.msra.mxu0 0.0
    %2362 = vmatprep.subr.mxu0 0.0
    %2363 = vmatpush2.msra.mxu0 0.0
    %2364 = vmatprep.subr.mxu0 0.0
    %2365 = vmatpush2.msra.mxu0 0.0
    %2366 = vmatprep.subr.mxu0 0.0
    %2367 = vmatpush2.msra.mxu0 0.0
    %2368 = vmatprep.subr.mxu0 0.0
    %2369 = vmatpush2.msra.mxu0 0.0
    %2370 = vmatprep.subr.mxu0 0.0
    %2371 = vmatpush2.msra.mxu0 0.0
    %2372 = vmatprep.subr.mxu0 0.0
    %2373 = vmatpush2.msra.mxu0 0.0
    %2374 = vmatprep.subr.mxu0 0.0
    %2375 = vmatpush2.msra.mxu0 0.0
    %2376 = vmatprep.subr.mxu0 0.0
    %2377 = vmatpush2.msra.mxu0 0.0
    %2378 = vmatprep.subr.mxu0 0.0
    %2379 = vmatpush2.msra.mxu0 0.0
    %2380 = vmatprep.subr.mxu0 0.0
    %2381 = vmatpush2.msra.mxu0 0.0
    %2382 = vmatprep.subr.mxu0 0.0
    %2383 = vmatpush2.msra.mxu0 0.0
    %2384 = vmatprep.mubr.f32.mxu0 0.0
    %2385 = vmatmul.mubr.f32.gmra.mxu0 %v2285
    %v2386 = vpop.f32.mrf.mxu0
    %v2387 = vadd.f32 0.0, %v2386
    %v2388 = vpop.f32.mrf.mxu0
    %2389 = vmatprep.mubr.f32.mxu0 0.0
    %2390 = vmatmul.mubr.f32.gmra.mxu0 %v2288
    %v2391 = vpop.f32.mrf.mxu0
    %v2392 = vadd.f32 0.0, %v2391
    %v2393 = vpop.f32.mrf.mxu0
    %2394 = vmatprep.mubr.f32.mxu0 0.0
    %2395 = vmatmul.mubr.f32.gmra.mxu0 %v2291
    %v2396 = vpop.f32.mrf.mxu0
    %v2397 = vadd.f32 0.0, %v2396
    %v2398 = vpop.f32.mrf.mxu0
    %2399 = vmatprep.mubr.f32.mxu0 0.0
    %2400 = vmatmul.mubr.f32.gmra.mxu0 %v2294
    %v2401 = vpop.f32.mrf.mxu0
    %v2402 = vadd.f32 0.0, %v2401
    %v2403 = vpop.f32.mrf.mxu0
    %2404 = vmatprep.mubr.f32.mxu0 0.0
    %2405 = vmatmul.mubr.f32.gmra.mxu0 %v2297
    %v2406 = vpop.f32.mrf.mxu0
    %v2407 = vadd.f32 0.0, %v2406
    %v2408 = vpop.f32.mrf.mxu0
    %2409 = vmatprep.mubr.f32.mxu0 0.0
    %2410 = vmatmul.mubr.f32.gmra.mxu0 %v2300
    %v2411 = vpop.f32.mrf.mxu0
    %v2412 = vadd.f32 0.0, %v2411
    %v2413 = vpop.f32.mrf.mxu0
    %2414 = vmatprep.mubr.f32.mxu0 0.0
    %2415 = vmatmul.mubr.f32.gmra.mxu0 %v2303
    %v2416 = vpop.f32.mrf.mxu0
    %v2417 = vadd.f32 0.0, %v2416
    %v2418 = vpop.f32.mrf.mxu0
    %2419 = vmatprep.mubr.f32.mxu0 0.0
    %2420 = vmatmul.mubr.f32.gmra.mxu0 %v2306
    %v2421 = vpop.f32.mrf.mxu0
    %v2422 = vadd.f32 0.0, %v2421
    %v2423 = vpop.f32.mrf.mxu0
    %2424 = vmatprep.mubr.f32.mxu0 0.0
    %2425 = vmatmul.mubr.f32.gmra.mxu0 %v2309
    %v2426 = vpop.f32.mrf.mxu0
    %v2427 = vadd.f32 0.0, %v2426
    %v2428 = vpop.f32.mrf.mxu0
    %2429 = vmatprep.mubr.f32.mxu0 0.0
    %2430 = vmatmul.mubr.f32.gmra.mxu0 %v2312
    %v2431 = vpop.f32.mrf.mxu0
    %v2432 = vadd.f32 0.0, %v2431
    %v2433 = vpop.f32.mrf.mxu0
    %2434 = vmatprep.mubr.f32.mxu0 0.0
    %2435 = vmatmul.mubr.f32.gmra.mxu0 %v2315
    %v2436 = vpop.f32.mrf.mxu0
    %v2437 = vadd.f32 0.0, %v2436
    %v2438 = vpop.f32.mrf.mxu0
    %2439 = vmatprep.mubr.f32.mxu0 0.0
    %2440 = vmatmul.mubr.f32.gmra.mxu0 %v2318
    %v2441 = vpop.f32.mrf.mxu0
    %v2442 = vadd.f32 0.0, %v2441
    %v2443 = vpop.f32.mrf.mxu0
    %2444 = vdwg.mxu0
    %2445 = vadd.xlane.f32.xlu0 %v2387
    %v2446 = vpop.xlane.xlu0 %2445
    %2447 = vadd.xlane.f32.xlu0 %v2392
    %v2448 = vpop.xlane.xlu0 %2447
    %2449 = vadd.xlane.f32.xlu0 %v2397
    %v2450 = vpop.xlane.xlu0 %2449
    %2451 = vadd.xlane.f32.xlu0 %v2402
    %v2452 = vpop.xlane.xlu0 %2451
    %2453 = vadd.xlane.f32.xlu0 %v2407
    %v2454 = vpop.xlane.xlu0 %2453
    %2455 = vadd.xlane.f32.xlu0 %v2412
    %v2456 = vpop.xlane.xlu0 %2455
    %2457 = vadd.xlane.f32.xlu0 %v2417
    %v2458 = vpop.xlane.xlu0 %2457
    %2459 = vadd.xlane.f32.xlu0 %v2422
    %v2460 = vpop.xlane.xlu0 %2459
    %v2461 = vmul.f32 %v2387, %v2387
    %v2462 = vmul.f32 %v2392, %v2392
    %v2463 = vmul.f32 %v2397, %v2397
    %v2464 = vmul.f32 %v2402, %v2402
    %v2465 = vmul.f32 %v2407, %v2407
    %v2466 = vmul.f32 %v2412, %v2412
    %v2467 = vmul.f32 %v2417, %v2417
    %v2468 = vmul.f32 %v2422, %v2422
    %2469 = vadd.xlane.f32.xlu0 %v2461
    %v2470 = vpop.xlane.xlu0 %2469
    %2471 = vadd.xlane.f32.xlu0 %v2462
    %v2472 = vpop.xlane.xlu0 %2471
    %2473 = vadd.xlane.f32.xlu0 %v2463
    %v2474 = vpop.xlane.xlu0 %2473
    %2475 = vadd.xlane.f32.xlu0 %v2464
    %v2476 = vpop.xlane.xlu0 %2475
    %2477 = vadd.xlane.f32.xlu0 %v2465
    %v2478 = vpop.xlane.xlu0 %2477
    %2479 = vadd.xlane.f32.xlu0 %v2466
    %v2480 = vpop.xlane.xlu0 %2479
    %2481 = vadd.xlane.f32.xlu0 %v2467
    %v2482 = vpop.xlane.xlu0 %2481
    %2483 = vadd.xlane.f32.xlu0 %v2468
    %v2484 = vpop.xlane.xlu0 %2483
    %v2485 = vmul.f32 %v2446, 0.0078125
    %v2486 = vmul.f32 %v2448, 0.0078125
    %v2487 = vmul.f32 %v2450, 0.0078125
    %v2488 = vmul.f32 %v2452, 0.0078125
    %v2489 = vmul.f32 %v2454, 0.0078125
    %v2490 = vmul.f32 %v2456, 0.0078125
    %v2491 = vmul.f32 %v2458, 0.0078125
    %v2492 = vmul.f32 %v2460, 0.0078125
    %v2493 = vmul.f32 %v2470, 0.0078125
    %v2494 = vmul.f32 %v2472, 0.0078125
    %v2495 = vmul.f32 %v2474, 0.0078125
    %v2496 = vmul.f32 %v2476, 0.0078125
    %v2497 = vmul.f32 %v2478, 0.0078125
    %v2498 = vmul.f32 %v2480, 0.0078125
    %v2499 = vmul.f32 %v2482, 0.0078125
    %v2500 = vmul.f32 %v2484, 0.0078125
    %v2501 = vmul.f32 %v2485, %v2485
    %v2502 = vmul.f32 %v2486, %v2486
    %v2503 = vmul.f32 %v2487, %v2487
    %v2504 = vmul.f32 %v2488, %v2488
    %v2505 = vmul.f32 %v2489, %v2489
    %v2506 = vmul.f32 %v2490, %v2490
    %v2507 = vmul.f32 %v2491, %v2491
    %v2508 = vmul.f32 %v2492, %v2492
    %v2509 = vsub.f32 %v2493, %v2501
    %v2510 = vsub.f32 %v2494, %v2502
    %v2511 = vsub.f32 %v2495, %v2503
    %v2512 = vsub.f32 %v2496, %v2504
    %v2513 = vsub.f32 %v2497, %v2505
    %v2514 = vsub.f32 %v2498, %v2506
    %v2515 = vsub.f32 %v2499, %v2507
    %v2516 = vsub.f32 %v2500, %v2508
    %v2517 = vsub.f32 %v2387, %v2485
    %v2518 = vsub.f32 %v2392, %v2486
    %v2519 = vsub.f32 %v2397, %v2487
    %v2520 = vsub.f32 %v2402, %v2488
    %v2521 = vsub.f32 %v2407, %v2489
    %v2522 = vsub.f32 %v2412, %v2490
    %v2523 = vsub.f32 %v2417, %v2491
    %v2524 = vsub.f32 %v2422, %v2492
    %v2525 = vadd.f32 %v2509, 1e-05
    %v2526 = vadd.f32 %v2510, 1e-05
    %v2527 = vadd.f32 %v2511, 1e-05
    %v2528 = vadd.f32 %v2512, 1e-05
    %v2529 = vadd.f32 %v2513, 1e-05
    %v2530 = vadd.f32 %v2514, 1e-05
    %v2531 = vadd.f32 %v2515, 1e-05
    %v2532 = vadd.f32 %v2516, 1e-05
    %v2533 = vrsqrt.pop %v2525
    %v2534 = vrsqrt.pop %v2526
    %v2535 = vrsqrt.pop %v2527
    %v2536 = vrsqrt.pop %v2528
    %v2537 = vrsqrt.pop %v2529
    %v2538 = vrsqrt.pop %v2530
    %v2539 = vrsqrt.pop %v2531
    %v2540 = vrsqrt.pop %v2532
    %v2541 = vmul.f32 %v2517, %v2533
    %v2542 = vmul.f32 %v2518, %v2534
    %v2543 = vmul.f32 %v2519, %v2535
    %v2544 = vmul.f32 %v2520, %v2536
    %v2545 = vmul.f32 %v2521, %v2537
    %v2546 = vmul.f32 %v2522, %v2538
    %v2547 = vmul.f32 %v2523, %v2539
    %v2548 = vmul.f32 %v2524, %v2540
    %s2549 = scalar_lea.vmem %s2, 256
    %v2550 = vld [vmem:[%s2549] sm:$0xff]
    %v2551 = vld [vmem:[%s2549 + $0x8] sm:$0xff]
    %v2552 = vld [vmem:[%s2549 + $0x10] sm:$0xff]
    %v2553 = vld [vmem:[%s2549 + $0x18] sm:$0xff]
    %v2554 = vld [vmem:[%s2549 + $0x20] sm:$0xff]
    %v2555 = vld [vmem:[%s2549 + $0x28] sm:$0xff]
    %v2556 = vld [vmem:[%s2549 + $0x30] sm:$0xff]
    %v2557 = vld [vmem:[%s2549 + $0x38] sm:$0xff]
    %v2558 = vld [vmem:[%s2549 + $0x40] sm:$0xff]
    %v2559 = vld [vmem:[%s2549 + $0x48] sm:$0xff]
    %v2560 = vld [vmem:[%s2549 + $0x50] sm:$0xff]
    %v2561 = vld [vmem:[%s2549 + $0x58] sm:$0xff]
    %v2562 = vld [vmem:[%s2549 + $0x60] sm:$0xff]
    %v2563 = vld [vmem:[%s2549 + $0x68] sm:$0xff]
    %v2564 = vld [vmem:[%s2549 + $0x70] sm:$0xff]
    %v2565 = vld [vmem:[%s2549 + $0x78] sm:$0xff]
    %s2566 = scalar_lea.vmem %s3, 256
    %v2567 = vld [vmem:[%s2566] sm:$0xff]
    %v2568 = vld [vmem:[%s2566 + $0x8] sm:$0xff]
    %v2569 = vld [vmem:[%s2566 + $0x10] sm:$0xff]
    %v2570 = vld [vmem:[%s2566 + $0x18] sm:$0xff]
    %v2571 = vld [vmem:[%s2566 + $0x20] sm:$0xff]
    %v2572 = vld [vmem:[%s2566 + $0x28] sm:$0xff]
    %v2573 = vld [vmem:[%s2566 + $0x30] sm:$0xff]
    %v2574 = vld [vmem:[%s2566 + $0x38] sm:$0xff]
    %v2575 = vld [vmem:[%s2566 + $0x40] sm:$0xff]
    %v2576 = vld [vmem:[%s2566 + $0x48] sm:$0xff]
    %v2577 = vld [vmem:[%s2566 + $0x50] sm:$0xff]
    %v2578 = vld [vmem:[%s2566 + $0x58] sm:$0xff]
    %v2579 = vld [vmem:[%s2566 + $0x60] sm:$0xff]
    %v2580 = vld [vmem:[%s2566 + $0x68] sm:$0xff]
    %v2581 = vld [vmem:[%s2566 + $0x70] sm:$0xff]
    %v2582 = vld [vmem:[%s2566 + $0x78] sm:$0xff]
    %v2583 = vmul.f32 %v2550, %v536
    %v2584 = vmul.f32 %v2551, %v536
    %v2585 = vmul.f32 %v2552, %v536
    %v2586 = vmul.f32 %v2553, %v536
    %v2587 = vmul.f32 %v2554, %v536
    %v2588 = vmul.f32 %v2555, %v536
    %v2589 = vmul.f32 %v2556, %v536
    %v2590 = vmul.f32 %v2557, %v536
    %v2591 = vmul.f32 %v2558, %v536
    %v2592 = vmul.f32 %v2559, %v536
    %v2593 = vmul.f32 %v2560, %v536
    %v2594 = vmul.f32 %v2561, %v536
    %v2595 = vmul.f32 %v2562, %v536
    %v2596 = vmul.f32 %v2563, %v536
    %v2597 = vmul.f32 %v2564, %v536
    %v2598 = vmul.f32 %v2565, %v536
    %v2599 = vadd.f32 %v2567, %v2583
    %v2600 = vadd.f32 %v2568, %v2584
    %v2601 = vadd.f32 %v2569, %v2585
    %v2602 = vadd.f32 %v2570, %v2586
    %v2603 = vadd.f32 %v2571, %v2587
    %v2604 = vadd.f32 %v2572, %v2588
    %v2605 = vadd.f32 %v2573, %v2589
    %v2606 = vadd.f32 %v2574, %v2590
    %v2607 = vadd.f32 %v2575, %v2591
    %v2608 = vadd.f32 %v2576, %v2592
    %v2609 = vadd.f32 %v2577, %v2593
    %v2610 = vadd.f32 %v2578, %v2594
    %v2611 = vadd.f32 %v2579, %v2595
    %v2612 = vadd.f32 %v2580, %v2596
    %v2613 = vadd.f32 %v2581, %v2597
    %v2614 = vadd.f32 %v2582, %v2598
    %v2615 = vmul.f32 %v2550, %v570
    %v2616 = vmul.f32 %v2551, %v570
    %v2617 = vmul.f32 %v2552, %v570
    %v2618 = vmul.f32 %v2553, %v570
    %v2619 = vmul.f32 %v2554, %v570
    %v2620 = vmul.f32 %v2555, %v570
    %v2621 = vmul.f32 %v2556, %v570
    %v2622 = vmul.f32 %v2557, %v570
    %v2623 = vmul.f32 %v2558, %v570
    %v2624 = vmul.f32 %v2559, %v570
    %v2625 = vmul.f32 %v2560, %v570
    %v2626 = vmul.f32 %v2561, %v570
    %v2627 = vmul.f32 %v2562, %v570
    %v2628 = vmul.f32 %v2563, %v570
    %v2629 = vmul.f32 %v2564, %v570
    %v2630 = vmul.f32 %v2565, %v570
    %2647 = vrot.lane.b32.xlu0 %v2615, 127
    %v2648 = vpop.permute.xlu0 %2647
    %2649 = vrot.lane.b32.xlu0 %v2616, 127
    %v2650 = vpop.permute.xlu0 %2649
    %2651 = vrot.lane.b32.xlu0 %v2617, 127
    %v2652 = vpop.permute.xlu0 %2651
    %2653 = vrot.lane.b32.xlu0 %v2618, 127
    %v2654 = vpop.permute.xlu0 %2653
    %2655 = vrot.lane.b32.xlu0 %v2619, 127
    %v2656 = vpop.permute.xlu0 %2655
    %2657 = vrot.lane.b32.xlu0 %v2620, 127
    %v2658 = vpop.permute.xlu0 %2657
    %2659 = vrot.lane.b32.xlu0 %v2621, 127
    %v2660 = vpop.permute.xlu0 %2659
    %2661 = vrot.lane.b32.xlu0 %v2622, 127
    %v2662 = vpop.permute.xlu0 %2661
    %2663 = vrot.lane.b32.xlu0 %v2623, 127
    %v2664 = vpop.permute.xlu0 %2663
    %2665 = vrot.lane.b32.xlu0 %v2624, 127
    %v2666 = vpop.permute.xlu0 %2665
    %2667 = vrot.lane.b32.xlu0 %v2625, 127
    %v2668 = vpop.permute.xlu0 %2667
    %2669 = vrot.lane.b32.xlu0 %v2626, 127
    %v2670 = vpop.permute.xlu0 %2669
    %2671 = vrot.lane.b32.xlu0 %v2627, 127
    %v2672 = vpop.permute.xlu0 %2671
    %2673 = vrot.lane.b32.xlu0 %v2628, 127
    %v2674 = vpop.permute.xlu0 %2673
    %2675 = vrot.lane.b32.xlu0 %v2629, 127
    %v2676 = vpop.permute.xlu0 %2675
    %2677 = vrot.lane.b32.xlu0 %v2630, 127
    %v2678 = vpop.permute.xlu0 %2677
    %v2695 = vadd.f32 %v2599, %v2648
    %v2696 = vadd.f32 %v2600, %v2650
    %v2697 = vadd.f32 %v2601, %v2652
    %v2698 = vadd.f32 %v2602, %v2654
    %v2699 = vadd.f32 %v2603, %v2656
    %v2700 = vadd.f32 %v2604, %v2658
    %v2701 = vadd.f32 %v2605, %v2660
    %v2702 = vadd.f32 %v2606, %v2662
    %v2703 = vadd.f32 %v2607, %v2664
    %v2704 = vadd.f32 %v2608, %v2666
    %v2705 = vadd.f32 %v2609, %v2668
    %v2706 = vadd.f32 %v2610, %v2670
    %v2707 = vadd.f32 %v2611, %v2672
    %v2708 = vadd.f32 %v2612, %v2674
    %v2709 = vadd.f32 %v2613, %v2676
    %v2710 = vadd.f32 %v2614, %v2678
    %v2711 = vmul.f32 %v2550, %v668
    %v2712 = vmul.f32 %v2551, %v668
    %v2713 = vmul.f32 %v2552, %v668
    %v2714 = vmul.f32 %v2553, %v668
    %v2715 = vmul.f32 %v2554, %v668
    %v2716 = vmul.f32 %v2555, %v668
    %v2717 = vmul.f32 %v2556, %v668
    %v2718 = vmul.f32 %v2557, %v668
    %v2719 = vmul.f32 %v2558, %v668
    %v2720 = vmul.f32 %v2559, %v668
    %v2721 = vmul.f32 %v2560, %v668
    %v2722 = vmul.f32 %v2561, %v668
    %v2723 = vmul.f32 %v2562, %v668
    %v2724 = vmul.f32 %v2563, %v668
    %v2725 = vmul.f32 %v2564, %v668
    %v2726 = vmul.f32 %v2565, %v668
    %2743 = vrot.lane.b32.xlu0 %v2711, 126
    %v2744 = vpop.permute.xlu0 %2743
    %2745 = vrot.lane.b32.xlu0 %v2712, 126
    %v2746 = vpop.permute.xlu0 %2745
    %2747 = vrot.lane.b32.xlu0 %v2713, 126
    %v2748 = vpop.permute.xlu0 %2747
    %2749 = vrot.lane.b32.xlu0 %v2714, 126
    %v2750 = vpop.permute.xlu0 %2749
    %2751 = vrot.lane.b32.xlu0 %v2715, 126
    %v2752 = vpop.permute.xlu0 %2751
    %2753 = vrot.lane.b32.xlu0 %v2716, 126
    %v2754 = vpop.permute.xlu0 %2753
    %2755 = vrot.lane.b32.xlu0 %v2717, 126
    %v2756 = vpop.permute.xlu0 %2755
    %2757 = vrot.lane.b32.xlu0 %v2718, 126
    %v2758 = vpop.permute.xlu0 %2757
    %2759 = vrot.lane.b32.xlu0 %v2719, 126
    %v2760 = vpop.permute.xlu0 %2759
    %2761 = vrot.lane.b32.xlu0 %v2720, 126
    %v2762 = vpop.permute.xlu0 %2761
    %2763 = vrot.lane.b32.xlu0 %v2721, 126
    %v2764 = vpop.permute.xlu0 %2763
    %2765 = vrot.lane.b32.xlu0 %v2722, 126
    %v2766 = vpop.permute.xlu0 %2765
    %2767 = vrot.lane.b32.xlu0 %v2723, 126
    %v2768 = vpop.permute.xlu0 %2767
    %2769 = vrot.lane.b32.xlu0 %v2724, 126
    %v2770 = vpop.permute.xlu0 %2769
    %2771 = vrot.lane.b32.xlu0 %v2725, 126
    %v2772 = vpop.permute.xlu0 %2771
    %2773 = vrot.lane.b32.xlu0 %v2726, 126
    %v2774 = vpop.permute.xlu0 %2773
    %v2791 = vadd.f32 %v2695, %v2744
    %v2792 = vadd.f32 %v2696, %v2746
    %v2793 = vadd.f32 %v2697, %v2748
    %v2794 = vadd.f32 %v2698, %v2750
    %v2795 = vadd.f32 %v2699, %v2752
    %v2796 = vadd.f32 %v2700, %v2754
    %v2797 = vadd.f32 %v2701, %v2756
    %v2798 = vadd.f32 %v2702, %v2758
    %v2799 = vadd.f32 %v2703, %v2760
    %v2800 = vadd.f32 %v2704, %v2762
    %v2801 = vadd.f32 %v2705, %v2764
    %v2802 = vadd.f32 %v2706, %v2766
    %v2803 = vadd.f32 %v2707, %v2768
    %v2804 = vadd.f32 %v2708, %v2770
    %v2805 = vadd.f32 %v2709, %v2772
    %v2806 = vadd.f32 %v2710, %v2774
    %2808 = vset.pattern.permute.xlu0 0
    %2809 = vperm.xlu0 %2808, %v2791
    %v2810 = vpop.permute.xlu0 %2809
    %2813 = vset.pattern.permute.xlu0 0
    %2814 = vperm.xlu0 %2813, %v2792
    %v2815 = vpop.permute.xlu0 %2814
    %2818 = vset.pattern.permute.xlu0 0
    %2819 = vperm.xlu0 %2818, %v2793
    %v2820 = vpop.permute.xlu0 %2819
    %2823 = vset.pattern.permute.xlu0 0
    %2824 = vperm.xlu0 %2823, %v2794
    %v2825 = vpop.permute.xlu0 %2824
    %2828 = vset.pattern.permute.xlu0 0
    %2829 = vperm.xlu0 %2828, %v2795
    %v2830 = vpop.permute.xlu0 %2829
    %2833 = vset.pattern.permute.xlu0 0
    %2834 = vperm.xlu0 %2833, %v2796
    %v2835 = vpop.permute.xlu0 %2834
    %2838 = vset.pattern.permute.xlu0 0
    %2839 = vperm.xlu0 %2838, %v2797
    %v2840 = vpop.permute.xlu0 %2839
    %2843 = vset.pattern.permute.xlu0 0
    %2844 = vperm.xlu0 %2843, %v2798
    %v2845 = vpop.permute.xlu0 %2844
    %2848 = vset.pattern.permute.xlu0 0
    %2849 = vperm.xlu0 %2848, %v2799
    %v2850 = vpop.permute.xlu0 %2849
    %2853 = vset.pattern.permute.xlu0 0
    %2854 = vperm.xlu0 %2853, %v2800
    %v2855 = vpop.permute.xlu0 %2854
    %2858 = vset.pattern.permute.xlu0 0
    %2859 = vperm.xlu0 %2858, %v2801
    %v2860 = vpop.permute.xlu0 %2859
    %2863 = vset.pattern.permute.xlu0 0
    %2864 = vperm.xlu0 %2863, %v2802
    %v2865 = vpop.permute.xlu0 %2864
    %2868 = vset.pattern.permute.xlu0 0
    %2869 = vperm.xlu0 %2868, %v2803
    %v2870 = vpop.permute.xlu0 %2869
    %2873 = vset.pattern.permute.xlu0 0
    %2874 = vperm.xlu0 %2873, %v2804
    %v2875 = vpop.permute.xlu0 %2874
    %2878 = vset.pattern.permute.xlu0 0
    %2879 = vperm.xlu0 %2878, %v2805
    %v2880 = vpop.permute.xlu0 %2879
    %2883 = vset.pattern.permute.xlu0 0
    %2884 = vperm.xlu0 %2883, %v2806
    %v2885 = vpop.permute.xlu0 %2884
    %v2887 = vmul.f32 %v2550, %v846
    %v2888 = vmul.f32 %v2551, %v846
    %v2889 = vmul.f32 %v2552, %v846
    %v2890 = vmul.f32 %v2553, %v846
    %v2891 = vmul.f32 %v2554, %v846
    %v2892 = vmul.f32 %v2555, %v846
    %v2893 = vmul.f32 %v2556, %v846
    %v2894 = vmul.f32 %v2557, %v846
    %v2895 = vmul.f32 %v2558, %v846
    %v2896 = vmul.f32 %v2559, %v846
    %v2897 = vmul.f32 %v2560, %v846
    %v2898 = vmul.f32 %v2561, %v846
    %v2899 = vmul.f32 %v2562, %v846
    %v2900 = vmul.f32 %v2563, %v846
    %v2901 = vmul.f32 %v2564, %v846
    %v2902 = vmul.f32 %v2565, %v846
    %v2903 = vadd.f32 %v2567, %v2887
    %v2904 = vadd.f32 %v2568, %v2888
    %v2905 = vadd.f32 %v2569, %v2889
    %v2906 = vadd.f32 %v2570, %v2890
    %v2907 = vadd.f32 %v2571, %v2891
    %v2908 = vadd.f32 %v2572, %v2892
    %v2909 = vadd.f32 %v2573, %v2893
    %v2910 = vadd.f32 %v2574, %v2894
    %v2911 = vadd.f32 %v2575, %v2895
    %v2912 = vadd.f32 %v2576, %v2896
    %v2913 = vadd.f32 %v2577, %v2897
    %v2914 = vadd.f32 %v2578, %v2898
    %v2915 = vadd.f32 %v2579, %v2899
    %v2916 = vadd.f32 %v2580, %v2900
    %v2917 = vadd.f32 %v2581, %v2901
    %v2918 = vadd.f32 %v2582, %v2902
    %v2919 = vmul.f32 %v2550, %v880
    %v2920 = vmul.f32 %v2551, %v880
    %v2921 = vmul.f32 %v2552, %v880
    %v2922 = vmul.f32 %v2553, %v880
    %v2923 = vmul.f32 %v2554, %v880
    %v2924 = vmul.f32 %v2555, %v880
    %v2925 = vmul.f32 %v2556, %v880
    %v2926 = vmul.f32 %v2557, %v880
    %v2927 = vmul.f32 %v2558, %v880
    %v2928 = vmul.f32 %v2559, %v880
    %v2929 = vmul.f32 %v2560, %v880
    %v2930 = vmul.f32 %v2561, %v880
    %v2931 = vmul.f32 %v2562, %v880
    %v2932 = vmul.f32 %v2563, %v880
    %v2933 = vmul.f32 %v2564, %v880
    %v2934 = vmul.f32 %v2565, %v880
    %2951 = vrot.lane.b32.xlu0 %v2919, 127
    %v2952 = vpop.permute.xlu0 %2951
    %2953 = vrot.lane.b32.xlu0 %v2920, 127
    %v2954 = vpop.permute.xlu0 %2953
    %2955 = vrot.lane.b32.xlu0 %v2921, 127
    %v2956 = vpop.permute.xlu0 %2955
    %2957 = vrot.lane.b32.xlu0 %v2922, 127
    %v2958 = vpop.permute.xlu0 %2957
    %2959 = vrot.lane.b32.xlu0 %v2923, 127
    %v2960 = vpop.permute.xlu0 %2959
    %2961 = vrot.lane.b32.xlu0 %v2924, 127
    %v2962 = vpop.permute.xlu0 %2961
    %2963 = vrot.lane.b32.xlu0 %v2925, 127
    %v2964 = vpop.permute.xlu0 %2963
    %2965 = vrot.lane.b32.xlu0 %v2926, 127
    %v2966 = vpop.permute.xlu0 %2965
    %2967 = vrot.lane.b32.xlu0 %v2927, 127
    %v2968 = vpop.permute.xlu0 %2967
    %2969 = vrot.lane.b32.xlu0 %v2928, 127
    %v2970 = vpop.permute.xlu0 %2969
    %2971 = vrot.lane.b32.xlu0 %v2929, 127
    %v2972 = vpop.permute.xlu0 %2971
    %2973 = vrot.lane.b32.xlu0 %v2930, 127
    %v2974 = vpop.permute.xlu0 %2973
    %2975 = vrot.lane.b32.xlu0 %v2931, 127
    %v2976 = vpop.permute.xlu0 %2975
    %2977 = vrot.lane.b32.xlu0 %v2932, 127
    %v2978 = vpop.permute.xlu0 %2977
    %2979 = vrot.lane.b32.xlu0 %v2933, 127
    %v2980 = vpop.permute.xlu0 %2979
    %2981 = vrot.lane.b32.xlu0 %v2934, 127
    %v2982 = vpop.permute.xlu0 %2981
    %v2999 = vadd.f32 %v2903, %v2952
    %v3000 = vadd.f32 %v2904, %v2954
    %v3001 = vadd.f32 %v2905, %v2956
    %v3002 = vadd.f32 %v2906, %v2958
    %v3003 = vadd.f32 %v2907, %v2960
    %v3004 = vadd.f32 %v2908, %v2962
    %v3005 = vadd.f32 %v2909, %v2964
    %v3006 = vadd.f32 %v2910, %v2966
    %v3007 = vadd.f32 %v2911, %v2968
    %v3008 = vadd.f32 %v2912, %v2970
    %v3009 = vadd.f32 %v2913, %v2972
    %v3010 = vadd.f32 %v2914, %v2974
    %v3011 = vadd.f32 %v2915, %v2976
    %v3012 = vadd.f32 %v2916, %v2978
    %v3013 = vadd.f32 %v2917, %v2980
    %v3014 = vadd.f32 %v2918, %v2982
    %v3015 = vmul.f32 %v2550, %v978
    %v3016 = vmul.f32 %v2551, %v978
    %v3017 = vmul.f32 %v2552, %v978
    %v3018 = vmul.f32 %v2553, %v978
    %v3019 = vmul.f32 %v2554, %v978
    %v3020 = vmul.f32 %v2555, %v978
    %v3021 = vmul.f32 %v2556, %v978
    %v3022 = vmul.f32 %v2557, %v978
    %v3023 = vmul.f32 %v2558, %v978
    %v3024 = vmul.f32 %v2559, %v978
    %v3025 = vmul.f32 %v2560, %v978
    %v3026 = vmul.f32 %v2561, %v978
    %v3027 = vmul.f32 %v2562, %v978
    %v3028 = vmul.f32 %v2563, %v978
    %v3029 = vmul.f32 %v2564, %v978
    %v3030 = vmul.f32 %v2565, %v978
    %3047 = vrot.lane.b32.xlu0 %v3015, 126
    %v3048 = vpop.permute.xlu0 %3047
    %3049 = vrot.lane.b32.xlu0 %v3016, 126
    %v3050 = vpop.permute.xlu0 %3049
    %3051 = vrot.lane.b32.xlu0 %v3017, 126
    %v3052 = vpop.permute.xlu0 %3051
    %3053 = vrot.lane.b32.xlu0 %v3018, 126
    %v3054 = vpop.permute.xlu0 %3053
    %3055 = vrot.lane.b32.xlu0 %v3019, 126
    %v3056 = vpop.permute.xlu0 %3055
    %3057 = vrot.lane.b32.xlu0 %v3020, 126
    %v3058 = vpop.permute.xlu0 %3057
    %3059 = vrot.lane.b32.xlu0 %v3021, 126
    %v3060 = vpop.permute.xlu0 %3059
    %3061 = vrot.lane.b32.xlu0 %v3022, 126
    %v3062 = vpop.permute.xlu0 %3061
    %3063 = vrot.lane.b32.xlu0 %v3023, 126
    %v3064 = vpop.permute.xlu0 %3063
    %3065 = vrot.lane.b32.xlu0 %v3024, 126
    %v3066 = vpop.permute.xlu0 %3065
    %3067 = vrot.lane.b32.xlu0 %v3025, 126
    %v3068 = vpop.permute.xlu0 %3067
    %3069 = vrot.lane.b32.xlu0 %v3026, 126
    %v3070 = vpop.permute.xlu0 %3069
    %3071 = vrot.lane.b32.xlu0 %v3027, 126
    %v3072 = vpop.permute.xlu0 %3071
    %3073 = vrot.lane.b32.xlu0 %v3028, 126
    %v3074 = vpop.permute.xlu0 %3073
    %3075 = vrot.lane.b32.xlu0 %v3029, 126
    %v3076 = vpop.permute.xlu0 %3075
    %3077 = vrot.lane.b32.xlu0 %v3030, 126
    %v3078 = vpop.permute.xlu0 %3077
    %v3095 = vadd.f32 %v2999, %v3048
    %v3096 = vadd.f32 %v3000, %v3050
    %v3097 = vadd.f32 %v3001, %v3052
    %v3098 = vadd.f32 %v3002, %v3054
    %v3099 = vadd.f32 %v3003, %v3056
    %v3100 = vadd.f32 %v3004, %v3058
    %v3101 = vadd.f32 %v3005, %v3060
    %v3102 = vadd.f32 %v3006, %v3062
    %v3103 = vadd.f32 %v3007, %v3064
    %v3104 = vadd.f32 %v3008, %v3066
    %v3105 = vadd.f32 %v3009, %v3068
    %v3106 = vadd.f32 %v3010, %v3070
    %v3107 = vadd.f32 %v3011, %v3072
    %v3108 = vadd.f32 %v3012, %v3074
    %v3109 = vadd.f32 %v3013, %v3076
    %v3110 = vadd.f32 %v3014, %v3078
    %3112 = vset.pattern.permute.xlu0 0
    %3113 = vperm.xlu0 %3112, %v3095
    %v3114 = vpop.permute.xlu0 %3113
    %3117 = vset.pattern.permute.xlu0 0
    %3118 = vperm.xlu0 %3117, %v3096
    %v3119 = vpop.permute.xlu0 %3118
    %3122 = vset.pattern.permute.xlu0 0
    %3123 = vperm.xlu0 %3122, %v3097
    %v3124 = vpop.permute.xlu0 %3123
    %3127 = vset.pattern.permute.xlu0 0
    %3128 = vperm.xlu0 %3127, %v3098
    %v3129 = vpop.permute.xlu0 %3128
    %3132 = vset.pattern.permute.xlu0 0
    %3133 = vperm.xlu0 %3132, %v3099
    %v3134 = vpop.permute.xlu0 %3133
    %3137 = vset.pattern.permute.xlu0 0
    %3138 = vperm.xlu0 %3137, %v3100
    %v3139 = vpop.permute.xlu0 %3138
    %3142 = vset.pattern.permute.xlu0 0
    %3143 = vperm.xlu0 %3142, %v3101
    %v3144 = vpop.permute.xlu0 %3143
    %3147 = vset.pattern.permute.xlu0 0
    %3148 = vperm.xlu0 %3147, %v3102
    %v3149 = vpop.permute.xlu0 %3148
    %3152 = vset.pattern.permute.xlu0 0
    %3153 = vperm.xlu0 %3152, %v3103
    %v3154 = vpop.permute.xlu0 %3153
    %3157 = vset.pattern.permute.xlu0 0
    %3158 = vperm.xlu0 %3157, %v3104
    %v3159 = vpop.permute.xlu0 %3158
    %3162 = vset.pattern.permute.xlu0 0
    %3163 = vperm.xlu0 %3162, %v3105
    %v3164 = vpop.permute.xlu0 %3163
    %3167 = vset.pattern.permute.xlu0 0
    %3168 = vperm.xlu0 %3167, %v3106
    %v3169 = vpop.permute.xlu0 %3168
    %3172 = vset.pattern.permute.xlu0 0
    %3173 = vperm.xlu0 %3172, %v3107
    %v3174 = vpop.permute.xlu0 %3173
    %3177 = vset.pattern.permute.xlu0 0
    %3178 = vperm.xlu0 %3177, %v3108
    %v3179 = vpop.permute.xlu0 %3178
    %3182 = vset.pattern.permute.xlu0 0
    %3183 = vperm.xlu0 %3182, %v3109
    %v3184 = vpop.permute.xlu0 %3183
    %3187 = vset.pattern.permute.xlu0 0
    %3188 = vperm.xlu0 %3187, %v3110
    %v3189 = vpop.permute.xlu0 %3188
    %v3191 = vsel %vm1155, %v2810, %v3114
    %v3192 = vsel %vm1155, %v2815, %v3119
    %v3193 = vsel %vm1155, %v2820, %v3124
    %v3194 = vsel %vm1155, %v2825, %v3129
    %v3195 = vsel %vm1155, %v2830, %v3134
    %v3196 = vsel %vm1155, %v2835, %v3139
    %v3197 = vsel %vm1155, %v2840, %v3144
    %v3198 = vsel %vm1155, %v2845, %v3149
    %v3199 = vsel %vm1155, %v2850, %v3154
    %v3200 = vsel %vm1155, %v2855, %v3159
    %v3201 = vsel %vm1155, %v2860, %v3164
    %v3202 = vsel %vm1155, %v2865, %v3169
    %v3203 = vsel %vm1155, %v2870, %v3174
    %v3204 = vsel %vm1155, %v2875, %v3179
    %v3205 = vsel %vm1155, %v2880, %v3184
    %v3206 = vsel %vm1155, %v2885, %v3189
    %v3207 = vmul.f32 %v2541, %v3191
    %v3208 = vmul.f32 %v2542, %v3192
    %v3209 = vmul.f32 %v2543, %v3193
    %v3210 = vmul.f32 %v2544, %v3194
    %v3211 = vmul.f32 %v2545, %v3195
    %v3212 = vmul.f32 %v2546, %v3196
    %v3213 = vmul.f32 %v2547, %v3197
    %v3214 = vmul.f32 %v2548, %v3198
    %v3215 = vadd.f32 %v3207, %v3199
    %v3216 = vadd.f32 %v3208, %v3200
    %v3217 = vadd.f32 %v3209, %v3201
    %v3218 = vadd.f32 %v3210, %v3202
    %v3219 = vadd.f32 %v3211, %v3203
    %v3220 = vadd.f32 %v3212, %v3204
    %v3221 = vadd.f32 %v3213, %v3205
    %v3222 = vadd.f32 %v3214, %v3206
    %v3223 = vtanh.pop %v3215
    %v3224 = vtanh.pop %v3216
    %v3225 = vtanh.pop %v3217
    %v3226 = vtanh.pop %v3218
    %v3227 = vxor.u32 %v3219, 2147483648
    %v3228 = vxor.u32 %v3220, 2147483648
    %v3229 = vxor.u32 %v3221, 2147483648
    %v3230 = vxor.u32 %v3222, 2147483648
    %v3231 = vmul.f32 %v3227, 1.442695
    %v3232 = vpow.pop %v3231
    %v3233 = vmul.f32 %v3228, 1.442695
    %v3234 = vpow.pop %v3233
    %v3235 = vmul.f32 %v3229, 1.442695
    %v3236 = vpow.pop %v3235
    %v3237 = vmul.f32 %v3230, 1.442695
    %v3238 = vpow.pop %v3237
    %v3239 = vadd.f32 %v3232, 1.0
    %v3240 = vadd.f32 %v3234, 1.0
    %v3241 = vadd.f32 %v3236, 1.0
    %v3242 = vadd.f32 %v3238, 1.0
    %v3243 = vrcp.pop %v3239
    %v3244 = vmul.f32 1.0, %v3243
    %v3245 = vrcp.pop %v3240
    %v3246 = vmul.f32 1.0, %v3245
    %v3247 = vrcp.pop %v3241
    %v3248 = vmul.f32 1.0, %v3247
    %v3249 = vrcp.pop %v3242
    %v3250 = vmul.f32 1.0, %v3249
    %v3251 = vmul.f32 %v3223, %v3244
    %v3252 = vmul.f32 %v3224, %v3246
    %v3253 = vmul.f32 %v3225, %v3248
    %v3254 = vmul.f32 %v3226, %v3250
    %v3255 = vadd.f32 %v3251, %v2427
    %v3256 = vadd.f32 %v3252, %v2432
    %v3257 = vadd.f32 %v3253, %v2437
    %v3258 = vadd.f32 %v3254, %v2442
    %v3259 = vld [vmem:[%s7] sm:$0xff]
    %v3260 = vld [vmem:[%s7 + $0x8] sm:$0xff]
    %v3261 = vld [vmem:[%s7 + $0x10] sm:$0xff]
    %v3262 = vld [vmem:[%s7 + $0x18] sm:$0xff]
    %v3263 = vld [vmem:[%s7 + $0x20] sm:$0xff]
    %v3264 = vld [vmem:[%s7 + $0x28] sm:$0xff]
    %v3265 = vld [vmem:[%s7 + $0x30] sm:$0xff]
    %v3266 = vld [vmem:[%s7 + $0x38] sm:$0xff]
    %v3267 = vld [vmem:[%s7 + $0x40] sm:$0xff]
    %v3268 = vld [vmem:[%s7 + $0x48] sm:$0xff]
    %v3269 = vld [vmem:[%s7 + $0x50] sm:$0xff]
    %v3270 = vld [vmem:[%s7 + $0x58] sm:$0xff]
    %v3272 = vsel %vm2283, %v3259, 0
    %v3275 = vsel %vm2283, %v3260, 0
    %v3278 = vsel %vm2283, %v3261, 0
    %v3281 = vsel %vm2283, %v3262, 0
    %v3284 = vsel %vm2283, %v3263, 0
    %v3287 = vsel %vm2283, %v3264, 0
    %v3290 = vsel %vm2283, %v3265, 0
    %v3293 = vsel %vm2283, %v3266, 0
    %v3296 = vsel %vm2283, %v3267, 0
    %v3299 = vsel %vm2283, %v3268, 0
    %v3302 = vsel %vm2283, %v3269, 0
    %v3305 = vsel %vm2283, %v3270, 0
    %3307 = vmatprep.subr.mxu0 0.0
    %3308 = vmatpush1.msra.mxu0 0.0
    %3309 = vmatprep.subr.mxu0 0.0
    %3310 = vmatpush1.msra.mxu0 0.0
    %3311 = vmatprep.subr.mxu0 0.0
    %3312 = vmatpush1.msra.mxu0 0.0
    %3313 = vmatprep.subr.mxu0 0.0
    %3314 = vmatpush1.msra.mxu0 0.0
    %3315 = vmatprep.subr.mxu0 0.0
    %3316 = vmatpush1.msra.mxu0 0.0
    %3317 = vmatprep.subr.mxu0 0.0
    %3318 = vmatpush1.msra.mxu0 0.0
    %3319 = vmatprep.subr.mxu0 0.0
    %3320 = vmatpush1.msra.mxu0 0.0
    %3321 = vmatprep.subr.mxu0 0.0
    %3322 = vmatpush1.msra.mxu0 0.0
    %3323 = vmatprep.subr.mxu0 0.0
    %3324 = vmatpush1.msra.mxu0 0.0
    %3325 = vmatprep.subr.mxu0 0.0
    %3326 = vmatpush1.msra.mxu0 0.0
    %3327 = vmatprep.subr.mxu0 0.0
    %3328 = vmatpush1.msra.mxu0 0.0
    %3329 = vmatprep.subr.mxu0 0.0
    %3330 = vmatpush1.msra.mxu0 0.0
    %3331 = vmatprep.subr.mxu0 0.0
    %3332 = vmatpush1.msra.mxu0 %v3258
    %3333 = vmatprep.subr.mxu0 0.0
    %3334 = vmatpush1.msra.mxu0 %v3257
    %3335 = vmatprep.subr.mxu0 0.0
    %3336 = vmatpush1.msra.mxu0 %v3256
    %3337 = vmatprep.subr.mxu0 0.0
    %3338 = vmatpush1.msra.mxu0 %v3255
    %3339 = vmatprep.subr.mxu0 0.0
    %3340 = vmatpush2.msra.mxu0 0.0
    %3341 = vmatprep.subr.mxu0 0.0
    %3342 = vmatpush2.msra.mxu0 0.0
    %3343 = vmatprep.subr.mxu0 0.0
    %3344 = vmatpush2.msra.mxu0 0.0
    %3345 = vmatprep.subr.mxu0 0.0
    %3346 = vmatpush2.msra.mxu0 0.0
    %3347 = vmatprep.subr.mxu0 0.0
    %3348 = vmatpush2.msra.mxu0 0.0
    %3349 = vmatprep.subr.mxu0 0.0
    %3350 = vmatpush2.msra.mxu0 0.0
    %3351 = vmatprep.subr.mxu0 0.0
    %3352 = vmatpush2.msra.mxu0 0.0
    %3353 = vmatprep.subr.mxu0 0.0
    %3354 = vmatpush2.msra.mxu0 0.0
    %3355 = vmatprep.subr.mxu0 0.0
    %3356 = vmatpush2.msra.mxu0 0.0
    %3357 = vmatprep.subr.mxu0 0.0
    %3358 = vmatpush2.msra.mxu0 0.0
    %3359 = vmatprep.subr.mxu0 0.0
    %3360 = vmatpush2.msra.mxu0 0.0
    %3361 = vmatprep.subr.mxu0 0.0
    %3362 = vmatpush2.msra.mxu0 0.0
    %3363 = vmatprep.subr.mxu0 0.0
    %3364 = vmatpush2.msra.mxu0 0.0
    %3365 = vmatprep.subr.mxu0 0.0
    %3366 = vmatpush2.msra.mxu0 0.0
    %3367 = vmatprep.subr.mxu0 0.0
    %3368 = vmatpush2.msra.mxu0 0.0
    %3369 = vmatprep.subr.mxu0 0.0
    %3370 = vmatpush2.msra.mxu0 0.0
    %3371 = vmatprep.mubr.f32.mxu0 0.0
    %3372 = vmatmul.mubr.f32.gmra.mxu0 %v3272
    %v3373 = vpop.f32.mrf.mxu0
    %v3374 = vadd.f32 0.0, %v3373
    %v3375 = vpop.f32.mrf.mxu0
    %3376 = vmatprep.mubr.f32.mxu0 0.0
    %3377 = vmatmul.mubr.f32.gmra.mxu0 %v3275
    %v3378 = vpop.f32.mrf.mxu0
    %v3379 = vadd.f32 0.0, %v3378
    %v3380 = vpop.f32.mrf.mxu0
    %3381 = vmatprep.mubr.f32.mxu0 0.0
    %3382 = vmatmul.mubr.f32.gmra.mxu0 %v3278
    %v3383 = vpop.f32.mrf.mxu0
    %v3384 = vadd.f32 0.0, %v3383
    %v3385 = vpop.f32.mrf.mxu0
    %3386 = vmatprep.mubr.f32.mxu0 0.0
    %3387 = vmatmul.mubr.f32.gmra.mxu0 %v3281
    %v3388 = vpop.f32.mrf.mxu0
    %v3389 = vadd.f32 0.0, %v3388
    %v3390 = vpop.f32.mrf.mxu0
    %3391 = vmatprep.mubr.f32.mxu0 0.0
    %3392 = vmatmul.mubr.f32.gmra.mxu0 %v3284
    %v3393 = vpop.f32.mrf.mxu0
    %v3394 = vadd.f32 0.0, %v3393
    %v3395 = vpop.f32.mrf.mxu0
    %3396 = vmatprep.mubr.f32.mxu0 0.0
    %3397 = vmatmul.mubr.f32.gmra.mxu0 %v3287
    %v3398 = vpop.f32.mrf.mxu0
    %v3399 = vadd.f32 0.0, %v3398
    %v3400 = vpop.f32.mrf.mxu0
    %3401 = vmatprep.mubr.f32.mxu0 0.0
    %3402 = vmatmul.mubr.f32.gmra.mxu0 %v3290
    %v3403 = vpop.f32.mrf.mxu0
    %v3404 = vadd.f32 0.0, %v3403
    %v3405 = vpop.f32.mrf.mxu0
    %3406 = vmatprep.mubr.f32.mxu0 0.0
    %3407 = vmatmul.mubr.f32.gmra.mxu0 %v3293
    %v3408 = vpop.f32.mrf.mxu0
    %v3409 = vadd.f32 0.0, %v3408
    %v3410 = vpop.f32.mrf.mxu0
    %3411 = vmatprep.mubr.f32.mxu0 0.0
    %3412 = vmatmul.mubr.f32.gmra.mxu0 %v3296
    %v3413 = vpop.f32.mrf.mxu0
    %v3414 = vadd.f32 0.0, %v3413
    %v3415 = vpop.f32.mrf.mxu0
    %3416 = vmatprep.mubr.f32.mxu0 0.0
    %3417 = vmatmul.mubr.f32.gmra.mxu0 %v3299
    %v3418 = vpop.f32.mrf.mxu0
    %v3419 = vadd.f32 0.0, %v3418
    %v3420 = vpop.f32.mrf.mxu0
    %3421 = vmatprep.mubr.f32.mxu0 0.0
    %3422 = vmatmul.mubr.f32.gmra.mxu0 %v3302
    %v3423 = vpop.f32.mrf.mxu0
    %v3424 = vadd.f32 0.0, %v3423
    %v3425 = vpop.f32.mrf.mxu0
    %3426 = vmatprep.mubr.f32.mxu0 0.0
    %3427 = vmatmul.mubr.f32.gmra.mxu0 %v3305
    %v3428 = vpop.f32.mrf.mxu0
    %v3429 = vadd.f32 0.0, %v3428
    %v3430 = vpop.f32.mrf.mxu0
    %3431 = vdwg.mxu0
    %3432 = vadd.xlane.f32.xlu0 %v3374
    %v3433 = vpop.xlane.xlu0 %3432
    %3434 = vadd.xlane.f32.xlu0 %v3379
    %v3435 = vpop.xlane.xlu0 %3434
    %3436 = vadd.xlane.f32.xlu0 %v3384
    %v3437 = vpop.xlane.xlu0 %3436
    %3438 = vadd.xlane.f32.xlu0 %v3389
    %v3439 = vpop.xlane.xlu0 %3438
    %3440 = vadd.xlane.f32.xlu0 %v3394
    %v3441 = vpop.xlane.xlu0 %3440
    %3442 = vadd.xlane.f32.xlu0 %v3399
    %v3443 = vpop.xlane.xlu0 %3442
    %3444 = vadd.xlane.f32.xlu0 %v3404
    %v3445 = vpop.xlane.xlu0 %3444
    %3446 = vadd.xlane.f32.xlu0 %v3409
    %v3447 = vpop.xlane.xlu0 %3446
    %v3448 = vmul.f32 %v3374, %v3374
    %v3449 = vmul.f32 %v3379, %v3379
    %v3450 = vmul.f32 %v3384, %v3384
    %v3451 = vmul.f32 %v3389, %v3389
    %v3452 = vmul.f32 %v3394, %v3394
    %v3453 = vmul.f32 %v3399, %v3399
    %v3454 = vmul.f32 %v3404, %v3404
    %v3455 = vmul.f32 %v3409, %v3409
    %3456 = vadd.xlane.f32.xlu0 %v3448
    %v3457 = vpop.xlane.xlu0 %3456
    %3458 = vadd.xlane.f32.xlu0 %v3449
    %v3459 = vpop.xlane.xlu0 %3458
    %3460 = vadd.xlane.f32.xlu0 %v3450
    %v3461 = vpop.xlane.xlu0 %3460
    %3462 = vadd.xlane.f32.xlu0 %v3451
    %v3463 = vpop.xlane.xlu0 %3462
    %3464 = vadd.xlane.f32.xlu0 %v3452
    %v3465 = vpop.xlane.xlu0 %3464
    %3466 = vadd.xlane.f32.xlu0 %v3453
    %v3467 = vpop.xlane.xlu0 %3466
    %3468 = vadd.xlane.f32.xlu0 %v3454
    %v3469 = vpop.xlane.xlu0 %3468
    %3470 = vadd.xlane.f32.xlu0 %v3455
    %v3471 = vpop.xlane.xlu0 %3470
    %v3472 = vmul.f32 %v3433, 0.0078125
    %v3473 = vmul.f32 %v3435, 0.0078125
    %v3474 = vmul.f32 %v3437, 0.0078125
    %v3475 = vmul.f32 %v3439, 0.0078125
    %v3476 = vmul.f32 %v3441, 0.0078125
    %v3477 = vmul.f32 %v3443, 0.0078125
    %v3478 = vmul.f32 %v3445, 0.0078125
    %v3479 = vmul.f32 %v3447, 0.0078125
    %v3480 = vmul.f32 %v3457, 0.0078125
    %v3481 = vmul.f32 %v3459, 0.0078125
    %v3482 = vmul.f32 %v3461, 0.0078125
    %v3483 = vmul.f32 %v3463, 0.0078125
    %v3484 = vmul.f32 %v3465, 0.0078125
    %v3485 = vmul.f32 %v3467, 0.0078125
    %v3486 = vmul.f32 %v3469, 0.0078125
    %v3487 = vmul.f32 %v3471, 0.0078125
    %v3488 = vmul.f32 %v3472, %v3472
    %v3489 = vmul.f32 %v3473, %v3473
    %v3490 = vmul.f32 %v3474, %v3474
    %v3491 = vmul.f32 %v3475, %v3475
    %v3492 = vmul.f32 %v3476, %v3476
    %v3493 = vmul.f32 %v3477, %v3477
    %v3494 = vmul.f32 %v3478, %v3478
    %v3495 = vmul.f32 %v3479, %v3479
    %v3496 = vsub.f32 %v3480, %v3488
    %v3497 = vsub.f32 %v3481, %v3489
    %v3498 = vsub.f32 %v3482, %v3490
    %v3499 = vsub.f32 %v3483, %v3491
    %v3500 = vsub.f32 %v3484, %v3492
    %v3501 = vsub.f32 %v3485, %v3493
    %v3502 = vsub.f32 %v3486, %v3494
    %v3503 = vsub.f32 %v3487, %v3495
    %v3504 = vsub.f32 %v3374, %v3472
    %v3505 = vsub.f32 %v3379, %v3473
    %v3506 = vsub.f32 %v3384, %v3474
    %v3507 = vsub.f32 %v3389, %v3475
    %v3508 = vsub.f32 %v3394, %v3476
    %v3509 = vsub.f32 %v3399, %v3477
    %v3510 = vsub.f32 %v3404, %v3478
    %v3511 = vsub.f32 %v3409, %v3479
    %v3512 = vadd.f32 %v3496, 1e-05
    %v3513 = vadd.f32 %v3497, 1e-05
    %v3514 = vadd.f32 %v3498, 1e-05
    %v3515 = vadd.f32 %v3499, 1e-05
    %v3516 = vadd.f32 %v3500, 1e-05
    %v3517 = vadd.f32 %v3501, 1e-05
    %v3518 = vadd.f32 %v3502, 1e-05
    %v3519 = vadd.f32 %v3503, 1e-05
    %v3520 = vrsqrt.pop %v3512
    %v3521 = vrsqrt.pop %v3513
    %v3522 = vrsqrt.pop %v3514
    %v3523 = vrsqrt.pop %v3515
    %v3524 = vrsqrt.pop %v3516
    %v3525 = vrsqrt.pop %v3517
    %v3526 = vrsqrt.pop %v3518
    %v3527 = vrsqrt.pop %v3519
    %v3528 = vmul.f32 %v3504, %v3520
    %v3529 = vmul.f32 %v3505, %v3521
    %v3530 = vmul.f32 %v3506, %v3522
    %v3531 = vmul.f32 %v3507, %v3523
    %v3532 = vmul.f32 %v3508, %v3524
    %v3533 = vmul.f32 %v3509, %v3525
    %v3534 = vmul.f32 %v3510, %v3526
    %v3535 = vmul.f32 %v3511, %v3527
    %s3536 = scalar_lea.vmem %s2, 384
    %v3537 = vld [vmem:[%s3536] sm:$0xff]
    %v3538 = vld [vmem:[%s3536 + $0x8] sm:$0xff]
    %v3539 = vld [vmem:[%s3536 + $0x10] sm:$0xff]
    %v3540 = vld [vmem:[%s3536 + $0x18] sm:$0xff]
    %v3541 = vld [vmem:[%s3536 + $0x20] sm:$0xff]
    %v3542 = vld [vmem:[%s3536 + $0x28] sm:$0xff]
    %v3543 = vld [vmem:[%s3536 + $0x30] sm:$0xff]
    %v3544 = vld [vmem:[%s3536 + $0x38] sm:$0xff]
    %v3545 = vld [vmem:[%s3536 + $0x40] sm:$0xff]
    %v3546 = vld [vmem:[%s3536 + $0x48] sm:$0xff]
    %v3547 = vld [vmem:[%s3536 + $0x50] sm:$0xff]
    %v3548 = vld [vmem:[%s3536 + $0x58] sm:$0xff]
    %v3549 = vld [vmem:[%s3536 + $0x60] sm:$0xff]
    %v3550 = vld [vmem:[%s3536 + $0x68] sm:$0xff]
    %v3551 = vld [vmem:[%s3536 + $0x70] sm:$0xff]
    %v3552 = vld [vmem:[%s3536 + $0x78] sm:$0xff]
    %s3553 = scalar_lea.vmem %s3, 384
    %v3554 = vld [vmem:[%s3553] sm:$0xff]
    %v3555 = vld [vmem:[%s3553 + $0x8] sm:$0xff]
    %v3556 = vld [vmem:[%s3553 + $0x10] sm:$0xff]
    %v3557 = vld [vmem:[%s3553 + $0x18] sm:$0xff]
    %v3558 = vld [vmem:[%s3553 + $0x20] sm:$0xff]
    %v3559 = vld [vmem:[%s3553 + $0x28] sm:$0xff]
    %v3560 = vld [vmem:[%s3553 + $0x30] sm:$0xff]
    %v3561 = vld [vmem:[%s3553 + $0x38] sm:$0xff]
    %v3562 = vld [vmem:[%s3553 + $0x40] sm:$0xff]
    %v3563 = vld [vmem:[%s3553 + $0x48] sm:$0xff]
    %v3564 = vld [vmem:[%s3553 + $0x50] sm:$0xff]
    %v3565 = vld [vmem:[%s3553 + $0x58] sm:$0xff]
    %v3566 = vld [vmem:[%s3553 + $0x60] sm:$0xff]
    %v3567 = vld [vmem:[%s3553 + $0x68] sm:$0xff]
    %v3568 = vld [vmem:[%s3553 + $0x70] sm:$0xff]
    %v3569 = vld [vmem:[%s3553 + $0x78] sm:$0xff]
    %v3570 = vmul.f32 %v3537, %v536
    %v3571 = vmul.f32 %v3538, %v536
    %v3572 = vmul.f32 %v3539, %v536
    %v3573 = vmul.f32 %v3540, %v536
    %v3574 = vmul.f32 %v3541, %v536
    %v3575 = vmul.f32 %v3542, %v536
    %v3576 = vmul.f32 %v3543, %v536
    %v3577 = vmul.f32 %v3544, %v536
    %v3578 = vmul.f32 %v3545, %v536
    %v3579 = vmul.f32 %v3546, %v536
    %v3580 = vmul.f32 %v3547, %v536
    %v3581 = vmul.f32 %v3548, %v536
    %v3582 = vmul.f32 %v3549, %v536
    %v3583 = vmul.f32 %v3550, %v536
    %v3584 = vmul.f32 %v3551, %v536
    %v3585 = vmul.f32 %v3552, %v536
    %v3586 = vadd.f32 %v3554, %v3570
    %v3587 = vadd.f32 %v3555, %v3571
    %v3588 = vadd.f32 %v3556, %v3572
    %v3589 = vadd.f32 %v3557, %v3573
    %v3590 = vadd.f32 %v3558, %v3574
    %v3591 = vadd.f32 %v3559, %v3575
    %v3592 = vadd.f32 %v3560, %v3576
    %v3593 = vadd.f32 %v3561, %v3577
    %v3594 = vadd.f32 %v3562, %v3578
    %v3595 = vadd.f32 %v3563, %v3579
    %v3596 = vadd.f32 %v3564, %v3580
    %v3597 = vadd.f32 %v3565, %v3581
    %v3598 = vadd.f32 %v3566, %v3582
    %v3599 = vadd.f32 %v3567, %v3583
    %v3600 = vadd.f32 %v3568, %v3584
    %v3601 = vadd.f32 %v3569, %v3585
    %v3602 = vmul.f32 %v3537, %v570
    %v3603 = vmul.f32 %v3538, %v570
    %v3604 = vmul.f32 %v3539, %v570
    %v3605 = vmul.f32 %v3540, %v570
    %v3606 = vmul.f32 %v3541, %v570
    %v3607 = vmul.f32 %v3542, %v570
    %v3608 = vmul.f32 %v3543, %v570
    %v3609 = vmul.f32 %v3544, %v570
    %v3610 = vmul.f32 %v3545, %v570
    %v3611 = vmul.f32 %v3546, %v570
    %v3612 = vmul.f32 %v3547, %v570
    %v3613 = vmul.f32 %v3548, %v570
    %v3614 = vmul.f32 %v3549, %v570
    %v3615 = vmul.f32 %v3550, %v570
    %v3616 = vmul.f32 %v3551, %v570
    %v3617 = vmul.f32 %v3552, %v570
    %3634 = vrot.lane.b32.xlu0 %v3602, 127
    %v3635 = vpop.permute.xlu0 %3634
    %3636 = vrot.lane.b32.xlu0 %v3603, 127
    %v3637 = vpop.permute.xlu0 %3636
    %3638 = vrot.lane.b32.xlu0 %v3604, 127
    %v3639 = vpop.permute.xlu0 %3638
    %3640 = vrot.lane.b32.xlu0 %v3605, 127
    %v3641 = vpop.permute.xlu0 %3640
    %3642 = vrot.lane.b32.xlu0 %v3606, 127
    %v3643 = vpop.permute.xlu0 %3642
    %3644 = vrot.lane.b32.xlu0 %v3607, 127
    %v3645 = vpop.permute.xlu0 %3644
    %3646 = vrot.lane.b32.xlu0 %v3608, 127
    %v3647 = vpop.permute.xlu0 %3646
    %3648 = vrot.lane.b32.xlu0 %v3609, 127
    %v3649 = vpop.permute.xlu0 %3648
    %3650 = vrot.lane.b32.xlu0 %v3610, 127
    %v3651 = vpop.permute.xlu0 %3650
    %3652 = vrot.lane.b32.xlu0 %v3611, 127
    %v3653 = vpop.permute.xlu0 %3652
    %3654 = vrot.lane.b32.xlu0 %v3612, 127
    %v3655 = vpop.permute.xlu0 %3654
    %3656 = vrot.lane.b32.xlu0 %v3613, 127
    %v3657 = vpop.permute.xlu0 %3656
    %3658 = vrot.lane.b32.xlu0 %v3614, 127
    %v3659 = vpop.permute.xlu0 %3658
    %3660 = vrot.lane.b32.xlu0 %v3615, 127
    %v3661 = vpop.permute.xlu0 %3660
    %3662 = vrot.lane.b32.xlu0 %v3616, 127
    %v3663 = vpop.permute.xlu0 %3662
    %3664 = vrot.lane.b32.xlu0 %v3617, 127
    %v3665 = vpop.permute.xlu0 %3664
    %v3682 = vadd.f32 %v3586, %v3635
    %v3683 = vadd.f32 %v3587, %v3637
    %v3684 = vadd.f32 %v3588, %v3639
    %v3685 = vadd.f32 %v3589, %v3641
    %v3686 = vadd.f32 %v3590, %v3643
    %v3687 = vadd.f32 %v3591, %v3645
    %v3688 = vadd.f32 %v3592, %v3647
    %v3689 = vadd.f32 %v3593, %v3649
    %v3690 = vadd.f32 %v3594, %v3651
    %v3691 = vadd.f32 %v3595, %v3653
    %v3692 = vadd.f32 %v3596, %v3655
    %v3693 = vadd.f32 %v3597, %v3657
    %v3694 = vadd.f32 %v3598, %v3659
    %v3695 = vadd.f32 %v3599, %v3661
    %v3696 = vadd.f32 %v3600, %v3663
    %v3697 = vadd.f32 %v3601, %v3665
    %v3698 = vmul.f32 %v3537, %v668
    %v3699 = vmul.f32 %v3538, %v668
    %v3700 = vmul.f32 %v3539, %v668
    %v3701 = vmul.f32 %v3540, %v668
    %v3702 = vmul.f32 %v3541, %v668
    %v3703 = vmul.f32 %v3542, %v668
    %v3704 = vmul.f32 %v3543, %v668
    %v3705 = vmul.f32 %v3544, %v668
    %v3706 = vmul.f32 %v3545, %v668
    %v3707 = vmul.f32 %v3546, %v668
    %v3708 = vmul.f32 %v3547, %v668
    %v3709 = vmul.f32 %v3548, %v668
    %v3710 = vmul.f32 %v3549, %v668
    %v3711 = vmul.f32 %v3550, %v668
    %v3712 = vmul.f32 %v3551, %v668
    %v3713 = vmul.f32 %v3552, %v668
    %3730 = vrot.lane.b32.xlu0 %v3698, 126
    %v3731 = vpop.permute.xlu0 %3730
    %3732 = vrot.lane.b32.xlu0 %v3699, 126
    %v3733 = vpop.permute.xlu0 %3732
    %3734 = vrot.lane.b32.xlu0 %v3700, 126
    %v3735 = vpop.permute.xlu0 %3734
    %3736 = vrot.lane.b32.xlu0 %v3701, 126
    %v3737 = vpop.permute.xlu0 %3736
    %3738 = vrot.lane.b32.xlu0 %v3702, 126
    %v3739 = vpop.permute.xlu0 %3738
    %3740 = vrot.lane.b32.xlu0 %v3703, 126
    %v3741 = vpop.permute.xlu0 %3740
    %3742 = vrot.lane.b32.xlu0 %v3704, 126
    %v3743 = vpop.permute.xlu0 %3742
    %3744 = vrot.lane.b32.xlu0 %v3705, 126
    %v3745 = vpop.permute.xlu0 %3744
    %3746 = vrot.lane.b32.xlu0 %v3706, 126
    %v3747 = vpop.permute.xlu0 %3746
    %3748 = vrot.lane.b32.xlu0 %v3707, 126
    %v3749 = vpop.permute.xlu0 %3748
    %3750 = vrot.lane.b32.xlu0 %v3708, 126
    %v3751 = vpop.permute.xlu0 %3750
    %3752 = vrot.lane.b32.xlu0 %v3709, 126
    %v3753 = vpop.permute.xlu0 %3752
    %3754 = vrot.lane.b32.xlu0 %v3710, 126
    %v3755 = vpop.permute.xlu0 %3754
    %3756 = vrot.lane.b32.xlu0 %v3711, 126
    %v3757 = vpop.permute.xlu0 %3756
    %3758 = vrot.lane.b32.xlu0 %v3712, 126
    %v3759 = vpop.permute.xlu0 %3758
    %3760 = vrot.lane.b32.xlu0 %v3713, 126
    %v3761 = vpop.permute.xlu0 %3760
    %v3778 = vadd.f32 %v3682, %v3731
    %v3779 = vadd.f32 %v3683, %v3733
    %v3780 = vadd.f32 %v3684, %v3735
    %v3781 = vadd.f32 %v3685, %v3737
    %v3782 = vadd.f32 %v3686, %v3739
    %v3783 = vadd.f32 %v3687, %v3741
    %v3784 = vadd.f32 %v3688, %v3743
    %v3785 = vadd.f32 %v3689, %v3745
    %v3786 = vadd.f32 %v3690, %v3747
    %v3787 = vadd.f32 %v3691, %v3749
    %v3788 = vadd.f32 %v3692, %v3751
    %v3789 = vadd.f32 %v3693, %v3753
    %v3790 = vadd.f32 %v3694, %v3755
    %v3791 = vadd.f32 %v3695, %v3757
    %v3792 = vadd.f32 %v3696, %v3759
    %v3793 = vadd.f32 %v3697, %v3761
    %3795 = vset.pattern.permute.xlu0 0
    %3796 = vperm.xlu0 %3795, %v3778
    %v3797 = vpop.permute.xlu0 %3796
    %3800 = vset.pattern.permute.xlu0 0
    %3801 = vperm.xlu0 %3800, %v3779
    %v3802 = vpop.permute.xlu0 %3801
    %3805 = vset.pattern.permute.xlu0 0
    %3806 = vperm.xlu0 %3805, %v3780
    %v3807 = vpop.permute.xlu0 %3806
    %3810 = vset.pattern.permute.xlu0 0
    %3811 = vperm.xlu0 %3810, %v3781
    %v3812 = vpop.permute.xlu0 %3811
    %3815 = vset.pattern.permute.xlu0 0
    %3816 = vperm.xlu0 %3815, %v3782
    %v3817 = vpop.permute.xlu0 %3816
    %3820 = vset.pattern.permute.xlu0 0
    %3821 = vperm.xlu0 %3820, %v3783
    %v3822 = vpop.permute.xlu0 %3821
    %3825 = vset.pattern.permute.xlu0 0
    %3826 = vperm.xlu0 %3825, %v3784
    %v3827 = vpop.permute.xlu0 %3826
    %3830 = vset.pattern.permute.xlu0 0
    %3831 = vperm.xlu0 %3830, %v3785
    %v3832 = vpop.permute.xlu0 %3831
    %3835 = vset.pattern.permute.xlu0 0
    %3836 = vperm.xlu0 %3835, %v3786
    %v3837 = vpop.permute.xlu0 %3836
    %3840 = vset.pattern.permute.xlu0 0
    %3841 = vperm.xlu0 %3840, %v3787
    %v3842 = vpop.permute.xlu0 %3841
    %3845 = vset.pattern.permute.xlu0 0
    %3846 = vperm.xlu0 %3845, %v3788
    %v3847 = vpop.permute.xlu0 %3846
    %3850 = vset.pattern.permute.xlu0 0
    %3851 = vperm.xlu0 %3850, %v3789
    %v3852 = vpop.permute.xlu0 %3851
    %3855 = vset.pattern.permute.xlu0 0
    %3856 = vperm.xlu0 %3855, %v3790
    %v3857 = vpop.permute.xlu0 %3856
    %3860 = vset.pattern.permute.xlu0 0
    %3861 = vperm.xlu0 %3860, %v3791
    %v3862 = vpop.permute.xlu0 %3861
    %3865 = vset.pattern.permute.xlu0 0
    %3866 = vperm.xlu0 %3865, %v3792
    %v3867 = vpop.permute.xlu0 %3866
    %3870 = vset.pattern.permute.xlu0 0
    %3871 = vperm.xlu0 %3870, %v3793
    %v3872 = vpop.permute.xlu0 %3871
    %v3874 = vmul.f32 %v3537, %v846
    %v3875 = vmul.f32 %v3538, %v846
    %v3876 = vmul.f32 %v3539, %v846
    %v3877 = vmul.f32 %v3540, %v846
    %v3878 = vmul.f32 %v3541, %v846
    %v3879 = vmul.f32 %v3542, %v846
    %v3880 = vmul.f32 %v3543, %v846
    %v3881 = vmul.f32 %v3544, %v846
    %v3882 = vmul.f32 %v3545, %v846
    %v3883 = vmul.f32 %v3546, %v846
    %v3884 = vmul.f32 %v3547, %v846
    %v3885 = vmul.f32 %v3548, %v846
    %v3886 = vmul.f32 %v3549, %v846
    %v3887 = vmul.f32 %v3550, %v846
    %v3888 = vmul.f32 %v3551, %v846
    %v3889 = vmul.f32 %v3552, %v846
    %v3890 = vadd.f32 %v3554, %v3874
    %v3891 = vadd.f32 %v3555, %v3875
    %v3892 = vadd.f32 %v3556, %v3876
    %v3893 = vadd.f32 %v3557, %v3877
    %v3894 = vadd.f32 %v3558, %v3878
    %v3895 = vadd.f32 %v3559, %v3879
    %v3896 = vadd.f32 %v3560, %v3880
    %v3897 = vadd.f32 %v3561, %v3881
    %v3898 = vadd.f32 %v3562, %v3882
    %v3899 = vadd.f32 %v3563, %v3883
    %v3900 = vadd.f32 %v3564, %v3884
    %v3901 = vadd.f32 %v3565, %v3885
    %v3902 = vadd.f32 %v3566, %v3886
    %v3903 = vadd.f32 %v3567, %v3887
    %v3904 = vadd.f32 %v3568, %v3888
    %v3905 = vadd.f32 %v3569, %v3889
    %v3906 = vmul.f32 %v3537, %v880
    %v3907 = vmul.f32 %v3538, %v880
    %v3908 = vmul.f32 %v3539, %v880
    %v3909 = vmul.f32 %v3540, %v880
    %v3910 = vmul.f32 %v3541, %v880
    %v3911 = vmul.f32 %v3542, %v880
    %v3912 = vmul.f32 %v3543, %v880
    %v3913 = vmul.f32 %v3544, %v880
    %v3914 = vmul.f32 %v3545, %v880
    %v3915 = vmul.f32 %v3546, %v880
    %v3916 = vmul.f32 %v3547, %v880
    %v3917 = vmul.f32 %v3548, %v880
    %v3918 = vmul.f32 %v3549, %v880
    %v3919 = vmul.f32 %v3550, %v880
    %v3920 = vmul.f32 %v3551, %v880
    %v3921 = vmul.f32 %v3552, %v880
    %3938 = vrot.lane.b32.xlu0 %v3906, 127
    %v3939 = vpop.permute.xlu0 %3938
    %3940 = vrot.lane.b32.xlu0 %v3907, 127
    %v3941 = vpop.permute.xlu0 %3940
    %3942 = vrot.lane.b32.xlu0 %v3908, 127
    %v3943 = vpop.permute.xlu0 %3942
    %3944 = vrot.lane.b32.xlu0 %v3909, 127
    %v3945 = vpop.permute.xlu0 %3944
    %3946 = vrot.lane.b32.xlu0 %v3910, 127
    %v3947 = vpop.permute.xlu0 %3946
    %3948 = vrot.lane.b32.xlu0 %v3911, 127
    %v3949 = vpop.permute.xlu0 %3948
    %3950 = vrot.lane.b32.xlu0 %v3912, 127
    %v3951 = vpop.permute.xlu0 %3950
    %3952 = vrot.lane.b32.xlu0 %v3913, 127
    %v3953 = vpop.permute.xlu0 %3952
    %3954 = vrot.lane.b32.xlu0 %v3914, 127
    %v3955 = vpop.permute.xlu0 %3954
    %3956 = vrot.lane.b32.xlu0 %v3915, 127
    %v3957 = vpop.permute.xlu0 %3956
    %3958 = vrot.lane.b32.xlu0 %v3916, 127
    %v3959 = vpop.permute.xlu0 %3958
    %3960 = vrot.lane.b32.xlu0 %v3917, 127
    %v3961 = vpop.permute.xlu0 %3960
    %3962 = vrot.lane.b32.xlu0 %v3918, 127
    %v3963 = vpop.permute.xlu0 %3962
    %3964 = vrot.lane.b32.xlu0 %v3919, 127
    %v3965 = vpop.permute.xlu0 %3964
    %3966 = vrot.lane.b32.xlu0 %v3920, 127
    %v3967 = vpop.permute.xlu0 %3966
    %3968 = vrot.lane.b32.xlu0 %v3921, 127
    %v3969 = vpop.permute.xlu0 %3968
    %v3986 = vadd.f32 %v3890, %v3939
    %v3987 = vadd.f32 %v3891, %v3941
    %v3988 = vadd.f32 %v3892, %v3943
    %v3989 = vadd.f32 %v3893, %v3945
    %v3990 = vadd.f32 %v3894, %v3947
    %v3991 = vadd.f32 %v3895, %v3949
    %v3992 = vadd.f32 %v3896, %v3951
    %v3993 = vadd.f32 %v3897, %v3953
    %v3994 = vadd.f32 %v3898, %v3955
    %v3995 = vadd.f32 %v3899, %v3957
    %v3996 = vadd.f32 %v3900, %v3959
    %v3997 = vadd.f32 %v3901, %v3961
    %v3998 = vadd.f32 %v3902, %v3963
    %v3999 = vadd.f32 %v3903, %v3965
    %v4000 = vadd.f32 %v3904, %v3967
    %v4001 = vadd.f32 %v3905, %v3969
    %v4002 = vmul.f32 %v3537, %v978
    %v4003 = vmul.f32 %v3538, %v978
    %v4004 = vmul.f32 %v3539, %v978
    %v4005 = vmul.f32 %v3540, %v978
    %v4006 = vmul.f32 %v3541, %v978
    %v4007 = vmul.f32 %v3542, %v978
    %v4008 = vmul.f32 %v3543, %v978
    %v4009 = vmul.f32 %v3544, %v978
    %v4010 = vmul.f32 %v3545, %v978
    %v4011 = vmul.f32 %v3546, %v978
    %v4012 = vmul.f32 %v3547, %v978
    %v4013 = vmul.f32 %v3548, %v978
    %v4014 = vmul.f32 %v3549, %v978
    %v4015 = vmul.f32 %v3550, %v978
    %v4016 = vmul.f32 %v3551, %v978
    %v4017 = vmul.f32 %v3552, %v978
    %4034 = vrot.lane.b32.xlu0 %v4002, 126
    %v4035 = vpop.permute.xlu0 %4034
    %4036 = vrot.lane.b32.xlu0 %v4003, 126
    %v4037 = vpop.permute.xlu0 %4036
    %4038 = vrot.lane.b32.xlu0 %v4004, 126
    %v4039 = vpop.permute.xlu0 %4038
    %4040 = vrot.lane.b32.xlu0 %v4005, 126
    %v4041 = vpop.permute.xlu0 %4040
    %4042 = vrot.lane.b32.xlu0 %v4006, 126
    %v4043 = vpop.permute.xlu0 %4042
    %4044 = vrot.lane.b32.xlu0 %v4007, 126
    %v4045 = vpop.permute.xlu0 %4044
    %4046 = vrot.lane.b32.xlu0 %v4008, 126
    %v4047 = vpop.permute.xlu0 %4046
    %4048 = vrot.lane.b32.xlu0 %v4009, 126
    %v4049 = vpop.permute.xlu0 %4048
    %4050 = vrot.lane.b32.xlu0 %v4010, 126
    %v4051 = vpop.permute.xlu0 %4050
    %4052 = vrot.lane.b32.xlu0 %v4011, 126
    %v4053 = vpop.permute.xlu0 %4052
    %4054 = vrot.lane.b32.xlu0 %v4012, 126
    %v4055 = vpop.permute.xlu0 %4054
    %4056 = vrot.lane.b32.xlu0 %v4013, 126
    %v4057 = vpop.permute.xlu0 %4056
    %4058 = vrot.lane.b32.xlu0 %v4014, 126
    %v4059 = vpop.permute.xlu0 %4058
    %4060 = vrot.lane.b32.xlu0 %v4015, 126
    %v4061 = vpop.permute.xlu0 %4060
    %4062 = vrot.lane.b32.xlu0 %v4016, 126
    %v4063 = vpop.permute.xlu0 %4062
    %4064 = vrot.lane.b32.xlu0 %v4017, 126
    %v4065 = vpop.permute.xlu0 %4064
    %v4082 = vadd.f32 %v3986, %v4035
    %v4083 = vadd.f32 %v3987, %v4037
    %v4084 = vadd.f32 %v3988, %v4039
    %v4085 = vadd.f32 %v3989, %v4041
    %v4086 = vadd.f32 %v3990, %v4043
    %v4087 = vadd.f32 %v3991, %v4045
    %v4088 = vadd.f32 %v3992, %v4047
    %v4089 = vadd.f32 %v3993, %v4049
    %v4090 = vadd.f32 %v3994, %v4051
    %v4091 = vadd.f32 %v3995, %v4053
    %v4092 = vadd.f32 %v3996, %v4055
    %v4093 = vadd.f32 %v3997, %v4057
    %v4094 = vadd.f32 %v3998, %v4059
    %v4095 = vadd.f32 %v3999, %v4061
    %v4096 = vadd.f32 %v4000, %v4063
    %v4097 = vadd.f32 %v4001, %v4065
    %4099 = vset.pattern.permute.xlu0 0
    %4100 = vperm.xlu0 %4099, %v4082
    %v4101 = vpop.permute.xlu0 %4100
    %4104 = vset.pattern.permute.xlu0 0
    %4105 = vperm.xlu0 %4104, %v4083
    %v4106 = vpop.permute.xlu0 %4105
    %4109 = vset.pattern.permute.xlu0 0
    %4110 = vperm.xlu0 %4109, %v4084
    %v4111 = vpop.permute.xlu0 %4110
    %4114 = vset.pattern.permute.xlu0 0
    %4115 = vperm.xlu0 %4114, %v4085
    %v4116 = vpop.permute.xlu0 %4115
    %4119 = vset.pattern.permute.xlu0 0
    %4120 = vperm.xlu0 %4119, %v4086
    %v4121 = vpop.permute.xlu0 %4120
    %4124 = vset.pattern.permute.xlu0 0
    %4125 = vperm.xlu0 %4124, %v4087
    %v4126 = vpop.permute.xlu0 %4125
    %4129 = vset.pattern.permute.xlu0 0
    %4130 = vperm.xlu0 %4129, %v4088
    %v4131 = vpop.permute.xlu0 %4130
    %4134 = vset.pattern.permute.xlu0 0
    %4135 = vperm.xlu0 %4134, %v4089
    %v4136 = vpop.permute.xlu0 %4135
    %4139 = vset.pattern.permute.xlu0 0
    %4140 = vperm.xlu0 %4139, %v4090
    %v4141 = vpop.permute.xlu0 %4140
    %4144 = vset.pattern.permute.xlu0 0
    %4145 = vperm.xlu0 %4144, %v4091
    %v4146 = vpop.permute.xlu0 %4145
    %4149 = vset.pattern.permute.xlu0 0
    %4150 = vperm.xlu0 %4149, %v4092
    %v4151 = vpop.permute.xlu0 %4150
    %4154 = vset.pattern.permute.xlu0 0
    %4155 = vperm.xlu0 %4154, %v4093
    %v4156 = vpop.permute.xlu0 %4155
    %4159 = vset.pattern.permute.xlu0 0
    %4160 = vperm.xlu0 %4159, %v4094
    %v4161 = vpop.permute.xlu0 %4160
    %4164 = vset.pattern.permute.xlu0 0
    %4165 = vperm.xlu0 %4164, %v4095
    %v4166 = vpop.permute.xlu0 %4165
    %4169 = vset.pattern.permute.xlu0 0
    %4170 = vperm.xlu0 %4169, %v4096
    %v4171 = vpop.permute.xlu0 %4170
    %4174 = vset.pattern.permute.xlu0 0
    %4175 = vperm.xlu0 %4174, %v4097
    %v4176 = vpop.permute.xlu0 %4175
    %v4178 = vsel %vm1155, %v3797, %v4101
    %v4179 = vsel %vm1155, %v3802, %v4106
    %v4180 = vsel %vm1155, %v3807, %v4111
    %v4181 = vsel %vm1155, %v3812, %v4116
    %v4182 = vsel %vm1155, %v3817, %v4121
    %v4183 = vsel %vm1155, %v3822, %v4126
    %v4184 = vsel %vm1155, %v3827, %v4131
    %v4185 = vsel %vm1155, %v3832, %v4136
    %v4186 = vsel %vm1155, %v3837, %v4141
    %v4187 = vsel %vm1155, %v3842, %v4146
    %v4188 = vsel %vm1155, %v3847, %v4151
    %v4189 = vsel %vm1155, %v3852, %v4156
    %v4190 = vsel %vm1155, %v3857, %v4161
    %v4191 = vsel %vm1155, %v3862, %v4166
    %v4192 = vsel %vm1155, %v3867, %v4171
    %v4193 = vsel %vm1155, %v3872, %v4176
    %v4194 = vmul.f32 %v3528, %v4178
    %v4195 = vmul.f32 %v3529, %v4179
    %v4196 = vmul.f32 %v3530, %v4180
    %v4197 = vmul.f32 %v3531, %v4181
    %v4198 = vmul.f32 %v3532, %v4182
    %v4199 = vmul.f32 %v3533, %v4183
    %v4200 = vmul.f32 %v3534, %v4184
    %v4201 = vmul.f32 %v3535, %v4185
    %v4202 = vadd.f32 %v4194, %v4186
    %v4203 = vadd.f32 %v4195, %v4187
    %v4204 = vadd.f32 %v4196, %v4188
    %v4205 = vadd.f32 %v4197, %v4189
    %v4206 = vadd.f32 %v4198, %v4190
    %v4207 = vadd.f32 %v4199, %v4191
    %v4208 = vadd.f32 %v4200, %v4192
    %v4209 = vadd.f32 %v4201, %v4193
    %v4210 = vtanh.pop %v4202
    %v4211 = vtanh.pop %v4203
    %v4212 = vtanh.pop %v4204
    %v4213 = vtanh.pop %v4205
    %v4214 = vxor.u32 %v4206, 2147483648
    %v4215 = vxor.u32 %v4207, 2147483648
    %v4216 = vxor.u32 %v4208, 2147483648
    %v4217 = vxor.u32 %v4209, 2147483648
    %v4218 = vmul.f32 %v4214, 1.442695
    %v4219 = vpow.pop %v4218
    %v4220 = vmul.f32 %v4215, 1.442695
    %v4221 = vpow.pop %v4220
    %v4222 = vmul.f32 %v4216, 1.442695
    %v4223 = vpow.pop %v4222
    %v4224 = vmul.f32 %v4217, 1.442695
    %v4225 = vpow.pop %v4224
    %v4226 = vadd.f32 %v4219, 1.0
    %v4227 = vadd.f32 %v4221, 1.0
    %v4228 = vadd.f32 %v4223, 1.0
    %v4229 = vadd.f32 %v4225, 1.0
    %v4230 = vrcp.pop %v4226
    %v4231 = vmul.f32 1.0, %v4230
    %v4232 = vrcp.pop %v4227
    %v4233 = vmul.f32 1.0, %v4232
    %v4234 = vrcp.pop %v4228
    %v4235 = vmul.f32 1.0, %v4234
    %v4236 = vrcp.pop %v4229
    %v4237 = vmul.f32 1.0, %v4236
    %v4238 = vmul.f32 %v4210, %v4231
    %v4239 = vmul.f32 %v4211, %v4233
    %v4240 = vmul.f32 %v4212, %v4235
    %v4241 = vmul.f32 %v4213, %v4237
    %v4242 = vadd.f32 %v4238, %v3414
    %v4243 = vadd.f32 %v4239, %v3419
    %v4244 = vadd.f32 %v4240, %v3424
    %v4245 = vadd.f32 %v4241, %v3429
    %v4246 = vld [vmem:[%s8] sm:$0x1]
    %v4248 = vsel %vm2283, %v4246, 0
    %4250 = vmatprep.subr.mxu0 0.0
    %4251 = vmatpush1.msra.mxu0 0.0
    %4252 = vmatprep.subr.mxu0 0.0
    %4253 = vmatpush1.msra.mxu0 0.0
    %4254 = vmatprep.subr.mxu0 0.0
    %4255 = vmatpush1.msra.mxu0 0.0
    %4256 = vmatprep.subr.mxu0 0.0
    %4257 = vmatpush1.msra.mxu0 0.0
    %4258 = vmatprep.subr.mxu0 0.0
    %4259 = vmatpush1.msra.mxu0 0.0
    %4260 = vmatprep.subr.mxu0 0.0
    %4261 = vmatpush1.msra.mxu0 0.0
    %4262 = vmatprep.subr.mxu0 0.0
    %4263 = vmatpush1.msra.mxu0 0.0
    %4264 = vmatprep.subr.mxu0 0.0
    %4265 = vmatpush1.msra.mxu0 0.0
    %4266 = vmatprep.subr.mxu0 0.0
    %4267 = vmatpush1.msra.mxu0 0.0
    %4268 = vmatprep.subr.mxu0 0.0
    %4269 = vmatpush1.msra.mxu0 0.0
    %4270 = vmatprep.subr.mxu0 0.0
    %4271 = vmatpush1.msra.mxu0 0.0
    %4272 = vmatprep.subr.mxu0 0.0
    %4273 = vmatpush1.msra.mxu0 0.0
    %4274 = vmatprep.subr.mxu0 0.0
    %4275 = vmatpush1.msra.mxu0 %v4245
    %4276 = vmatprep.subr.mxu0 0.0
    %4277 = vmatpush1.msra.mxu0 %v4244
    %4278 = vmatprep.subr.mxu0 0.0
    %4279 = vmatpush1.msra.mxu0 %v4243
    %4280 = vmatprep.subr.mxu0 0.0
    %4281 = vmatpush1.msra.mxu0 %v4242
    %4282 = vmatprep.subr.mxu0 0.0
    %4283 = vmatpush2.msra.mxu0 0.0
    %4284 = vmatprep.subr.mxu0 0.0
    %4285 = vmatpush2.msra.mxu0 0.0
    %4286 = vmatprep.subr.mxu0 0.0
    %4287 = vmatpush2.msra.mxu0 0.0
    %4288 = vmatprep.subr.mxu0 0.0
    %4289 = vmatpush2.msra.mxu0 0.0
    %4290 = vmatprep.subr.mxu0 0.0
    %4291 = vmatpush2.msra.mxu0 0.0
    %4292 = vmatprep.subr.mxu0 0.0
    %4293 = vmatpush2.msra.mxu0 0.0
    %4294 = vmatprep.subr.mxu0 0.0
    %4295 = vmatpush2.msra.mxu0 0.0
    %4296 = vmatprep.subr.mxu0 0.0
    %4297 = vmatpush2.msra.mxu0 0.0
    %4298 = vmatprep.subr.mxu0 0.0
    %4299 = vmatpush2.msra.mxu0 0.0
    %4300 = vmatprep.subr.mxu0 0.0
    %4301 = vmatpush2.msra.mxu0 0.0
    %4302 = vmatprep.subr.mxu0 0.0
    %4303 = vmatpush2.msra.mxu0 0.0
    %4304 = vmatprep.subr.mxu0 0.0
    %4305 = vmatpush2.msra.mxu0 0.0
    %4306 = vmatprep.subr.mxu0 0.0
    %4307 = vmatpush2.msra.mxu0 0.0
    %4308 = vmatprep.subr.mxu0 0.0
    %4309 = vmatpush2.msra.mxu0 0.0
    %4310 = vmatprep.subr.mxu0 0.0
    %4311 = vmatpush2.msra.mxu0 0.0
    %4312 = vmatprep.subr.mxu0 0.0
    %4313 = vmatpush2.msra.mxu0 0.0
    %4314 = vmatprep.mubr.f32.mxu0 0.0
    %4315 = vmatmul.mubr.f32.gmra.mxu0 %v4248
    %v4316 = vpop.f32.mrf.mxu0
    %v4317 = vadd.f32 0.0, %v4316
    %v4318 = vpop.f32.mrf.mxu0
    %4319 = vdwg.mxu0
    %v4320 = vtanh.pop %v4317
    %vm4321 = vcmask 516096
    %4322 = vst.msk [vmem:[#allocation5] sm:$0x1] %vm4321, %v4320
    %4324 = vrot.lane.b32.xlu0 %v4320, 64
    %v4325 = vpop.permute.xlu0 %4324
    %s4327 = scalar_lea.vmem [#allocation5], 1
    %4328 = vst.msk [vmem:[%s4327] sm:$0x1] %vm4321, %v4325
    // Predicated region
    $region42: #{gcn1d_forward.1} parent=1 // pred_check
      _
    $region43: #{gcn1d_forward.1} parent=1 // pred_check_branch
      %4330 = sbr.rel (0) target = $region45
    $region44: #{gcn1d_forward.1} parent=1 // pred_region
      %s4332 = ssub.s32 32, 32
      %4333 = vsyncadd [#allocation3], %s4332
      %s4334 = sshll.u32 [#allocation5], 4
      %s4335 = int_to_ptr.vmem [resolvable:$true] %s4334
      %4340 = dma.vmem_to_hbm [thread:$0]  %s4335, 32, %s9, [#allocation3], 16, 16, 1
    $region45: #{gcn1d_forward.1} parent=1 // pred_fallthru
      _
    // Predicated region
    $region46: #{gcn1d_forward.1} parent=1 // pred_check
      _
    $region47: #{gcn1d_forward.1} parent=1 // pred_check_branch
      %4342 = sbr.rel (0) target = $region49
    $region48: #{gcn1d_forward.1} parent=1 // pred_region
      %4343 = dma.done [#allocation3], 32
    $region49: #{gcn1d_forward.1} parent=1 // pred_fallthru
      _
    %4344 = vsyncpa [#allocation3], 1
    %4345 = vsyncpa [#allocation4], 1

</llo_original>
